<compile_context>
chip_gen: v5e
topology: v5e:2x2
jax: 0.10.0
libtpu: 0.0.40
codegen_flags: <defaults>
</compile_context>

<pallas_src>
import functools

import jax
import jax.numpy as jnp
from jax import lax
from jax.experimental import pallas as pl
from jax.experimental.pallas import tpu as pltpu


# ------------------------------- config ------------------------------------

class Config:
    bb_input_channel = 32
    num_bb_classes = 4
    num_dir_bins = 12
    velocity_brake_prediction = True
    predict_vectors = True


OUT_PAD = 32  # fused output channel slab width (>= 28 real channels, mult of 8)


def _head_specs(config):
    """(name, cout) in fused column order.  Heatmap MUST be first (sigmoid)."""
    heads = [
        ('heatmap', config.num_bb_classes),
        ('wh', 2),
        ('offset', 2),
        ('yaw_class', config.num_dir_bins),
        ('yaw_res', 1),
    ]
    if config.velocity_brake_prediction:
        heads += [('velocity', 1), ('brake', 2)]
    if config.predict_vectors:
        heads += [('velocity_vector', 2), ('acceleration_vector', 2)]
    return heads


# ------------------------------ Pallas kernel -------------------------------

def _fused_head_kernel(feat_ref, w1_ref, b1_ref, w2_ref, b2_ref, out_ref, *,
                       B, TH, W, C, n_sigmoid):
    """All CenterNet heads fused: im2col 3x3 conv -> ReLU -> block-diag 1x1 conv.

    feat_ref : (B, H+2, W+2, C)      zero-padded NHWC feature (bf16), resident
    w1_ref   : (9*C, n_heads*C)      fused 3x3 conv weights (bf16), resident
    b1_ref   : (1, n_heads*C)        fused 3x3 conv bias   (f32), resident
    w2_ref   : (n_heads*C, OUT_PAD)  block-diag fused 1x1 conv weights (bf16)
    b2_ref   : (1, OUT_PAD)          fused 1x1 conv bias   (f32)
    out_ref  : (B, OUT_PAD, TH*W)    channels-major, lane-dense output tile (f32)
    """
    r = pl.program_id(0)
    row0 = pl.multiple_of(r * TH, TH)              # padded-row offset of tile r

    # Row window with the 1-pixel halo (padded coords), all batch elements.
    f = feat_ref[:, pl.ds(row0, TH + 2), :, :]     # (B, TH+2, W+2, C)

    # im2col: 9 shifted taps concatenated along the channel (lane) axis,
    # reshaped once to 2-D with the batch folded into M.
    taps = [f[:, dy:dy + TH, dx:dx + W, :] for dy in range(3) for dx in range(3)]
    patches = jnp.concatenate(taps, axis=-1).reshape(B * TH * W, 9 * C)

    # 3x3 conv of ALL heads as one MXU matmul (K = 9C, N = n_heads*C).
    hidden = jnp.dot(patches, w1_ref[...], preferred_element_type=jnp.float32)
    hidden = jnp.maximum(hidden + b1_ref[...], 0.0)          # bias + ReLU in f32

    # 1x1 convs of ALL heads as one block-diagonal matmul into a 32-wide slab.
    out = jnp.dot(hidden.astype(w2_ref.dtype), w2_ref[...],
                  preferred_element_type=jnp.float32) + b2_ref[...]

    # Sigmoid only on the heatmap columns (fused layout puts them first).
    col = lax.broadcasted_iota(jnp.int32, out.shape, 1)
    out = jnp.where(col < n_sigmoid, jax.nn.sigmoid(out), out)

    # (B*TH*W, OUT_PAD) -> (B, OUT_PAD, TH*W): channels-major so the wrapper
    # needs no transpose and stores are unmasked 128-lane vst.
    out3 = out.reshape(B, TH * W, OUT_PAD)
    out_t = jnp.stack([out3[b].T for b in range(B)], axis=0)  # (B, OUT_PAD, TH*W)
    out_ref[...] = out_t.astype(out_ref.dtype)


def run_fused_heads(feat_pad_bf16, w1_all, b1_all, w2_all, b2_all, *,
                    n_sigmoid, n_row_tiles):
    """One pallas_call for all batch elements and all heads.

    Returns a channels-major slab of shape (B, OUT_PAD, H*W), float32.
    """
    B, Hp2, Wp2, C = feat_pad_bf16.shape
    H, W = Hp2 - 2, Wp2 - 2
    assert H % n_row_tiles == 0
    TH = H // n_row_tiles
    # Lane-dense output tile: last block dim must be a multiple of 128 unless
    # it is the full array extent.
    assert (TH * W) % 128 == 0 or n_row_tiles == 1, (TH, W)
    n_hidden = w1_all.shape[1]
    M = B * H * W

    kernel = functools.partial(_fused_head_kernel, B=B, TH=TH, W=W, C=C,
                               n_sigmoid=n_sigmoid)

    flops = 2 * M * n_hidden * (9 * C + OUT_PAD)
    bytes_accessed = (feat_pad_bf16.size * 2 + w1_all.size * 2 + w2_all.size * 2
                      + (b1_all.size + b2_all.size) * 4
                      + B * OUT_PAD * H * W * 4)

    return pl.pallas_call(
        kernel,
        out_shape=jax.ShapeDtypeStruct((B, OUT_PAD, H * W), jnp.float32),
        grid=(n_row_tiles,),
        in_specs=[
            # Whole padded feature, constant index_map -> fetched once per core.
            pl.BlockSpec((B, Hp2, Wp2, C), lambda r: (0, 0, 0, 0)),
            # Fused weights / biases: constant index_map -> resident.
            pl.BlockSpec((9 * C, n_hidden), lambda r: (0, 0)),
            pl.BlockSpec((1, n_hidden), lambda r: (0, 0)),
            pl.BlockSpec((n_hidden, OUT_PAD), lambda r: (0, 0)),
            pl.BlockSpec((1, OUT_PAD), lambda r: (0, 0)),
        ],
        out_specs=pl.BlockSpec((B, OUT_PAD, TH * W), lambda r: (0, 0, r)),
        compiler_params=pltpu.CompilerParams(
            dimension_semantics=("parallel",)),
        cost_estimate=pl.CostEstimate(flops=flops,
                                      transcendentals=M * n_sigmoid,
                                      bytes_accessed=bytes_accessed),
    )(feat_pad_bf16, w1_all, b1_all, w2_all, b2_all)


# --------------------------- parameter handling ------------------------------

def init_head_params(key, c_in, c_out):
    """Deterministic synthetic init (shapes match the nn.Conv2d heads)."""
    k1, k2, k3, k4 = jax.random.split(key, 4)
    w1 = jax.random.normal(k1, (3, 3, c_in, c_in), jnp.float32) / jnp.sqrt(9.0 * c_in)
    b1 = jax.random.normal(k2, (1, c_in), jnp.float32) * 0.01
    w2 = jax.random.normal(k3, (c_in, c_out), jnp.float32) / jnp.sqrt(float(c_in))
    b2 = jax.random.normal(k4, (1, c_out), jnp.float32) * 0.01
    return (w1, b1, w2, b2)


def init_all_params(key, config):
    heads = _head_specs(config)
    keys = jax.random.split(key, len(heads))
    return {name: init_head_params(k, config.bb_input_channel, cout)
            for (name, cout), k in zip(heads, keys)}


def build_fused_params(params, heads, c_in):
    """Concatenate per-head weights into the fused / block-diagonal layout."""
    assert heads[0][0] == 'heatmap', "heatmap must be first (in-kernel sigmoid)"
    n_heads = len(heads)
    n_hidden = n_heads * c_in
    total_cout = sum(cout for _, cout in heads)
    assert total_cout <= OUT_PAD, (total_cout, OUT_PAD)

    # (3,3,Cin,Cin) -> (9*Cin, Cin), concat heads along Cout.
    w1_all = jnp.concatenate(
        [params[name][0].reshape(9 * c_in, c_in) for name, _ in heads], axis=1)
    b1_all = jnp.concatenate([params[name][1] for name, _ in heads], axis=1)

    w2_all = jnp.zeros((n_hidden, OUT_PAD), jnp.float32)
    b2_all = jnp.zeros((1, OUT_PAD), jnp.float32)
    col_off = {}
    off = 0
    for h, (name, cout) in enumerate(heads):
        w2_all = w2_all.at[h * c_in:(h + 1) * c_in, off:off + cout].set(
            params[name][2])
        b2_all = b2_all.at[:, off:off + cout].set(params[name][3])
        col_off[name] = (off, cout)
        off += cout
    assert col_off['heatmap'][0] == 0

    return (w1_all.astype(jnp.bfloat16), b1_all,
            w2_all.astype(jnp.bfloat16), b2_all, col_off)


# ------------------------------ forward wrapper ------------------------------

def _choose_row_tiles(H, W):
    """>=2 parallel grid steps (feeds both v7x TensorCores) when the resulting
    output tile stays lane-dense; otherwise a single full-extent step."""
    if H % 2 == 0 and ((H // 2) * W) % 128 == 0:
        return 2
    return 1


@functools.partial(jax.jit, static_argnames=("n_sigmoid", "n_row_tiles"))
def _forward_core(feat_nchw, w1_all, b1_all, w2_all, b2_all, *,
                  n_sigmoid, n_row_tiles):
    B, C, H, W = feat_nchw.shape
    # NCHW -> NHWC, 1-px zero pad for the 3x3 'same' conv, bf16 cast.  Jitted,
    # so XLA fuses these into a single pass over the feature map.
    # TODO(synk): for production-size feature maps, move the halo padding /
    # layout handling fully in-kernel (row-tiled DMA with Element-offset halos)
    # to avoid this extra XLA pass.
    feat_nhwc = jnp.transpose(feat_nchw, (0, 2, 3, 1))
    feat_pad = jnp.pad(feat_nhwc, ((0, 0), (1, 1), (1, 1), (0, 0))).astype(jnp.bfloat16)
    slab = run_fused_heads(feat_pad, w1_all, b1_all, w2_all, b2_all,
                           n_sigmoid=n_sigmoid, n_row_tiles=n_row_tiles)
    # Kernel already emits channels-major; this reshape is layout-free.
    return slab.reshape(B, OUT_PAD, H, W)


def lidar_center_net_head_forward(feat_nchw, params, config):
    """Mirrors LidarCenterNetHead.forward. Input/outputs are NCHW float32."""
    heads = _head_specs(config)
    c_in = config.bb_input_channel
    w1_all, b1_all, w2_all, b2_all, col_off = build_fused_params(params, heads, c_in)

    B, _, H, W = feat_nchw.shape
    slab_nchw = _forward_core(feat_nchw, w1_all, b1_all, w2_all, b2_all,
                              n_sigmoid=heads[0][1],
                              n_row_tiles=_choose_row_tiles(H, W))

    def take(name):
        off, cout = col_off[name]
        return slab_nchw[:, off:off + cout]

    return_dict = {}
    return_dict['wh_pred'] = take('wh')
    return_dict['offset_pred'] = take('offset')
    return_dict['yaw_class_pred'] = take('yaw_class')
    return_dict['yaw_res_pred'] = take('yaw_res')
    return_dict['center_heatmap_pred'] = take('heatmap')     # sigmoid done in-kernel
    if config.velocity_brake_prediction:
        return_dict['velocity_pred'] = take('velocity')
        return_dict['brake_pred'] = take('brake')
    if config.predict_vectors:
        return_dict['velocity_vector_pred'] = take('velocity_vector')
        return_dict['acceleration_vector_pred'] = take('acceleration_vector')
    return return_dict


# ------------------------------ plain-JAX reference --------------------------

def _ref_head(feat_nchw, params, apply_sigmoid=False):
    w1, b1, w2, b2 = params
    w1_oihw = jnp.transpose(w1, (3, 2, 0, 1))
    h = lax.conv_general_dilated(feat_nchw, w1_oihw, (1, 1), 'SAME')
    h = jnp.maximum(h + b1.reshape(1, -1, 1, 1), 0.0)
    w2_oihw = w2.T.reshape(w2.shape[1], w2.shape[0], 1, 1)
    o = lax.conv_general_dilated(h, w2_oihw, (1, 1), 'SAME') + b2.reshape(1, -1, 1, 1)
    if apply_sigmoid:
        o = jax.nn.sigmoid(o)
    return o


# ----------------------------------- main ------------------------------------

if __name__ == "__main__":
    config = Config()
    key = jax.random.PRNGKey(0)
    k_feat, k_params = jax.random.split(key)

    B, C, H, W = 2, config.bb_input_channel, 16, 16
    feat = jax.random.normal(k_feat, (B, C, H, W), jnp.float32)
    params = init_all_params(k_params, config)

    preds = lidar_center_net_head_forward(feat, params, config)
    preds = jax.tree_util.tree_map(jax.block_until_ready, preds)

    # Sanity check against a plain-JAX f32 reference (kernel uses bf16 inputs /
    # weights with f32 accumulation, so the tolerance is relaxed accordingly).
    ref = {
        'center_heatmap_pred': _ref_head(feat, params['heatmap'], True),
        'wh_pred': _ref_head(feat, params['wh']),
        'offset_pred': _ref_head(feat, params['offset']),
        'yaw_class_pred': _ref_head(feat, params['yaw_class']),
        'yaw_res_pred': _ref_head(feat, params['yaw_res']),
        'velocity_pred': _ref_head(feat, params['velocity']),
        'brake_pred': _ref_head(feat, params['brake']),
        'velocity_vector_pred': _ref_head(feat, params['velocity_vector']),
        'acceleration_vector_pred': _ref_head(feat, params['acceleration_vector']),
    }
    for name, r in ref.items():
        p = preds[name]
        assert p.shape == r.shape, (name, p.shape, r.shape)
        assert jnp.allclose(p, r, atol=5e-2, rtol=5e-2), (
            name, float(jnp.max(jnp.abs(p - r))))

    # TODO(synk): loss() / get_bboxes() / decode_heatmap() (top-k, gather,
    # NMS-by-maxpool) are training/post-processing utilities, not part of
    # forward(); not ported.
    print("KERNEL_OK")
</pallas_src>

<mosaic_0001>
module attributes {stable_mosaic.version = 11 : i64} {
  func.func @_fused_head_kernel(%arg0: i32, %arg1: memref<2x18x18x32xbf16, #tpu.memory_space<vmem>>, %arg2: memref<288x288xbf16, #tpu.memory_space<vmem>>, %arg3: memref<1x288xf32, #tpu.memory_space<vmem>>, %arg4: memref<288x32xbf16, #tpu.memory_space<vmem>>, %arg5: memref<1x32xf32, #tpu.memory_space<vmem>>, %arg6: memref<2x32x128xf32, #tpu.memory_space<vmem>>) attributes {dimension_semantics = [#tpu.dimension_semantics<parallel>], iteration_bounds = array<i64: 2>, scalar_prefetch = 0 : i64, scratch_operands = 0 : i64, tpu.core_type = #tpu.core_type<tc>, window_params = [{pipeline_mode = #tpu.pipeline_mode<synchronous>, transform_indices = @transform_0, window_bounds = array<i64: 2, 18, 18, 32>}, {pipeline_mode = #tpu.pipeline_mode<synchronous>, transform_indices = @transform_1, window_bounds = array<i64: 288, 288>}, {pipeline_mode = #tpu.pipeline_mode<synchronous>, transform_indices = @transform_2, window_bounds = array<i64: 1, 288>}, {pipeline_mode = #tpu.pipeline_mode<synchronous>, transform_indices = @transform_3, window_bounds = array<i64: 288, 32>}, {pipeline_mode = #tpu.pipeline_mode<synchronous>, transform_indices = @transform_4, window_bounds = array<i64: 1, 32>}, {transform_indices = @transform_5, window_bounds = array<i64: 2, 32, 128>}]} {
    %c8_i32 = arith.constant 8 : i32
    %0 = arith.muli %arg0, %c8_i32 : i32
    %1 = tpu.assume_multiple %0, 8 : i32
    %c0 = arith.constant 0 : index
    %2 = arith.index_cast %1 : i32 to index
    %c0_0 = arith.constant 0 : index
    %c0_1 = arith.constant 0 : index
    %3 = vector.load %arg1[%c0, %2, %c0_0, %c0_1] : memref<2x18x18x32xbf16, #tpu.memory_space<vmem>>, vector<2x10x18x32xbf16>
    %4 = vector.extract_strided_slice %3 {offsets = [0, 0, 0, 0], sizes = [2, 8, 16, 32], strides = [1, 1, 1, 1]} : vector<2x10x18x32xbf16> to vector<2x8x16x32xbf16>
    %5 = vector.extract_strided_slice %3 {offsets = [0, 0, 1, 0], sizes = [2, 8, 16, 32], strides = [1, 1, 1, 1]} : vector<2x10x18x32xbf16> to vector<2x8x16x32xbf16>
    %6 = vector.extract_strided_slice %3 {offsets = [0, 0, 2, 0], sizes = [2, 8, 16, 32], strides = [1, 1, 1, 1]} : vector<2x10x18x32xbf16> to vector<2x8x16x32xbf16>
    %7 = vector.extract_strided_slice %3 {offsets = [0, 1, 0, 0], sizes = [2, 8, 16, 32], strides = [1, 1, 1, 1]} : vector<2x10x18x32xbf16> to vector<2x8x16x32xbf16>
    %8 = vector.extract_strided_slice %3 {offsets = [0, 1, 1, 0], sizes = [2, 8, 16, 32], strides = [1, 1, 1, 1]} : vector<2x10x18x32xbf16> to vector<2x8x16x32xbf16>
    %9 = vector.extract_strided_slice %3 {offsets = [0, 1, 2, 0], sizes = [2, 8, 16, 32], strides = [1, 1, 1, 1]} : vector<2x10x18x32xbf16> to vector<2x8x16x32xbf16>
    %10 = vector.extract_strided_slice %3 {offsets = [0, 2, 0, 0], sizes = [2, 8, 16, 32], strides = [1, 1, 1, 1]} : vector<2x10x18x32xbf16> to vector<2x8x16x32xbf16>
    %11 = vector.extract_strided_slice %3 {offsets = [0, 2, 1, 0], sizes = [2, 8, 16, 32], strides = [1, 1, 1, 1]} : vector<2x10x18x32xbf16> to vector<2x8x16x32xbf16>
    %12 = vector.extract_strided_slice %3 {offsets = [0, 2, 2, 0], sizes = [2, 8, 16, 32], strides = [1, 1, 1, 1]} : vector<2x10x18x32xbf16> to vector<2x8x16x32xbf16>
    %13 = tpu.concatenate %4, %5, %6, %7, %8, %9, %10, %11, %12 in 3 : vector<2x8x16x32xbf16>, vector<2x8x16x32xbf16>, vector<2x8x16x32xbf16>, vector<2x8x16x32xbf16>, vector<2x8x16x32xbf16>, vector<2x8x16x32xbf16>, vector<2x8x16x32xbf16>, vector<2x8x16x32xbf16>, vector<2x8x16x32xbf16> -> vector<2x8x16x288xbf16>
    %14 = vector.shape_cast %13 : vector<2x8x16x288xbf16> to vector<256x288xbf16>
    %c0_2 = arith.constant 0 : index
    %c0_3 = arith.constant 0 : index
    %15 = vector.load %arg2[%c0_2, %c0_3] : memref<288x288xbf16, #tpu.memory_space<vmem>>, vector<288x288xbf16>
    %cst = arith.constant dense<0.000000e+00> : vector<256x288xf32>
    %16 = tpu.matmul %14, %15, %cst {dimension_numbers = #tpu.dot_dimension_numbers<[1], [0], [0], [1], [0, 0, 1, 1], [], []>} : vector<256x288xbf16>, vector<288x288xbf16>, vector<256x288xf32> -> vector<256x288xf32>
    %c0_4 = arith.constant 0 : index
    %c0_5 = arith.constant 0 : index
    %17 = vector.load %arg3[%c0_4, %c0_5] : memref<1x288xf32, #tpu.memory_space<vmem>>, vector<1x288xf32>
    %18 = vector.broadcast %17 : vector<1x288xf32> to vector<256x288xf32>
    %19 = arith.addf %16, %18 : vector<256x288xf32>
    %cst_6 = arith.constant 0.000000e+00 : f32
    %20 = vector.broadcast %cst_6 : f32 to vector<256x288xf32>
    %21 = arith.maximumf %19, %20 : vector<256x288xf32>
    %22 = arith.truncf %21 : vector<256x288xf32> to vector<256x288xbf16>
    %c0_7 = arith.constant 0 : index
    %c0_8 = arith.constant 0 : index
    %23 = vector.load %arg4[%c0_7, %c0_8] : memref<288x32xbf16, #tpu.memory_space<vmem>>, vector<288x32xbf16>
    %cst_9 = arith.constant dense<0.000000e+00> : vector<256x32xf32>
    %24 = tpu.matmul %22, %23, %cst_9 {dimension_numbers = #tpu.dot_dimension_numbers<[1], [0], [0], [1], [0, 0, 1, 1], [], []>} : vector<256x288xbf16>, vector<288x32xbf16>, vector<256x32xf32> -> vector<256x32xf32>
    %c0_10 = arith.constant 0 : index
    %c0_11 = arith.constant 0 : index
    %25 = vector.load %arg5[%c0_10, %c0_11] : memref<1x32xf32, #tpu.memory_space<vmem>>, vector<1x32xf32>
    %26 = vector.broadcast %25 : vector<1x32xf32> to vector<256x32xf32>
    %27 = arith.addf %24, %26 : vector<256x32xf32>
    %28 = tpu.iota {dimensions = array<i32: 1>} : vector<256x32xi32>
    %c4_i32 = arith.constant 4 : i32
    %29 = vector.broadcast %c4_i32 : i32 to vector<256x32xi32>
    %30 = arith.cmpi slt, %28, %29 : vector<256x32xi32>
    %31 = arith.negf %27 : vector<256x32xf32>
    %32 = math.exp %31 : vector<256x32xf32>
    %cst_12 = arith.constant 1.000000e+00 : f32
    %33 = vector.broadcast %cst_12 : f32 to vector<256x32xf32>
    %34 = arith.addf %33, %32 : vector<256x32xf32>
    %35 = arith.divf %33, %34 : vector<256x32xf32>
    %36 = arith.select %30, %35, %27 : vector<256x32xi1>, vector<256x32xf32>
    %37 = vector.shape_cast %36 : vector<256x32xf32> to vector<2x128x32xf32>
    %38 = vector.extract_strided_slice %37 {offsets = [0, 0, 0], sizes = [1, 128, 32], strides = [1, 1, 1]} : vector<2x128x32xf32> to vector<1x128x32xf32>
    %39 = vector.shape_cast %38 : vector<1x128x32xf32> to vector<128x32xf32>
    %40 = tpu.transpose %39, [1, 0] : vector<128x32xf32> -> vector<32x128xf32>
    %41 = vector.extract_strided_slice %37 {offsets = [1, 0, 0], sizes = [1, 128, 32], strides = [1, 1, 1]} : vector<2x128x32xf32> to vector<1x128x32xf32>
    %42 = vector.shape_cast %41 : vector<1x128x32xf32> to vector<128x32xf32>
    %43 = tpu.transpose %42, [1, 0] : vector<128x32xf32> -> vector<32x128xf32>
    %44 = vector.shape_cast %40 : vector<32x128xf32> to vector<1x32x128xf32>
    %45 = vector.shape_cast %43 : vector<32x128xf32> to vector<1x32x128xf32>
    %46 = tpu.concatenate %44, %45 in 0 : vector<1x32x128xf32>, vector<1x32x128xf32> -> vector<2x32x128xf32>
    %c0_13 = arith.constant 0 : index
    %c0_14 = arith.constant 0 : index
    %c0_15 = arith.constant 0 : index
    %47 = vector.load %arg6[%c0_13, %c0_14, %c0_15] : memref<2x32x128xf32, #tpu.memory_space<vmem>>, vector<2x32x128xf32>
    tpu.vector_store %arg6[%c0_13, %c0_14, %c0_15], %46 {strides = array<i32>} : memref<2x32x128xf32, #tpu.memory_space<vmem>>, vector<2x32x128xf32>,
    return
  }
  func.func @transform_0(%arg0: i32) -> (i32, i32, i32, i32) {
    %c0_i32 = arith.constant 0 : i32
    %c0_i32_0 = arith.constant 0 : i32
    %c0_i32_1 = arith.constant 0 : i32
    %c0_i32_2 = arith.constant 0 : i32
    %c0_i32_3 = arith.constant 0 : i32
    return %c0_i32, %c0_i32_0, %c0_i32_1, %c0_i32_2 : i32, i32, i32, i32
  }
  func.func @transform_1(%arg0: i32) -> (i32, i32) {
    %c0_i32 = arith.constant 0 : i32
    %c0_i32_0 = arith.constant 0 : i32
    %c0_i32_1 = arith.constant 0 : i32
    return %c0_i32, %c0_i32_0 : i32, i32
  }
  func.func @transform_2(%arg0: i32) -> (i32, i32) {
    %c0_i32 = arith.constant 0 : i32
    %c0_i32_0 = arith.constant 0 : i32
    %c0_i32_1 = arith.constant 0 : i32
    return %c0_i32, %c0_i32_0 : i32, i32
  }
  func.func @transform_3(%arg0: i32) -> (i32, i32) {
    %c0_i32 = arith.constant 0 : i32
    %c0_i32_0 = arith.constant 0 : i32
    %c0_i32_1 = arith.constant 0 : i32
    return %c0_i32, %c0_i32_0 : i32, i32
  }
  func.func @transform_4(%arg0: i32) -> (i32, i32) {
    %c0_i32 = arith.constant 0 : i32
    %c0_i32_0 = arith.constant 0 : i32
    %c0_i32_1 = arith.constant 0 : i32
    return %c0_i32, %c0_i32_0 : i32, i32
  }
  func.func @transform_5(%arg0: i32) -> (i32, i32, i32) {
    %c0_i32 = arith.constant 0 : i32
    %c0_i32_0 = arith.constant 0 : i32
    %c0_i32_1 = arith.constant 0 : i32
    return %c0_i32, %c0_i32_0, %arg0 : i32, i32, i32
  }
}

</mosaic_0001>

<llo_original>
// kernel: _forward_core.1
$region0: #{_forward_core.1}
  #allocation0 [shape = 'u32[]', space=smem, size = 0x4, offset = 0x4, fixed_abs, tag = 'smem constant byte address 0x4 - core index']
  #allocation1 [shape = 'u32[72,128]{1,0:T(1,128)}', space=vmem, size = 0x9000, scoped, tag = 'internal scratch']
  %s0 = inlined_call_operand.vmem [shape: bf16[2,18,18,32], index: 0, kind: input, shape index: {}]
  %s1 = inlined_call_operand.vmem [shape: bf16[288,288], index: 1, kind: input, shape index: {}]
  %s2 = inlined_call_operand.vmem [shape: f32[1,288], index: 2, kind: input, shape index: {}]
  %s3 = inlined_call_operand.vmem [shape: bf16[288,32], index: 3, kind: input, shape index: {}]
  %s4 = inlined_call_operand.vmem [shape: f32[1,32], index: 4, kind: input, shape index: {}]
  %s5 = inlined_call_operand.vmem [shape: f32[2,32,256], index: 5, kind: output, shape index: {}]
  %s6 = sld [smem:[#allocation0]]
  $region87: #{_forward_core.1} parent=0
    _
  %s8 = ssub.s32 1, %s6
  %s9 = scalar_select 0, %s8, %s6
  $region1: #{_forward_core.1} parent=0
    #allocation2 [shape = 'u8[65536]{0}', space=vmem, size = 0x10000, scoped, tag = 'output window, operand 0']
    loop: start=0, step=1, limit=4
    $region2: #{_forward_core.1} parent=1 // loop_pre_header
      _
    $region3: #{_forward_core.1} parent=1 // loop_header
      %s11 = sphi 0, %s15
      %p12 = scmp.ge.s32.totalorder %s11, 4
      %s19 = sphi 0, %s19
      %s21 = sphi 0, %s19
      %s22 = sphi 0, %s21
      %s36 = sphi 0, %s22
      %s40 = sphi 0, %s40
      %s42 = sphi 0, %s40
      %s43 = sphi 0, %s42
      %s57 = sphi 0, %s43
      %s61 = sphi 0, %s61
      %s63 = sphi 0, %s61
      %s64 = sphi 0, %s63
      %s78 = sphi 0, %s64
      %s82 = sphi 0, %s82
      %s84 = sphi 0, %s82
      %s85 = sphi 0, %s84
      %s99 = sphi 0, %s85
      %s103 = sphi 0, %s103
      %s105 = sphi 0, %s103
      %s106 = sphi 0, %s105
      %s120 = sphi 0, %s106
      %s126 = sphi 0, %s128
      %s129 = sphi 0, %s126
      %s130 = sphi 0, %s129
      %s146 = sphi 0, %s130
    $region4: #{_forward_core.1} parent=1 // loop_header_branch
      %14 = sbr.rel (%p12) target = $region8
    $region5: #{_forward_core.1} parent=1 // loop_body
      %s16 = ssub.s32 %s11, 1
      %s17 = ssub.s32 %s11, 2
      %s18 = sadd.s32 %s11, 1
      %s20 = sadd.s32 %s19, 1
      %p23 = scmp.eq.s32.totalorder %s11, 1
      %p24 = scmp.ne.s32.totalorder %s19, %s21
      %p25 = scmp.eq.s32.totalorder %s11, 0
      %p26 = por %p24, %p25
      %p27 = scmp.ne.s32.totalorder %s19, %s21
      %p28 = scmp.eq.s32.totalorder %s16, 1
      %p29 = por %p27, %p28
      %p30 = scmp.ne.s32.totalorder %s21, %s22
      %p31 = scmp.eq.s32.totalorder %s16, 0
      %p32 = por %p30, %p31
      %p33 = scmp.ne.s32.totalorder %s21, %s22
      %p34 = scmp.eq.s32.totalorder %s17, 1
      %p35 = por %p33, %p34
      %p37 = scmp.ne.s32.totalorder %s22, %s36
      %p38 = scmp.eq.s32.totalorder %s17, 0
      %p39 = por %p37, %p38
      %s41 = sadd.s32 %s40, 1
      %p44 = scmp.eq.s32.totalorder %s11, 1
      %p45 = scmp.ne.s32.totalorder %s40, %s42
      %p46 = scmp.eq.s32.totalorder %s11, 0
      %p47 = por %p45, %p46
      %p48 = scmp.ne.s32.totalorder %s40, %s42
      %p49 = scmp.eq.s32.totalorder %s16, 1
      %p50 = por %p48, %p49
      %p51 = scmp.ne.s32.totalorder %s42, %s43
      %p52 = scmp.eq.s32.totalorder %s16, 0
      %p53 = por %p51, %p52
      %p54 = scmp.ne.s32.totalorder %s42, %s43
      %p55 = scmp.eq.s32.totalorder %s17, 1
      %p56 = por %p54, %p55
      %p58 = scmp.ne.s32.totalorder %s43, %s57
      %p59 = scmp.eq.s32.totalorder %s17, 0
      %p60 = por %p58, %p59
      %s62 = sadd.s32 %s61, 1
      %p65 = scmp.eq.s32.totalorder %s11, 1
      %p66 = scmp.ne.s32.totalorder %s61, %s63
      %p67 = scmp.eq.s32.totalorder %s11, 0
      %p68 = por %p66, %p67
      %p69 = scmp.ne.s32.totalorder %s61, %s63
      %p70 = scmp.eq.s32.totalorder %s16, 1
      %p71 = por %p69, %p70
      %p72 = scmp.ne.s32.totalorder %s63, %s64
      %p73 = scmp.eq.s32.totalorder %s16, 0
      %p74 = por %p72, %p73
      %p75 = scmp.ne.s32.totalorder %s63, %s64
      %p76 = scmp.eq.s32.totalorder %s17, 1
      %p77 = por %p75, %p76
      %p79 = scmp.ne.s32.totalorder %s64, %s78
      %p80 = scmp.eq.s32.totalorder %s17, 0
      %p81 = por %p79, %p80
      %s83 = sadd.s32 %s82, 1
      %p86 = scmp.eq.s32.totalorder %s11, 1
      %p87 = scmp.ne.s32.totalorder %s82, %s84
      %p88 = scmp.eq.s32.totalorder %s11, 0
      %p89 = por %p87, %p88
      %p90 = scmp.ne.s32.totalorder %s82, %s84
      %p91 = scmp.eq.s32.totalorder %s16, 1
      %p92 = por %p90, %p91
      %p93 = scmp.ne.s32.totalorder %s84, %s85
      %p94 = scmp.eq.s32.totalorder %s16, 0
      %p95 = por %p93, %p94
      %p96 = scmp.ne.s32.totalorder %s84, %s85
      %p97 = scmp.eq.s32.totalorder %s17, 1
      %p98 = por %p96, %p97
      %p100 = scmp.ne.s32.totalorder %s85, %s99
      %p101 = scmp.eq.s32.totalorder %s17, 0
      %p102 = por %p100, %p101
      %s104 = sadd.s32 %s103, 1
      %p107 = scmp.eq.s32.totalorder %s11, 1
      %p108 = scmp.ne.s32.totalorder %s103, %s105
      %p109 = scmp.eq.s32.totalorder %s11, 0
      %p110 = por %p108, %p109
      %p111 = scmp.ne.s32.totalorder %s103, %s105
      %p112 = scmp.eq.s32.totalorder %s16, 1
      %p113 = por %p111, %p112
      %p114 = scmp.ne.s32.totalorder %s105, %s106
      %p115 = scmp.eq.s32.totalorder %s16, 0
      %p116 = por %p114, %p115
      %p117 = scmp.ne.s32.totalorder %s105, %s106
      %p118 = scmp.eq.s32.totalorder %s17, 1
      %p119 = por %p117, %p118
      %p121 = scmp.ne.s32.totalorder %s106, %s120
      %p122 = scmp.eq.s32.totalorder %s17, 0
      %p123 = por %p121, %p122
      %s124 = ssub.s32 %s11, %s18
      %p125 = scmp.eq.s32.totalorder %s124, 0
      %s127 = sadd.s32 %s126, 1
      %s128 = scalar_select %p125, %s126, %s127
      %p131 = pneg %p125
      %p132 = scmp.eq.s32.totalorder %s11, 1
      %p133 = por %p131, %p132
      %p134 = scmp.ne.s32.totalorder %s126, %s129
      %p135 = scmp.eq.s32.totalorder %s11, 0
      %p136 = por %p134, %p135
      %p137 = scmp.ne.s32.totalorder %s126, %s129
      %p138 = scmp.eq.s32.totalorder %s16, 1
      %p139 = por %p137, %p138
      %p140 = scmp.ne.s32.totalorder %s129, %s130
      %p141 = scmp.eq.s32.totalorder %s16, 0
      %p142 = por %p140, %p141
      %p143 = scmp.ne.s32.totalorder %s129, %s130
      %p144 = scmp.eq.s32.totalorder %s17, 1
      %p145 = por %p143, %p144
      %p147 = scmp.ne.s32.totalorder %s130, %s146
      %p148 = scmp.eq.s32.totalorder %s17, 0
      %p149 = por %p147, %p148
      %p150 = scmp.le.s32.totalorder 1, %s11
      %p151 = scmp.lt.s32.totalorder %s11, 3
      %p152 = pnand %p150, %p151
      %p153 = pneg %p152
      // Predicated region
      $region9: #{_forward_core.1} parent=5 // pred_check
        _
      $region10: #{_forward_core.1} parent=5 // pred_check_branch
        %155 = sbr.rel (%p152) target = $region12
      $region11: #{_forward_core.1} parent=5 // pred_region
        %s156 = ssub.s32 %s11, 1
        // Predicated region
        $region13: #{_forward_core.1} parent=11 // pred_check
          %p157 = pneg %p32
        $region14: #{_forward_core.1} parent=11 // pred_check_branch
          %159 = sbr.rel (%p157) target = $region16
        $region15: #{_forward_core.1} parent=11 // pred_region
          _
        $region16: #{_forward_core.1} parent=11 // pred_fallthru
          _
        // Predicated region
        $region17: #{_forward_core.1} parent=11 // pred_check
          %p160 = pneg %p53
        $region18: #{_forward_core.1} parent=11 // pred_check_branch
          %162 = sbr.rel (%p160) target = $region20
        $region19: #{_forward_core.1} parent=11 // pred_region
          _
        $region20: #{_forward_core.1} parent=11 // pred_fallthru
          _
        // Predicated region
        $region21: #{_forward_core.1} parent=11 // pred_check
          %p163 = pneg %p74
        $region22: #{_forward_core.1} parent=11 // pred_check_branch
          %165 = sbr.rel (%p163) target = $region24
        $region23: #{_forward_core.1} parent=11 // pred_region
          _
        $region24: #{_forward_core.1} parent=11 // pred_fallthru
          _
        // Predicated region
        $region25: #{_forward_core.1} parent=11 // pred_check
          %p166 = pneg %p95
        $region26: #{_forward_core.1} parent=11 // pred_check_branch
          %168 = sbr.rel (%p166) target = $region28
        $region27: #{_forward_core.1} parent=11 // pred_region
          _
        $region28: #{_forward_core.1} parent=11 // pred_fallthru
          _
        // Predicated region
        $region29: #{_forward_core.1} parent=11 // pred_check
          %p169 = pneg %p116
        $region30: #{_forward_core.1} parent=11 // pred_check_branch
          %171 = sbr.rel (%p169) target = $region32
        $region31: #{_forward_core.1} parent=11 // pred_region
          _
        $region32: #{_forward_core.1} parent=11 // pred_fallthru
          _
      $region12: #{_forward_core.1} parent=5 // pred_fallthru
        _
      %p172 = scmp.lt.s32.totalorder %s11, 2
      // Predicated region
      $region33: #{_forward_core.1} parent=5 // pred_check
        %p173 = pneg %p172
      $region34: #{_forward_core.1} parent=5 // pred_check_branch
        %175 = sbr.rel (%p173) target = $region36
      $region35: #{_forward_core.1} parent=5 // pred_region
        _
      $region36: #{_forward_core.1} parent=5 // pred_fallthru
        _
      %p176 = scmp.le.s32.totalorder 1, %s11
      %p177 = scmp.lt.s32.totalorder %s11, 3
      %p178 = pnand %p176, %p177
      %p179 = pneg %p178
      // Predicated region
      $region37: #{_forward_core.1} parent=5 // pred_check
        _
      $region38: #{_forward_core.1} parent=5 // pred_check_branch
        %181 = sbr.rel (%p178) target = $region40
      $region39: #{_forward_core.1} parent=5 // pred_region
        %s182 = ssub.s32 %s11, 1
        %p183 = pneg %p32
        %p184 = pneg %p29
        %p185 = pneg %p53
        %p186 = pneg %p50
        %p187 = pneg %p74
        %p188 = pneg %p71
        %p189 = pneg %p95
        %p190 = pneg %p92
        %p191 = pneg %p116
        %p192 = pneg %p113
        %p193 = pneg %p142
        %p194 = pneg %p139
        %s195 = sand.u32 %s129, 1
        %s196 = sand.u32 %s129, 1
        %s197 = smul.addr %s196, 64
        %s198 = scalar_lea.vmem [#allocation2], %s197
        %s200 = smul.u32 %s16, 8
        %s201 = smul.u32 %s200, 3
        %s202 = smul.addr %s201, 4
        %s203 = scalar_lea.vmem %s0, %s202
        %v204 = vld [vmem:[%s203] sm:$0xf]
        %v205 = vld [vmem:[%s203 + $0x4] sm:$0xf]
        %v206 = vld [vmem:[%s203 + $0x8] sm:$0x1]
        %v207 = vld [vmem:[%s203 + $0xc] sm:$0xf]
        %v208 = vld [vmem:[%s203 + $0x10] sm:$0xf]
        %v209 = vld [vmem:[%s203 + $0x14] sm:$0x1]
        %v210 = vld [vmem:[%s203 + $0x18] sm:$0xf]
        %v211 = vld [vmem:[%s203 + $0x1c] sm:$0xf]
        %v212 = vld [vmem:[%s203 + $0x20] sm:$0x1]
        %v213 = vld [vmem:[%s203 + $0x24] sm:$0xf]
        %v214 = vld [vmem:[%s203 + $0x28] sm:$0xf]
        %v215 = vld [vmem:[%s203 + $0x2c] sm:$0x1]
        %v216 = vld [vmem:[%s203 + $0x30] sm:$0xf]
        %v217 = vld [vmem:[%s203 + $0x34] sm:$0xf]
        %v218 = vld [vmem:[%s203 + $0x38] sm:$0x1]
        %v219 = vld [vmem:[%s203 + $0x3c] sm:$0xf]
        %v220 = vld [vmem:[%s203 + $0x40] sm:$0xf]
        %v221 = vld [vmem:[%s203 + $0x44] sm:$0x1]
        %v222 = vld [vmem:[%s203 + $0x48] sm:$0xf]
        %v223 = vld [vmem:[%s203 + $0x4c] sm:$0xf]
        %v224 = vld [vmem:[%s203 + $0x50] sm:$0x1]
        %v225 = vld [vmem:[%s203 + $0x54] sm:$0xf]
        %v226 = vld [vmem:[%s203 + $0x58] sm:$0xf]
        %v227 = vld [vmem:[%s203 + $0x5c] sm:$0x1]
        %v228 = vld [vmem:[%s203 + $0x60] sm:$0xf]
        %v229 = vld [vmem:[%s203 + $0x64] sm:$0xf]
        %v230 = vld [vmem:[%s203 + $0x68] sm:$0x1]
        %v231 = vld [vmem:[%s203 + $0x6c] sm:$0xf]
        %v232 = vld [vmem:[%s203 + $0x70] sm:$0xf]
        %v233 = vld [vmem:[%s203 + $0x74] sm:$0x1]
        %v234 = vld [vmem:[%s203 + $0xd8] sm:$0xf]
        %v235 = vld [vmem:[%s203 + $0xdc] sm:$0xf]
        %v236 = vld [vmem:[%s203 + $0xe0] sm:$0x1]
        %v237 = vld [vmem:[%s203 + $0xe4] sm:$0xf]
        %v238 = vld [vmem:[%s203 + $0xe8] sm:$0xf]
        %v239 = vld [vmem:[%s203 + $0xec] sm:$0x1]
        %v240 = vld [vmem:[%s203 + $0xf0] sm:$0xf]
        %v241 = vld [vmem:[%s203 + $0xf4] sm:$0xf]
        %v242 = vld [vmem:[%s203 + $0xf8] sm:$0x1]
        %v243 = vld [vmem:[%s203 + $0xfc] sm:$0xf]
        %v244 = vld [vmem:[%s203 + $0x100] sm:$0xf]
        %v245 = vld [vmem:[%s203 + $0x104] sm:$0x1]
        %v246 = vld [vmem:[%s203 + $0x108] sm:$0xf]
        %v247 = vld [vmem:[%s203 + $0x10c] sm:$0xf]
        %v248 = vld [vmem:[%s203 + $0x110] sm:$0x1]
        %v249 = vld [vmem:[%s203 + $0x114] sm:$0xf]
        %v250 = vld [vmem:[%s203 + $0x118] sm:$0xf]
        %v251 = vld [vmem:[%s203 + $0x11c] sm:$0x1]
        %v252 = vld [vmem:[%s203 + $0x120] sm:$0xf]
        %v253 = vld [vmem:[%s203 + $0x124] sm:$0xf]
        %v254 = vld [vmem:[%s203 + $0x128] sm:$0x1]
        %v255 = vld [vmem:[%s203 + $0x12c] sm:$0xf]
        %v256 = vld [vmem:[%s203 + $0x130] sm:$0xf]
        %v257 = vld [vmem:[%s203 + $0x134] sm:$0x1]
        %v258 = vld [vmem:[%s203 + $0x138] sm:$0xf]
        %v259 = vld [vmem:[%s203 + $0x13c] sm:$0xf]
        %v260 = vld [vmem:[%s203 + $0x140] sm:$0x1]
        %v261 = vld [vmem:[%s203 + $0x144] sm:$0xf]
        %v262 = vld [vmem:[%s203 + $0x148] sm:$0xf]
        %v263 = vld [vmem:[%s203 + $0x14c] sm:$0x1]
        %v296 = vunpack.c.l.b16 %v204
        %v297 = vunpack.c.l.b16 %v205
        %v298 = vunpack.c.l.b16 %v207
        %v299 = vunpack.c.l.b16 %v208
        %v300 = vunpack.c.l.b16 %v210
        %v301 = vunpack.c.l.b16 %v211
        %v302 = vunpack.c.l.b16 %v213
        %v303 = vunpack.c.l.b16 %v214
        %v304 = vunpack.c.l.b16 %v216
        %v305 = vunpack.c.l.b16 %v217
        %v306 = vunpack.c.l.b16 %v219
        %v307 = vunpack.c.l.b16 %v220
        %v308 = vunpack.c.l.b16 %v222
        %v309 = vunpack.c.l.b16 %v223
        %v310 = vunpack.c.l.b16 %v225
        %v311 = vunpack.c.l.b16 %v226
        %v312 = vunpack.c.l.b16 %v234
        %v313 = vunpack.c.l.b16 %v235
        %v314 = vunpack.c.l.b16 %v237
        %v315 = vunpack.c.l.b16 %v238
        %v316 = vunpack.c.l.b16 %v240
        %v317 = vunpack.c.l.b16 %v241
        %v318 = vunpack.c.l.b16 %v243
        %v319 = vunpack.c.l.b16 %v244
        %v320 = vunpack.c.l.b16 %v246
        %v321 = vunpack.c.l.b16 %v247
        %v322 = vunpack.c.l.b16 %v249
        %v323 = vunpack.c.l.b16 %v250
        %v324 = vunpack.c.l.b16 %v252
        %v325 = vunpack.c.l.b16 %v253
        %v326 = vunpack.c.l.b16 %v255
        %v327 = vunpack.c.l.b16 %v256
        %v328 = vpack.c.b16 %v297, %v296
        %v329 = vpack.c.b16 %v299, %v298
        %v330 = vpack.c.b16 %v301, %v300
        %v331 = vpack.c.b16 %v303, %v302
        %v332 = vpack.c.b16 %v305, %v304
        %v333 = vpack.c.b16 %v307, %v306
        %v334 = vpack.c.b16 %v309, %v308
        %v335 = vpack.c.b16 %v311, %v310
        %v336 = vpack.c.b16 %v313, %v312
        %v337 = vpack.c.b16 %v315, %v314
        %v338 = vpack.c.b16 %v317, %v316
        %v339 = vpack.c.b16 %v319, %v318
        %v340 = vpack.c.b16 %v321, %v320
        %v341 = vpack.c.b16 %v323, %v322
        %v342 = vpack.c.b16 %v325, %v324
        %v343 = vpack.c.b16 %v327, %v326
        %v360 = vunpack.c.l.b16 %v206
        %v361 = vunpack.c.l.b16 %v209
        %v362 = vunpack.c.l.b16 %v212
        %v363 = vunpack.c.l.b16 %v215
        %v364 = vunpack.c.l.b16 %v218
        %v365 = vunpack.c.l.b16 %v221
        %v366 = vunpack.c.l.b16 %v224
        %v367 = vunpack.c.l.b16 %v227
        %v368 = vunpack.c.l.b16 %v236
        %v369 = vunpack.c.l.b16 %v239
        %v370 = vunpack.c.l.b16 %v242
        %v371 = vunpack.c.l.b16 %v245
        %v372 = vunpack.c.l.b16 %v248
        %v373 = vunpack.c.l.b16 %v251
        %v374 = vunpack.c.l.b16 %v254
        %v375 = vunpack.c.l.b16 %v257
        %v376 = vpack.c.b16 %v360, %v360
        %v377 = vpack.c.b16 %v361, %v361
        %v378 = vpack.c.b16 %v362, %v362
        %v379 = vpack.c.b16 %v363, %v363
        %v380 = vpack.c.b16 %v364, %v364
        %v381 = vpack.c.b16 %v365, %v365
        %v382 = vpack.c.b16 %v366, %v366
        %v383 = vpack.c.b16 %v367, %v367
        %v384 = vpack.c.b16 %v368, %v368
        %v385 = vpack.c.b16 %v369, %v369
        %v386 = vpack.c.b16 %v370, %v370
        %v387 = vpack.c.b16 %v371, %v371
        %v388 = vpack.c.b16 %v372, %v372
        %v389 = vpack.c.b16 %v373, %v373
        %v390 = vpack.c.b16 %v374, %v374
        %v391 = vpack.c.b16 %v375, %v375
        %vm392 = vsmask.f32 7424
        %v394 = vshrl.u32 %v328, 16
        %v396 = vshll.u32 %v328, 16
        %v398 = vrot.slane %v396, 1
        %v399 = vor.u32 %v394, %v398
        %v401 = vshll.u32 %v376, 16
        %v403 = vrot.slane %v401, 1
        %v404 = vsel %vm392, %v399, %v403
        %v406 = vshrl.u32 %v329, 16
        %v408 = vshll.u32 %v329, 16
        %v410 = vrot.slane %v408, 1
        %v411 = vor.u32 %v406, %v410
        %v413 = vshll.u32 %v377, 16
        %v415 = vrot.slane %v413, 1
        %v416 = vsel %vm392, %v411, %v415
        %v418 = vshrl.u32 %v330, 16
        %v420 = vshll.u32 %v330, 16
        %v422 = vrot.slane %v420, 1
        %v423 = vor.u32 %v418, %v422
        %v425 = vshll.u32 %v378, 16
        %v427 = vrot.slane %v425, 1
        %v428 = vsel %vm392, %v423, %v427
        %v430 = vshrl.u32 %v331, 16
        %v432 = vshll.u32 %v331, 16
        %v434 = vrot.slane %v432, 1
        %v435 = vor.u32 %v430, %v434
        %v437 = vshll.u32 %v379, 16
        %v439 = vrot.slane %v437, 1
        %v440 = vsel %vm392, %v435, %v439
        %v442 = vshrl.u32 %v332, 16
        %v444 = vshll.u32 %v332, 16
        %v446 = vrot.slane %v444, 1
        %v447 = vor.u32 %v442, %v446
        %v449 = vshll.u32 %v380, 16
        %v451 = vrot.slane %v449, 1
        %v452 = vsel %vm392, %v447, %v451
        %v454 = vshrl.u32 %v333, 16
        %v456 = vshll.u32 %v333, 16
        %v458 = vrot.slane %v456, 1
        %v459 = vor.u32 %v454, %v458
        %v461 = vshll.u32 %v381, 16
        %v463 = vrot.slane %v461, 1
        %v464 = vsel %vm392, %v459, %v463
        %v466 = vshrl.u32 %v334, 16
        %v468 = vshll.u32 %v334, 16
        %v470 = vrot.slane %v468, 1
        %v471 = vor.u32 %v466, %v470
        %v473 = vshll.u32 %v382, 16
        %v475 = vrot.slane %v473, 1
        %v476 = vsel %vm392, %v471, %v475
        %v478 = vshrl.u32 %v335, 16
        %v480 = vshll.u32 %v335, 16
        %v482 = vrot.slane %v480, 1
        %v483 = vor.u32 %v478, %v482
        %v485 = vshll.u32 %v383, 16
        %v487 = vrot.slane %v485, 1
        %v488 = vsel %vm392, %v483, %v487
        %v490 = vshrl.u32 %v336, 16
        %v492 = vshll.u32 %v336, 16
        %v494 = vrot.slane %v492, 1
        %v495 = vor.u32 %v490, %v494
        %v497 = vshll.u32 %v384, 16
        %v499 = vrot.slane %v497, 1
        %v500 = vsel %vm392, %v495, %v499
        %v502 = vshrl.u32 %v337, 16
        %v504 = vshll.u32 %v337, 16
        %v506 = vrot.slane %v504, 1
        %v507 = vor.u32 %v502, %v506
        %v509 = vshll.u32 %v385, 16
        %v511 = vrot.slane %v509, 1
        %v512 = vsel %vm392, %v507, %v511
        %v514 = vshrl.u32 %v338, 16
        %v516 = vshll.u32 %v338, 16
        %v518 = vrot.slane %v516, 1
        %v519 = vor.u32 %v514, %v518
        %v521 = vshll.u32 %v386, 16
        %v523 = vrot.slane %v521, 1
        %v524 = vsel %vm392, %v519, %v523
        %v526 = vshrl.u32 %v339, 16
        %v528 = vshll.u32 %v339, 16
        %v530 = vrot.slane %v528, 1
        %v531 = vor.u32 %v526, %v530
        %v533 = vshll.u32 %v387, 16
        %v535 = vrot.slane %v533, 1
        %v536 = vsel %vm392, %v531, %v535
        %v538 = vshrl.u32 %v340, 16
        %v540 = vshll.u32 %v340, 16
        %v542 = vrot.slane %v540, 1
        %v543 = vor.u32 %v538, %v542
        %v545 = vshll.u32 %v388, 16
        %v547 = vrot.slane %v545, 1
        %v548 = vsel %vm392, %v543, %v547
        %v550 = vshrl.u32 %v341, 16
        %v552 = vshll.u32 %v341, 16
        %v554 = vrot.slane %v552, 1
        %v555 = vor.u32 %v550, %v554
        %v557 = vshll.u32 %v389, 16
        %v559 = vrot.slane %v557, 1
        %v560 = vsel %vm392, %v555, %v559
        %v562 = vshrl.u32 %v342, 16
        %v564 = vshll.u32 %v342, 16
        %v566 = vrot.slane %v564, 1
        %v567 = vor.u32 %v562, %v566
        %v569 = vshll.u32 %v390, 16
        %v571 = vrot.slane %v569, 1
        %v572 = vsel %vm392, %v567, %v571
        %v574 = vshrl.u32 %v343, 16
        %v576 = vshll.u32 %v343, 16
        %v578 = vrot.slane %v576, 1
        %v579 = vor.u32 %v574, %v578
        %v581 = vshll.u32 %v391, 16
        %v583 = vrot.slane %v581, 1
        %v584 = vsel %vm392, %v579, %v583
        %585 = vrot.lane.b32.xlu0 %v404, 32
        %v586 = vpop.permute.xlu0 %585
        %587 = vrot.lane.b32.xlu0 %v416, 32
        %v588 = vpop.permute.xlu0 %587
        %589 = vrot.lane.b32.xlu0 %v428, 32
        %v590 = vpop.permute.xlu0 %589
        %591 = vrot.lane.b32.xlu0 %v440, 32
        %v592 = vpop.permute.xlu0 %591
        %593 = vrot.lane.b32.xlu0 %v452, 32
        %v594 = vpop.permute.xlu0 %593
        %595 = vrot.lane.b32.xlu0 %v464, 32
        %v596 = vpop.permute.xlu0 %595
        %597 = vrot.lane.b32.xlu0 %v476, 32
        %v598 = vpop.permute.xlu0 %597
        %599 = vrot.lane.b32.xlu0 %v488, 32
        %v600 = vpop.permute.xlu0 %599
        %601 = vrot.lane.b32.xlu0 %v500, 32
        %v602 = vpop.permute.xlu0 %601
        %603 = vrot.lane.b32.xlu0 %v512, 32
        %v604 = vpop.permute.xlu0 %603
        %605 = vrot.lane.b32.xlu0 %v524, 32
        %v606 = vpop.permute.xlu0 %605
        %607 = vrot.lane.b32.xlu0 %v536, 32
        %v608 = vpop.permute.xlu0 %607
        %609 = vrot.lane.b32.xlu0 %v548, 32
        %v610 = vpop.permute.xlu0 %609
        %611 = vrot.lane.b32.xlu0 %v560, 32
        %v612 = vpop.permute.xlu0 %611
        %613 = vrot.lane.b32.xlu0 %v572, 32
        %v614 = vpop.permute.xlu0 %613
        %615 = vrot.lane.b32.xlu0 %v584, 32
        %v616 = vpop.permute.xlu0 %615
        %vm617 = vcmask 1046528
        %v618 = vrot.slane %v328, 1
        %v619 = vrot.slane %v376, 1
        %v620 = vsel %vm617, %v618, %v619
        %v621 = vrot.slane %v329, 1
        %v622 = vrot.slane %v377, 1
        %v623 = vsel %vm617, %v621, %v622
        %v624 = vrot.slane %v330, 1
        %v625 = vrot.slane %v378, 1
        %v626 = vsel %vm617, %v624, %v625
        %v627 = vrot.slane %v331, 1
        %v628 = vrot.slane %v379, 1
        %v629 = vsel %vm617, %v627, %v628
        %v630 = vrot.slane %v332, 1
        %v631 = vrot.slane %v380, 1
        %v632 = vsel %vm617, %v630, %v631
        %v633 = vrot.slane %v333, 1
        %v634 = vrot.slane %v381, 1
        %v635 = vsel %vm617, %v633, %v634
        %v636 = vrot.slane %v334, 1
        %v637 = vrot.slane %v382, 1
        %v638 = vsel %vm617, %v636, %v637
        %v639 = vrot.slane %v335, 1
        %v640 = vrot.slane %v383, 1
        %v641 = vsel %vm617, %v639, %v640
        %v642 = vrot.slane %v336, 1
        %v643 = vrot.slane %v384, 1
        %v644 = vsel %vm617, %v642, %v643
        %v645 = vrot.slane %v337, 1
        %v646 = vrot.slane %v385, 1
        %v647 = vsel %vm617, %v645, %v646
        %v648 = vrot.slane %v338, 1
        %v649 = vrot.slane %v386, 1
        %v650 = vsel %vm617, %v648, %v649
        %v651 = vrot.slane %v339, 1
        %v652 = vrot.slane %v387, 1
        %v653 = vsel %vm617, %v651, %v652
        %v654 = vrot.slane %v340, 1
        %v655 = vrot.slane %v388, 1
        %v656 = vsel %vm617, %v654, %v655
        %v657 = vrot.slane %v341, 1
        %v658 = vrot.slane %v389, 1
        %v659 = vsel %vm617, %v657, %v658
        %v660 = vrot.slane %v342, 1
        %v661 = vrot.slane %v390, 1
        %v662 = vsel %vm617, %v660, %v661
        %v663 = vrot.slane %v343, 1
        %v664 = vrot.slane %v391, 1
        %v665 = vsel %vm617, %v663, %v664
        %666 = vrot.lane.b32.xlu0 %v620, 64
        %v667 = vpop.permute.xlu0 %666
        %668 = vrot.lane.b32.xlu0 %v623, 64
        %v669 = vpop.permute.xlu0 %668
        %670 = vrot.lane.b32.xlu0 %v626, 64
        %v671 = vpop.permute.xlu0 %670
        %672 = vrot.lane.b32.xlu0 %v629, 64
        %v673 = vpop.permute.xlu0 %672
        %674 = vrot.lane.b32.xlu0 %v632, 64
        %v675 = vpop.permute.xlu0 %674
        %676 = vrot.lane.b32.xlu0 %v635, 64
        %v677 = vpop.permute.xlu0 %676
        %678 = vrot.lane.b32.xlu0 %v638, 64
        %v679 = vpop.permute.xlu0 %678
        %680 = vrot.lane.b32.xlu0 %v641, 64
        %v681 = vpop.permute.xlu0 %680
        %682 = vrot.lane.b32.xlu0 %v644, 64
        %v683 = vpop.permute.xlu0 %682
        %684 = vrot.lane.b32.xlu0 %v647, 64
        %v685 = vpop.permute.xlu0 %684
        %686 = vrot.lane.b32.xlu0 %v650, 64
        %v687 = vpop.permute.xlu0 %686
        %688 = vrot.lane.b32.xlu0 %v653, 64
        %v689 = vpop.permute.xlu0 %688
        %690 = vrot.lane.b32.xlu0 %v656, 64
        %v691 = vpop.permute.xlu0 %690
        %692 = vrot.lane.b32.xlu0 %v659, 64
        %v693 = vpop.permute.xlu0 %692
        %694 = vrot.lane.b32.xlu0 %v662, 64
        %v695 = vpop.permute.xlu0 %694
        %696 = vrot.lane.b32.xlu0 %v665, 64
        %v697 = vpop.permute.xlu0 %696
        %v702 = vunpack.c.l.b16 %v228
        %v703 = vunpack.c.l.b16 %v229
        %v704 = vunpack.c.l.b16 %v258
        %v705 = vunpack.c.l.b16 %v259
        %v706 = vpack.c.b16 %v703, %v702
        %v707 = vpack.c.b16 %v705, %v704
        %708 = vrot.lane.b32.xlu0 %v329, 96
        %v709 = vpop.permute.xlu0 %708
        %710 = vrot.lane.b32.xlu0 %v330, 96
        %v711 = vpop.permute.xlu0 %710
        %712 = vrot.lane.b32.xlu0 %v331, 96
        %v713 = vpop.permute.xlu0 %712
        %714 = vrot.lane.b32.xlu0 %v332, 96
        %v715 = vpop.permute.xlu0 %714
        %716 = vrot.lane.b32.xlu0 %v333, 96
        %v717 = vpop.permute.xlu0 %716
        %718 = vrot.lane.b32.xlu0 %v334, 96
        %v719 = vpop.permute.xlu0 %718
        %720 = vrot.lane.b32.xlu0 %v335, 96
        %v721 = vpop.permute.xlu0 %720
        %722 = vrot.lane.b32.xlu0 %v706, 96
        %v723 = vpop.permute.xlu0 %722
        %724 = vrot.lane.b32.xlu0 %v337, 96
        %v725 = vpop.permute.xlu0 %724
        %726 = vrot.lane.b32.xlu0 %v338, 96
        %v727 = vpop.permute.xlu0 %726
        %728 = vrot.lane.b32.xlu0 %v339, 96
        %v729 = vpop.permute.xlu0 %728
        %730 = vrot.lane.b32.xlu0 %v340, 96
        %v731 = vpop.permute.xlu0 %730
        %732 = vrot.lane.b32.xlu0 %v341, 96
        %v733 = vpop.permute.xlu0 %732
        %734 = vrot.lane.b32.xlu0 %v342, 96
        %v735 = vpop.permute.xlu0 %734
        %736 = vrot.lane.b32.xlu0 %v343, 96
        %v737 = vpop.permute.xlu0 %736
        %738 = vrot.lane.b32.xlu0 %v707, 96
        %v739 = vpop.permute.xlu0 %738
        %v742 = vunpack.c.l.b16 %v230
        %v743 = vunpack.c.l.b16 %v260
        %v744 = vpack.c.b16 %v742, %v742
        %v745 = vpack.c.b16 %v743, %v743
        %v747 = vshrl.u32 %v706, 16
        %v749 = vshll.u32 %v706, 16
        %v751 = vrot.slane %v749, 1
        %v752 = vor.u32 %v747, %v751
        %v754 = vshll.u32 %v744, 16
        %v756 = vrot.slane %v754, 1
        %v757 = vsel %vm392, %v752, %v756
        %v759 = vshrl.u32 %v707, 16
        %v761 = vshll.u32 %v707, 16
        %v763 = vrot.slane %v761, 1
        %v764 = vor.u32 %v759, %v763
        %v766 = vshll.u32 %v745, 16
        %v768 = vrot.slane %v766, 1
        %v769 = vsel %vm392, %v764, %v768
        %v770 = vrot.slane %v706, 1
        %v771 = vrot.slane %v744, 1
        %v772 = vsel %vm617, %v770, %v771
        %v773 = vrot.slane %v707, 1
        %v774 = vrot.slane %v745, 1
        %v775 = vsel %vm617, %v773, %v774
        %776 = vrot.lane.b32.xlu0 %v623, 32
        %v777 = vpop.permute.xlu0 %776
        %778 = vrot.lane.b32.xlu0 %v626, 32
        %v779 = vpop.permute.xlu0 %778
        %780 = vrot.lane.b32.xlu0 %v629, 32
        %v781 = vpop.permute.xlu0 %780
        %782 = vrot.lane.b32.xlu0 %v632, 32
        %v783 = vpop.permute.xlu0 %782
        %784 = vrot.lane.b32.xlu0 %v635, 32
        %v785 = vpop.permute.xlu0 %784
        %786 = vrot.lane.b32.xlu0 %v638, 32
        %v787 = vpop.permute.xlu0 %786
        %788 = vrot.lane.b32.xlu0 %v641, 32
        %v789 = vpop.permute.xlu0 %788
        %790 = vrot.lane.b32.xlu0 %v772, 32
        %v791 = vpop.permute.xlu0 %790
        %792 = vrot.lane.b32.xlu0 %v647, 32
        %v793 = vpop.permute.xlu0 %792
        %794 = vrot.lane.b32.xlu0 %v650, 32
        %v795 = vpop.permute.xlu0 %794
        %796 = vrot.lane.b32.xlu0 %v653, 32
        %v797 = vpop.permute.xlu0 %796
        %798 = vrot.lane.b32.xlu0 %v656, 32
        %v799 = vpop.permute.xlu0 %798
        %800 = vrot.lane.b32.xlu0 %v659, 32
        %v801 = vpop.permute.xlu0 %800
        %802 = vrot.lane.b32.xlu0 %v662, 32
        %v803 = vpop.permute.xlu0 %802
        %804 = vrot.lane.b32.xlu0 %v665, 32
        %v805 = vpop.permute.xlu0 %804
        %806 = vrot.lane.b32.xlu0 %v775, 32
        %v807 = vpop.permute.xlu0 %806
        %v812 = vunpack.c.l.b16 %v231
        %v813 = vunpack.c.l.b16 %v232
        %v814 = vunpack.c.l.b16 %v261
        %v815 = vunpack.c.l.b16 %v262
        %v816 = vpack.c.b16 %v813, %v812
        %v817 = vpack.c.b16 %v815, %v814
        %818 = vrot.lane.b32.xlu0 %v330, 64
        %v819 = vpop.permute.xlu0 %818
        %820 = vrot.lane.b32.xlu0 %v331, 64
        %v821 = vpop.permute.xlu0 %820
        %822 = vrot.lane.b32.xlu0 %v332, 64
        %v823 = vpop.permute.xlu0 %822
        %824 = vrot.lane.b32.xlu0 %v333, 64
        %v825 = vpop.permute.xlu0 %824
        %826 = vrot.lane.b32.xlu0 %v334, 64
        %v827 = vpop.permute.xlu0 %826
        %828 = vrot.lane.b32.xlu0 %v335, 64
        %v829 = vpop.permute.xlu0 %828
        %830 = vrot.lane.b32.xlu0 %v706, 64
        %v831 = vpop.permute.xlu0 %830
        %832 = vrot.lane.b32.xlu0 %v816, 64
        %v833 = vpop.permute.xlu0 %832
        %834 = vrot.lane.b32.xlu0 %v338, 64
        %v835 = vpop.permute.xlu0 %834
        %836 = vrot.lane.b32.xlu0 %v339, 64
        %v837 = vpop.permute.xlu0 %836
        %838 = vrot.lane.b32.xlu0 %v340, 64
        %v839 = vpop.permute.xlu0 %838
        %840 = vrot.lane.b32.xlu0 %v341, 64
        %v841 = vpop.permute.xlu0 %840
        %842 = vrot.lane.b32.xlu0 %v342, 64
        %v843 = vpop.permute.xlu0 %842
        %844 = vrot.lane.b32.xlu0 %v343, 64
        %v845 = vpop.permute.xlu0 %844
        %846 = vrot.lane.b32.xlu0 %v707, 64
        %v847 = vpop.permute.xlu0 %846
        %848 = vrot.lane.b32.xlu0 %v817, 64
        %v849 = vpop.permute.xlu0 %848
        %v852 = vunpack.c.l.b16 %v233
        %v853 = vunpack.c.l.b16 %v263
        %v854 = vpack.c.b16 %v852, %v852
        %v855 = vpack.c.b16 %v853, %v853
        %v857 = vshrl.u32 %v816, 16
        %v859 = vshll.u32 %v816, 16
        %v861 = vrot.slane %v859, 1
        %v862 = vor.u32 %v857, %v861
        %v864 = vshll.u32 %v854, 16
        %v866 = vrot.slane %v864, 1
        %v867 = vsel %vm392, %v862, %v866
        %v869 = vshrl.u32 %v817, 16
        %v871 = vshll.u32 %v817, 16
        %v873 = vrot.slane %v871, 1
        %v874 = vor.u32 %v869, %v873
        %v876 = vshll.u32 %v855, 16
        %v878 = vrot.slane %v876, 1
        %v879 = vsel %vm392, %v874, %v878
        %880 = vrot.lane.b32.xlu0 %v428, 96
        %v881 = vpop.permute.xlu0 %880
        %882 = vrot.lane.b32.xlu0 %v440, 96
        %v883 = vpop.permute.xlu0 %882
        %884 = vrot.lane.b32.xlu0 %v452, 96
        %v885 = vpop.permute.xlu0 %884
        %886 = vrot.lane.b32.xlu0 %v464, 96
        %v887 = vpop.permute.xlu0 %886
        %888 = vrot.lane.b32.xlu0 %v476, 96
        %v889 = vpop.permute.xlu0 %888
        %890 = vrot.lane.b32.xlu0 %v488, 96
        %v891 = vpop.permute.xlu0 %890
        %892 = vrot.lane.b32.xlu0 %v757, 96
        %v893 = vpop.permute.xlu0 %892
        %894 = vrot.lane.b32.xlu0 %v867, 96
        %v895 = vpop.permute.xlu0 %894
        %896 = vrot.lane.b32.xlu0 %v524, 96
        %v897 = vpop.permute.xlu0 %896
        %898 = vrot.lane.b32.xlu0 %v536, 96
        %v899 = vpop.permute.xlu0 %898
        %900 = vrot.lane.b32.xlu0 %v548, 96
        %v901 = vpop.permute.xlu0 %900
        %902 = vrot.lane.b32.xlu0 %v560, 96
        %v903 = vpop.permute.xlu0 %902
        %904 = vrot.lane.b32.xlu0 %v572, 96
        %v905 = vpop.permute.xlu0 %904
        %906 = vrot.lane.b32.xlu0 %v584, 96
        %v907 = vpop.permute.xlu0 %906
        %908 = vrot.lane.b32.xlu0 %v769, 96
        %v909 = vpop.permute.xlu0 %908
        %910 = vrot.lane.b32.xlu0 %v879, 96
        %v911 = vpop.permute.xlu0 %910
        %v912 = vrot.slane %v816, 1
        %v913 = vrot.slane %v854, 1
        %v914 = vsel %vm617, %v912, %v913
        %v915 = vrot.slane %v817, 1
        %v916 = vrot.slane %v855, 1
        %v917 = vsel %vm617, %v915, %v916
        %vm918 = vcmask 261120
        %v920 = vsel %vm918, %v328, %v586
        %v922 = vsel %vm918, %v329, %v588
        %v924 = vsel %vm918, %v330, %v590
        %v926 = vsel %vm918, %v331, %v592
        %v928 = vsel %vm918, %v332, %v594
        %v930 = vsel %vm918, %v333, %v596
        %v932 = vsel %vm918, %v334, %v598
        %v934 = vsel %vm918, %v335, %v600
        %v936 = vsel %vm918, %v336, %v602
        %v938 = vsel %vm918, %v337, %v604
        %v940 = vsel %vm918, %v338, %v606
        %v942 = vsel %vm918, %v339, %v608
        %v944 = vsel %vm918, %v340, %v610
        %v946 = vsel %vm918, %v341, %v612
        %v948 = vsel %vm918, %v342, %v614
        %v950 = vsel %vm918, %v343, %v616
        %vm951 = vcmask 523264
        %v953 = vsel %vm951, %v920, %v667
        %v955 = vsel %vm951, %v922, %v669
        %v957 = vsel %vm951, %v924, %v671
        %v959 = vsel %vm951, %v926, %v673
        %v961 = vsel %vm951, %v928, %v675
        %v963 = vsel %vm951, %v930, %v677
        %v965 = vsel %vm951, %v932, %v679
        %v967 = vsel %vm951, %v934, %v681
        %v969 = vsel %vm951, %v936, %v683
        %v971 = vsel %vm951, %v938, %v685
        %v973 = vsel %vm951, %v940, %v687
        %v975 = vsel %vm951, %v942, %v689
        %v977 = vsel %vm951, %v944, %v691
        %v979 = vsel %vm951, %v946, %v693
        %v981 = vsel %vm951, %v948, %v695
        %v983 = vsel %vm951, %v950, %v697
        %vm984 = vcmask 785408
        %v986 = vsel %vm984, %v953, %v709
        %v989 = vsel %vm984, %v955, %v711
        %v992 = vsel %vm984, %v957, %v713
        %v995 = vsel %vm984, %v959, %v715
        %v998 = vsel %vm984, %v961, %v717
        %v1001 = vsel %vm984, %v963, %v719
        %v1004 = vsel %vm984, %v965, %v721
        %v1007 = vsel %vm984, %v967, %v723
        %v1010 = vsel %vm984, %v969, %v725
        %v1013 = vsel %vm984, %v971, %v727
        %v1016 = vsel %vm984, %v973, %v729
        %v1019 = vsel %vm984, %v975, %v731
        %v1022 = vsel %vm984, %v977, %v733
        %v1025 = vsel %vm984, %v979, %v735
        %v1028 = vsel %vm984, %v981, %v737
        %v1031 = vsel %vm984, %v983, %v739
        %v1035 = vsel %vm918, %v416, %v777
        %v1038 = vsel %vm918, %v428, %v779
        %v1041 = vsel %vm918, %v440, %v781
        %v1044 = vsel %vm918, %v452, %v783
        %v1047 = vsel %vm918, %v464, %v785
        %v1050 = vsel %vm918, %v476, %v787
        %v1053 = vsel %vm918, %v488, %v789
        %v1056 = vsel %vm918, %v757, %v791
        %v1059 = vsel %vm918, %v512, %v793
        %v1062 = vsel %vm918, %v524, %v795
        %v1065 = vsel %vm918, %v536, %v797
        %v1068 = vsel %vm918, %v548, %v799
        %v1071 = vsel %vm918, %v560, %v801
        %v1074 = vsel %vm918, %v572, %v803
        %v1077 = vsel %vm918, %v584, %v805
        %v1080 = vsel %vm918, %v769, %v807
        %v1082 = vsel %vm951, %v1035, %v819
        %v1084 = vsel %vm951, %v1038, %v821
        %v1086 = vsel %vm951, %v1041, %v823
        %v1088 = vsel %vm951, %v1044, %v825
        %v1090 = vsel %vm951, %v1047, %v827
        %v1092 = vsel %vm951, %v1050, %v829
        %v1094 = vsel %vm951, %v1053, %v831
        %v1096 = vsel %vm951, %v1056, %v833
        %v1098 = vsel %vm951, %v1059, %v835
        %v1100 = vsel %vm951, %v1062, %v837
        %v1102 = vsel %vm951, %v1065, %v839
        %v1104 = vsel %vm951, %v1068, %v841
        %v1106 = vsel %vm951, %v1071, %v843
        %v1108 = vsel %vm951, %v1074, %v845
        %v1110 = vsel %vm951, %v1077, %v847
        %v1112 = vsel %vm951, %v1080, %v849
        %v1114 = vsel %vm984, %v1082, %v881
        %v1117 = vsel %vm984, %v1084, %v883
        %v1120 = vsel %vm984, %v1086, %v885
        %v1123 = vsel %vm984, %v1088, %v887
        %v1126 = vsel %vm984, %v1090, %v889
        %v1129 = vsel %vm984, %v1092, %v891
        %v1132 = vsel %vm984, %v1094, %v893
        %v1135 = vsel %vm984, %v1096, %v895
        %v1138 = vsel %vm984, %v1098, %v897
        %v1141 = vsel %vm984, %v1100, %v899
        %v1144 = vsel %vm984, %v1102, %v901
        %v1147 = vsel %vm984, %v1104, %v903
        %v1150 = vsel %vm984, %v1106, %v905
        %v1153 = vsel %vm984, %v1108, %v907
        %v1156 = vsel %vm984, %v1110, %v909
        %v1159 = vsel %vm984, %v1112, %v911
        %v1161 = vld [vmem:[%s1] sm:$0xff]
        %v1162 = vld [vmem:[%s1 + $0x8] sm:$0xf]
        %v1163 = vld [vmem:[%s1 + $0xc] sm:$0xff]
        %v1164 = vld [vmem:[%s1 + $0x14] sm:$0xf]
        %v1165 = vld [vmem:[%s1 + $0x18] sm:$0xff]
        %v1166 = vld [vmem:[%s1 + $0x20] sm:$0xf]
        %v1167 = vld [vmem:[%s1 + $0x24] sm:$0xff]
        %v1168 = vld [vmem:[%s1 + $0x2c] sm:$0xf]
        %v1169 = vld [vmem:[%s1 + $0x30] sm:$0xff]
        %v1170 = vld [vmem:[%s1 + $0x38] sm:$0xf]
        %v1171 = vld [vmem:[%s1 + $0x3c] sm:$0xff]
        %v1172 = vld [vmem:[%s1 + $0x44] sm:$0xf]
        %v1173 = vld [vmem:[%s1 + $0x48] sm:$0xff]
        %v1174 = vld [vmem:[%s1 + $0x50] sm:$0xf]
        %v1175 = vld [vmem:[%s1 + $0x54] sm:$0xff]
        %v1176 = vld [vmem:[%s1 + $0x5c] sm:$0xf]
        %v1177 = vld [vmem:[%s1 + $0x60] sm:$0xff]
        %v1178 = vld [vmem:[%s1 + $0x68] sm:$0xf]
        %v1179 = vld [vmem:[%s1 + $0x6c] sm:$0xff]
        %v1180 = vld [vmem:[%s1 + $0x74] sm:$0xf]
        %v1181 = vld [vmem:[%s1 + $0x78] sm:$0xff]
        %v1182 = vld [vmem:[%s1 + $0x80] sm:$0xf]
        %v1183 = vld [vmem:[%s1 + $0x84] sm:$0xff]
        %v1184 = vld [vmem:[%s1 + $0x8c] sm:$0xf]
        %v1185 = vld [vmem:[%s1 + $0x90] sm:$0xff]
        %v1186 = vld [vmem:[%s1 + $0x98] sm:$0xf]
        %v1187 = vld [vmem:[%s1 + $0x9c] sm:$0xff]
        %v1188 = vld [vmem:[%s1 + $0xa4] sm:$0xf]
        %v1189 = vld [vmem:[%s1 + $0xa8] sm:$0xff]
        %v1190 = vld [vmem:[%s1 + $0xb0] sm:$0xf]
        %v1191 = vld [vmem:[%s1 + $0xb4] sm:$0xff]
        %v1192 = vld [vmem:[%s1 + $0xbc] sm:$0xf]
        %v1193 = vld [vmem:[%s1 + $0xc0] sm:$0xff]
        %v1194 = vld [vmem:[%s1 + $0xc8] sm:$0xf]
        %v1195 = vld [vmem:[%s1 + $0xcc] sm:$0xff]
        %v1196 = vld [vmem:[%s1 + $0xd4] sm:$0xf]
        %v1197 = vld [vmem:[%s1 + $0xd8] sm:$0xff]
        %v1198 = vld [vmem:[%s1 + $0xe0] sm:$0xf]
        %v1199 = vld [vmem:[%s1 + $0xe4] sm:$0xff]
        %v1200 = vld [vmem:[%s1 + $0xec] sm:$0xf]
        %v1201 = vld [vmem:[%s1 + $0xf0] sm:$0xff]
        %v1202 = vld [vmem:[%s1 + $0xf8] sm:$0xf]
        %v1203 = vld [vmem:[%s1 + $0xfc] sm:$0xff]
        %v1204 = vld [vmem:[%s1 + $0x104] sm:$0xf]
        %v1205 = vld [vmem:[%s1 + $0x108] sm:$0xff]
        %v1206 = vld [vmem:[%s1 + $0x110] sm:$0xf]
        %v1207 = vld [vmem:[%s1 + $0x114] sm:$0xff]
        %v1208 = vld [vmem:[%s1 + $0x11c] sm:$0xf]
        %v1209 = vld [vmem:[%s1 + $0x120] sm:$0xff]
        %v1210 = vld [vmem:[%s1 + $0x128] sm:$0xf]
        %v1211 = vld [vmem:[%s1 + $0x12c] sm:$0xff]
        %v1212 = vld [vmem:[%s1 + $0x134] sm:$0xf]
        %v1213 = vld [vmem:[%s1 + $0x138] sm:$0xff]
        %v1214 = vld [vmem:[%s1 + $0x140] sm:$0xf]
        %v1215 = vld [vmem:[%s1 + $0x144] sm:$0xff]
        %v1216 = vld [vmem:[%s1 + $0x14c] sm:$0xf]
        %v1217 = vld [vmem:[%s1 + $0x150] sm:$0xff]
        %v1218 = vld [vmem:[%s1 + $0x158] sm:$0xf]
        %v1219 = vld [vmem:[%s1 + $0x15c] sm:$0xff]
        %v1220 = vld [vmem:[%s1 + $0x164] sm:$0xf]
        %v1221 = vld [vmem:[%s1 + $0x168] sm:$0xff]
        %v1222 = vld [vmem:[%s1 + $0x170] sm:$0xf]
        %v1223 = vld [vmem:[%s1 + $0x174] sm:$0xff]
        %v1224 = vld [vmem:[%s1 + $0x17c] sm:$0xf]
        %v1225 = vld [vmem:[%s1 + $0x180] sm:$0xff]
        %v1226 = vld [vmem:[%s1 + $0x188] sm:$0xf]
        %v1227 = vld [vmem:[%s1 + $0x18c] sm:$0xff]
        %v1228 = vld [vmem:[%s1 + $0x194] sm:$0xf]
        %v1229 = vld [vmem:[%s1 + $0x198] sm:$0xff]
        %v1230 = vld [vmem:[%s1 + $0x1a0] sm:$0xf]
        %v1231 = vld [vmem:[%s1 + $0x1a4] sm:$0xff]
        %v1232 = vld [vmem:[%s1 + $0x1ac] sm:$0xf]
        %v1233 = vld [vmem:[%s2] sm:$0x7]
        %v1235 = vperm.slane %v1233, 0
        %v1236 = vperm.slane %v1233, 1
        %v1237 = vperm.slane %v1233, 2
        %v1313 = vunpack.c.l.b16 %v1161
        %v1314 = vunpack.c.h.b16 %v1161
        %v1315 = vunpack.c.l.b16 %v1162
        %v1316 = vunpack.c.l.b16 %v1163
        %v1317 = vunpack.c.h.b16 %v1163
        %v1318 = vunpack.c.l.b16 %v1164
        %v1319 = vunpack.c.l.b16 %v1165
        %v1320 = vunpack.c.h.b16 %v1165
        %v1321 = vunpack.c.l.b16 %v1166
        %v1322 = vunpack.c.l.b16 %v1167
        %v1323 = vunpack.c.h.b16 %v1167
        %v1324 = vunpack.c.l.b16 %v1168
        %v1325 = vunpack.c.l.b16 %v1169
        %v1326 = vunpack.c.h.b16 %v1169
        %v1327 = vunpack.c.l.b16 %v1170
        %v1328 = vunpack.c.l.b16 %v1171
        %v1329 = vunpack.c.h.b16 %v1171
        %v1330 = vunpack.c.l.b16 %v1172
        %v1331 = vunpack.c.l.b16 %v1173
        %v1332 = vunpack.c.h.b16 %v1173
        %v1333 = vunpack.c.l.b16 %v1174
        %v1334 = vunpack.c.l.b16 %v1175
        %v1335 = vunpack.c.h.b16 %v1175
        %v1336 = vunpack.c.l.b16 %v1176
        %v1337 = vunpack.c.l.b16 %v1177
        %v1338 = vunpack.c.h.b16 %v1177
        %v1339 = vunpack.c.l.b16 %v1178
        %v1340 = vunpack.c.l.b16 %v1179
        %v1341 = vunpack.c.h.b16 %v1179
        %v1342 = vunpack.c.l.b16 %v1180
        %v1343 = vunpack.c.l.b16 %v1181
        %v1344 = vunpack.c.h.b16 %v1181
        %v1345 = vunpack.c.l.b16 %v1182
        %v1346 = vunpack.c.l.b16 %v1183
        %v1347 = vunpack.c.h.b16 %v1183
        %v1348 = vunpack.c.l.b16 %v1184
        %v1349 = vunpack.c.l.b16 %v1185
        %v1350 = vunpack.c.h.b16 %v1185
        %v1351 = vunpack.c.l.b16 %v1186
        %v1352 = vunpack.c.l.b16 %v1187
        %v1353 = vunpack.c.h.b16 %v1187
        %v1354 = vunpack.c.l.b16 %v1188
        %v1355 = vunpack.c.l.b16 %v1189
        %v1356 = vunpack.c.h.b16 %v1189
        %v1357 = vunpack.c.l.b16 %v1190
        %v1358 = vunpack.c.l.b16 %v1191
        %v1359 = vunpack.c.h.b16 %v1191
        %v1360 = vunpack.c.l.b16 %v1192
        %v1361 = vunpack.c.l.b16 %v1193
        %v1362 = vunpack.c.h.b16 %v1193
        %v1363 = vunpack.c.l.b16 %v1194
        %v1364 = vunpack.c.l.b16 %v1195
        %v1365 = vunpack.c.h.b16 %v1195
        %v1366 = vunpack.c.l.b16 %v1196
        %v1367 = vunpack.c.l.b16 %v1197
        %v1368 = vunpack.c.h.b16 %v1197
        %v1369 = vunpack.c.l.b16 %v1198
        %v1370 = vunpack.c.l.b16 %v1199
        %v1371 = vunpack.c.h.b16 %v1199
        %v1372 = vunpack.c.l.b16 %v1200
        %v1373 = vunpack.c.l.b16 %v1201
        %v1374 = vunpack.c.h.b16 %v1201
        %v1375 = vunpack.c.l.b16 %v1202
        %v1376 = vunpack.c.l.b16 %v1203
        %v1377 = vunpack.c.h.b16 %v1203
        %v1378 = vunpack.c.l.b16 %v1204
        %v1379 = vunpack.c.l.b16 %v1205
        %v1380 = vunpack.c.h.b16 %v1205
        %v1381 = vunpack.c.l.b16 %v1206
        %v1382 = vunpack.c.l.b16 %v1207
        %v1383 = vunpack.c.h.b16 %v1207
        %v1384 = vunpack.c.l.b16 %v1208
        %v1385 = vunpack.c.l.b16 %v1209
        %v1386 = vunpack.c.h.b16 %v1209
        %v1387 = vunpack.c.l.b16 %v1210
        %v1388 = vunpack.c.l.b16 %v1211
        %v1389 = vunpack.c.h.b16 %v1211
        %v1390 = vunpack.c.l.b16 %v1212
        %v1391 = vunpack.c.l.b16 %v1213
        %v1392 = vunpack.c.h.b16 %v1213
        %v1393 = vunpack.c.l.b16 %v1214
        %v1394 = vunpack.c.l.b16 %v1215
        %v1395 = vunpack.c.h.b16 %v1215
        %v1396 = vunpack.c.l.b16 %v1216
        %v1397 = vunpack.c.l.b16 %v1217
        %v1398 = vunpack.c.h.b16 %v1217
        %v1399 = vunpack.c.l.b16 %v1218
        %v1400 = vunpack.c.l.b16 %v1219
        %v1401 = vunpack.c.h.b16 %v1219
        %v1402 = vunpack.c.l.b16 %v1220
        %v1403 = vunpack.c.l.b16 %v1221
        %v1404 = vunpack.c.h.b16 %v1221
        %v1405 = vunpack.c.l.b16 %v1222
        %v1406 = vunpack.c.l.b16 %v1223
        %v1407 = vunpack.c.h.b16 %v1223
        %v1408 = vunpack.c.l.b16 %v1224
        %v1409 = vunpack.c.l.b16 %v1225
        %v1410 = vunpack.c.h.b16 %v1225
        %v1411 = vunpack.c.l.b16 %v1226
        %v1412 = vunpack.c.l.b16 %v1227
        %v1413 = vunpack.c.h.b16 %v1227
        %v1414 = vunpack.c.l.b16 %v1228
        %v1415 = vunpack.c.l.b16 %v1229
        %v1416 = vunpack.c.h.b16 %v1229
        %v1417 = vunpack.c.l.b16 %v1230
        %v1418 = vunpack.c.l.b16 %v1231
        %v1419 = vunpack.c.h.b16 %v1231
        %v1420 = vunpack.c.l.b16 %v1232
        %v1421 = vpack.c.b16 %v1316, %v1313
        %v1422 = vpack.c.b16 %v1317, %v1314
        %v1423 = vpack.c.b16 %v1318, %v1315
        %v1424 = vpack.c.b16 %v1322, %v1319
        %v1425 = vpack.c.b16 %v1323, %v1320
        %v1426 = vpack.c.b16 %v1324, %v1321
        %v1427 = vpack.c.b16 %v1328, %v1325
        %v1428 = vpack.c.b16 %v1329, %v1326
        %v1429 = vpack.c.b16 %v1330, %v1327
        %v1430 = vpack.c.b16 %v1334, %v1331
        %v1431 = vpack.c.b16 %v1335, %v1332
        %v1432 = vpack.c.b16 %v1336, %v1333
        %v1433 = vpack.c.b16 %v1340, %v1337
        %v1434 = vpack.c.b16 %v1341, %v1338
        %v1435 = vpack.c.b16 %v1342, %v1339
        %v1436 = vpack.c.b16 %v1346, %v1343
        %v1437 = vpack.c.b16 %v1347, %v1344
        %v1438 = vpack.c.b16 %v1348, %v1345
        %v1439 = vpack.c.b16 %v1352, %v1349
        %v1440 = vpack.c.b16 %v1353, %v1350
        %v1441 = vpack.c.b16 %v1354, %v1351
        %v1442 = vpack.c.b16 %v1358, %v1355
        %v1443 = vpack.c.b16 %v1359, %v1356
        %v1444 = vpack.c.b16 %v1360, %v1357
        %v1445 = vpack.c.b16 %v1364, %v1361
        %v1446 = vpack.c.b16 %v1365, %v1362
        %v1447 = vpack.c.b16 %v1366, %v1363
        %v1448 = vpack.c.b16 %v1370, %v1367
        %v1449 = vpack.c.b16 %v1371, %v1368
        %v1450 = vpack.c.b16 %v1372, %v1369
        %v1451 = vpack.c.b16 %v1376, %v1373
        %v1452 = vpack.c.b16 %v1377, %v1374
        %v1453 = vpack.c.b16 %v1378, %v1375
        %v1454 = vpack.c.b16 %v1382, %v1379
        %v1455 = vpack.c.b16 %v1383, %v1380
        %v1456 = vpack.c.b16 %v1384, %v1381
        %v1457 = vpack.c.b16 %v1388, %v1385
        %v1458 = vpack.c.b16 %v1389, %v1386
        %v1459 = vpack.c.b16 %v1390, %v1387
        %v1460 = vpack.c.b16 %v1394, %v1391
        %v1461 = vpack.c.b16 %v1395, %v1392
        %v1462 = vpack.c.b16 %v1396, %v1393
        %v1463 = vpack.c.b16 %v1400, %v1397
        %v1464 = vpack.c.b16 %v1401, %v1398
        %v1465 = vpack.c.b16 %v1402, %v1399
        %v1466 = vpack.c.b16 %v1406, %v1403
        %v1467 = vpack.c.b16 %v1407, %v1404
        %v1468 = vpack.c.b16 %v1408, %v1405
        %v1469 = vpack.c.b16 %v1412, %v1409
        %v1470 = vpack.c.b16 %v1413, %v1410
        %v1471 = vpack.c.b16 %v1414, %v1411
        %v1472 = vpack.c.b16 %v1418, %v1415
        %v1473 = vpack.c.b16 %v1419, %v1416
        %v1474 = vpack.c.b16 %v1420, %v1417
        %v1530 = vsel %vm918, %v626, 0
        %v1533 = vsel %vm918, %v629, 0
        %v1536 = vsel %vm918, %v632, 0
        %v1539 = vsel %vm918, %v635, 0
        %v1542 = vsel %vm918, %v638, 0
        %v1545 = vsel %vm918, %v641, 0
        %v1548 = vsel %vm918, %v772, 0
        %v1551 = vsel %vm918, %v914, 0
        %v1554 = vsel %vm918, %v650, 0
        %v1557 = vsel %vm918, %v653, 0
        %v1560 = vsel %vm918, %v656, 0
        %v1563 = vsel %vm918, %v659, 0
        %v1566 = vsel %vm918, %v662, 0
        %v1569 = vsel %vm918, %v665, 0
        %v1572 = vsel %vm918, %v775, 0
        %v1575 = vsel %vm918, %v917, 0
        %1577 = vmatpush.bf16.msra.mxu0 %v1442
        %1578 = vmatpush.bf16.msra.mxu0 %v1439
        %1579 = vmatpush.bf16.msra.mxu0 %v1436
        %1580 = vmatpush.bf16.msra.mxu0 %v1433
        %1581 = vmatpush.bf16.msra.mxu0 %v1430
        %1582 = vmatpush.bf16.msra.mxu0 %v1427
        %1583 = vmatpush.bf16.msra.mxu0 %v1424
        %1584 = vmatpush.bf16.msra.mxu0 %v1421
        %1585 = vmatmul.bf16.gmra.mxu0 %v986
        %v1586 = vpop.f32.mrf.mxu0
        %v1587 = vadd.f32 %v1235, %v1586
        %v1588 = vpop.f32.mrf.mxu0
        %v1589 = vadd.f32 %v1235, %v1588
        %1590 = vmatmul.bf16.gmra.mxu0 %v989
        %v1591 = vpop.f32.mrf.mxu0
        %v1592 = vadd.f32 %v1235, %v1591
        %v1593 = vpop.f32.mrf.mxu0
        %v1594 = vadd.f32 %v1235, %v1593
        %1595 = vmatmul.bf16.gmra.mxu0 %v992
        %v1596 = vpop.f32.mrf.mxu0
        %v1597 = vadd.f32 %v1235, %v1596
        %v1598 = vpop.f32.mrf.mxu0
        %v1599 = vadd.f32 %v1235, %v1598
        %1600 = vmatmul.bf16.gmra.mxu0 %v995
        %v1601 = vpop.f32.mrf.mxu0
        %v1602 = vadd.f32 %v1235, %v1601
        %v1603 = vpop.f32.mrf.mxu0
        %v1604 = vadd.f32 %v1235, %v1603
        %1605 = vmatmul.bf16.gmra.mxu0 %v998
        %v1606 = vpop.f32.mrf.mxu0
        %v1607 = vadd.f32 %v1235, %v1606
        %v1608 = vpop.f32.mrf.mxu0
        %v1609 = vadd.f32 %v1235, %v1608
        %1610 = vmatmul.bf16.gmra.mxu0 %v1001
        %v1611 = vpop.f32.mrf.mxu0
        %v1612 = vadd.f32 %v1235, %v1611
        %v1613 = vpop.f32.mrf.mxu0
        %v1614 = vadd.f32 %v1235, %v1613
        %1615 = vmatmul.bf16.gmra.mxu0 %v1004
        %v1616 = vpop.f32.mrf.mxu0
        %v1617 = vadd.f32 %v1235, %v1616
        %v1618 = vpop.f32.mrf.mxu0
        %v1619 = vadd.f32 %v1235, %v1618
        %1620 = vmatmul.bf16.gmra.mxu0 %v1007
        %v1621 = vpop.f32.mrf.mxu0
        %v1622 = vadd.f32 %v1235, %v1621
        %v1623 = vpop.f32.mrf.mxu0
        %v1624 = vadd.f32 %v1235, %v1623
        %1625 = vmatmul.bf16.gmra.mxu0 %v1010
        %v1626 = vpop.f32.mrf.mxu0
        %v1627 = vadd.f32 %v1235, %v1626
        %v1628 = vpop.f32.mrf.mxu0
        %v1629 = vadd.f32 %v1235, %v1628
        %1630 = vmatmul.bf16.gmra.mxu0 %v1013
        %v1631 = vpop.f32.mrf.mxu0
        %v1632 = vadd.f32 %v1235, %v1631
        %v1633 = vpop.f32.mrf.mxu0
        %v1634 = vadd.f32 %v1235, %v1633
        %1635 = vmatmul.bf16.gmra.mxu0 %v1016
        %v1636 = vpop.f32.mrf.mxu0
        %v1637 = vadd.f32 %v1235, %v1636
        %v1638 = vpop.f32.mrf.mxu0
        %v1639 = vadd.f32 %v1235, %v1638
        %1640 = vmatmul.bf16.gmra.mxu0 %v1019
        %v1641 = vpop.f32.mrf.mxu0
        %v1642 = vadd.f32 %v1235, %v1641
        %v1643 = vpop.f32.mrf.mxu0
        %v1644 = vadd.f32 %v1235, %v1643
        %1645 = vmatmul.bf16.gmra.mxu0 %v1022
        %v1646 = vpop.f32.mrf.mxu0
        %v1647 = vadd.f32 %v1235, %v1646
        %v1648 = vpop.f32.mrf.mxu0
        %v1649 = vadd.f32 %v1235, %v1648
        %1650 = vmatmul.bf16.gmra.mxu0 %v1025
        %v1651 = vpop.f32.mrf.mxu0
        %v1652 = vadd.f32 %v1235, %v1651
        %v1653 = vpop.f32.mrf.mxu0
        %v1654 = vadd.f32 %v1235, %v1653
        %1655 = vmatmul.bf16.gmra.mxu0 %v1028
        %v1656 = vpop.f32.mrf.mxu0
        %v1657 = vadd.f32 %v1235, %v1656
        %v1658 = vpop.f32.mrf.mxu0
        %v1659 = vadd.f32 %v1235, %v1658
        %1660 = vmatmul.bf16.gmra.mxu0 %v1031
        %v1661 = vpop.f32.mrf.mxu0
        %v1662 = vadd.f32 %v1235, %v1661
        %v1663 = vpop.f32.mrf.mxu0
        %v1664 = vadd.f32 %v1235, %v1663
        %1665 = vdwg.mxu0
        %1666 = vmatpush.bf16.msra.mxu0 %v1466
        %1667 = vmatpush.bf16.msra.mxu0 %v1463
        %1668 = vmatpush.bf16.msra.mxu0 %v1460
        %1669 = vmatpush.bf16.msra.mxu0 %v1457
        %1670 = vmatpush.bf16.msra.mxu0 %v1454
        %1671 = vmatpush.bf16.msra.mxu0 %v1451
        %1672 = vmatpush.bf16.msra.mxu0 %v1448
        %1673 = vmatpush.bf16.msra.mxu0 %v1445
        %1674 = vmatmul.bf16.gmra.mxu0 %v1114
        %v1675 = vpop.f32.mrf.mxu0
        %v1676 = vadd.f32 %v1587, %v1675
        %v1677 = vpop.f32.mrf.mxu0
        %v1678 = vadd.f32 %v1589, %v1677
        %1679 = vmatmul.bf16.gmra.mxu0 %v1117
        %v1680 = vpop.f32.mrf.mxu0
        %v1681 = vadd.f32 %v1592, %v1680
        %v1682 = vpop.f32.mrf.mxu0
        %v1683 = vadd.f32 %v1594, %v1682
        %1684 = vmatmul.bf16.gmra.mxu0 %v1120
        %v1685 = vpop.f32.mrf.mxu0
        %v1686 = vadd.f32 %v1597, %v1685
        %v1687 = vpop.f32.mrf.mxu0
        %v1688 = vadd.f32 %v1599, %v1687
        %1689 = vmatmul.bf16.gmra.mxu0 %v1123
        %v1690 = vpop.f32.mrf.mxu0
        %v1691 = vadd.f32 %v1602, %v1690
        %v1692 = vpop.f32.mrf.mxu0
        %v1693 = vadd.f32 %v1604, %v1692
        %1694 = vmatmul.bf16.gmra.mxu0 %v1126
        %v1695 = vpop.f32.mrf.mxu0
        %v1696 = vadd.f32 %v1607, %v1695
        %v1697 = vpop.f32.mrf.mxu0
        %v1698 = vadd.f32 %v1609, %v1697
        %1699 = vmatmul.bf16.gmra.mxu0 %v1129
        %v1700 = vpop.f32.mrf.mxu0
        %v1701 = vadd.f32 %v1612, %v1700
        %v1702 = vpop.f32.mrf.mxu0
        %v1703 = vadd.f32 %v1614, %v1702
        %1704 = vmatmul.bf16.gmra.mxu0 %v1132
        %v1705 = vpop.f32.mrf.mxu0
        %v1706 = vadd.f32 %v1617, %v1705
        %v1707 = vpop.f32.mrf.mxu0
        %v1708 = vadd.f32 %v1619, %v1707
        %1709 = vmatmul.bf16.gmra.mxu0 %v1135
        %v1710 = vpop.f32.mrf.mxu0
        %v1711 = vadd.f32 %v1622, %v1710
        %v1712 = vpop.f32.mrf.mxu0
        %v1713 = vadd.f32 %v1624, %v1712
        %1714 = vmatmul.bf16.gmra.mxu0 %v1138
        %v1715 = vpop.f32.mrf.mxu0
        %v1716 = vadd.f32 %v1627, %v1715
        %v1717 = vpop.f32.mrf.mxu0
        %v1718 = vadd.f32 %v1629, %v1717
        %1719 = vmatmul.bf16.gmra.mxu0 %v1141
        %v1720 = vpop.f32.mrf.mxu0
        %v1721 = vadd.f32 %v1632, %v1720
        %v1722 = vpop.f32.mrf.mxu0
        %v1723 = vadd.f32 %v1634, %v1722
        %1724 = vmatmul.bf16.gmra.mxu0 %v1144
        %v1725 = vpop.f32.mrf.mxu0
        %v1726 = vadd.f32 %v1637, %v1725
        %v1727 = vpop.f32.mrf.mxu0
        %v1728 = vadd.f32 %v1639, %v1727
        %1729 = vmatmul.bf16.gmra.mxu0 %v1147
        %v1730 = vpop.f32.mrf.mxu0
        %v1731 = vadd.f32 %v1642, %v1730
        %v1732 = vpop.f32.mrf.mxu0
        %v1733 = vadd.f32 %v1644, %v1732
        %1734 = vmatmul.bf16.gmra.mxu0 %v1150
        %v1735 = vpop.f32.mrf.mxu0
        %v1736 = vadd.f32 %v1647, %v1735
        %v1737 = vpop.f32.mrf.mxu0
        %v1738 = vadd.f32 %v1649, %v1737
        %1739 = vmatmul.bf16.gmra.mxu0 %v1153
        %v1740 = vpop.f32.mrf.mxu0
        %v1741 = vadd.f32 %v1652, %v1740
        %v1742 = vpop.f32.mrf.mxu0
        %v1743 = vadd.f32 %v1654, %v1742
        %1744 = vmatmul.bf16.gmra.mxu0 %v1156
        %v1745 = vpop.f32.mrf.mxu0
        %v1746 = vadd.f32 %v1657, %v1745
        %v1747 = vpop.f32.mrf.mxu0
        %v1748 = vadd.f32 %v1659, %v1747
        %1749 = vmatmul.bf16.gmra.mxu0 %v1159
        %v1750 = vpop.f32.mrf.mxu0
        %v1751 = vadd.f32 %v1662, %v1750
        %v1752 = vpop.f32.mrf.mxu0
        %v1753 = vadd.f32 %v1664, %v1752
        %1754 = vdwg.mxu0
        %1755 = vmatpush.bf16.msra.mxu0 0
        %1756 = vmatpush.bf16.msra.mxu0 0
        %1757 = vmatpush.bf16.msra.mxu0 0
        %1758 = vmatpush.bf16.msra.mxu0 0
        %1759 = vmatpush.bf16.msra.mxu0 0
        %1760 = vmatpush.bf16.msra.mxu0 0
        %1761 = vmatpush.bf16.msra.mxu0 %v1472
        %1762 = vmatpush.bf16.msra.mxu0 %v1469
        %1763 = vmatmul.bf16.gmra.mxu0 %v1530
        %v1764 = vpop.f32.mrf.mxu0
        %v1765 = vadd.f32 %v1676, %v1764
        %v1766 = vpop.f32.mrf.mxu0
        %v1767 = vadd.f32 %v1678, %v1766
        %1768 = vmatmul.bf16.gmra.mxu0 %v1533
        %v1769 = vpop.f32.mrf.mxu0
        %v1770 = vadd.f32 %v1681, %v1769
        %v1771 = vpop.f32.mrf.mxu0
        %v1772 = vadd.f32 %v1683, %v1771
        %1773 = vmatmul.bf16.gmra.mxu0 %v1536
        %v1774 = vpop.f32.mrf.mxu0
        %v1775 = vadd.f32 %v1686, %v1774
        %v1776 = vpop.f32.mrf.mxu0
        %v1777 = vadd.f32 %v1688, %v1776
        %1778 = vmatmul.bf16.gmra.mxu0 %v1539
        %v1779 = vpop.f32.mrf.mxu0
        %v1780 = vadd.f32 %v1691, %v1779
        %v1781 = vpop.f32.mrf.mxu0
        %v1782 = vadd.f32 %v1693, %v1781
        %1783 = vmatmul.bf16.gmra.mxu0 %v1542
        %v1784 = vpop.f32.mrf.mxu0
        %v1785 = vadd.f32 %v1696, %v1784
        %v1786 = vpop.f32.mrf.mxu0
        %v1787 = vadd.f32 %v1698, %v1786
        %1788 = vmatmul.bf16.gmra.mxu0 %v1545
        %v1789 = vpop.f32.mrf.mxu0
        %v1790 = vadd.f32 %v1701, %v1789
        %v1791 = vpop.f32.mrf.mxu0
        %v1792 = vadd.f32 %v1703, %v1791
        %1793 = vmatmul.bf16.gmra.mxu0 %v1548
        %v1794 = vpop.f32.mrf.mxu0
        %v1795 = vadd.f32 %v1706, %v1794
        %v1796 = vpop.f32.mrf.mxu0
        %v1797 = vadd.f32 %v1708, %v1796
        %1798 = vmatmul.bf16.gmra.mxu0 %v1551
        %v1799 = vpop.f32.mrf.mxu0
        %v1800 = vadd.f32 %v1711, %v1799
        %v1801 = vpop.f32.mrf.mxu0
        %v1802 = vadd.f32 %v1713, %v1801
        %1803 = vmatmul.bf16.gmra.mxu0 %v1554
        %v1804 = vpop.f32.mrf.mxu0
        %v1805 = vadd.f32 %v1716, %v1804
        %v1806 = vpop.f32.mrf.mxu0
        %v1807 = vadd.f32 %v1718, %v1806
        %1808 = vmatmul.bf16.gmra.mxu0 %v1557
        %v1809 = vpop.f32.mrf.mxu0
        %v1810 = vadd.f32 %v1721, %v1809
        %v1811 = vpop.f32.mrf.mxu0
        %v1812 = vadd.f32 %v1723, %v1811
        %1813 = vmatmul.bf16.gmra.mxu0 %v1560
        %v1814 = vpop.f32.mrf.mxu0
        %v1815 = vadd.f32 %v1726, %v1814
        %v1816 = vpop.f32.mrf.mxu0
        %v1817 = vadd.f32 %v1728, %v1816
        %1818 = vmatmul.bf16.gmra.mxu0 %v1563
        %v1819 = vpop.f32.mrf.mxu0
        %v1820 = vadd.f32 %v1731, %v1819
        %v1821 = vpop.f32.mrf.mxu0
        %v1822 = vadd.f32 %v1733, %v1821
        %1823 = vmatmul.bf16.gmra.mxu0 %v1566
        %v1824 = vpop.f32.mrf.mxu0
        %v1825 = vadd.f32 %v1736, %v1824
        %v1826 = vpop.f32.mrf.mxu0
        %v1827 = vadd.f32 %v1738, %v1826
        %1828 = vmatmul.bf16.gmra.mxu0 %v1569
        %v1829 = vpop.f32.mrf.mxu0
        %v1830 = vadd.f32 %v1741, %v1829
        %v1831 = vpop.f32.mrf.mxu0
        %v1832 = vadd.f32 %v1743, %v1831
        %1833 = vmatmul.bf16.gmra.mxu0 %v1572
        %v1834 = vpop.f32.mrf.mxu0
        %v1835 = vadd.f32 %v1746, %v1834
        %v1836 = vpop.f32.mrf.mxu0
        %v1837 = vadd.f32 %v1748, %v1836
        %1838 = vmatmul.bf16.gmra.mxu0 %v1575
        %v1839 = vpop.f32.mrf.mxu0
        %v1840 = vadd.f32 %v1751, %v1839
        %v1841 = vpop.f32.mrf.mxu0
        %v1842 = vadd.f32 %v1753, %v1841
        %1843 = vdwg.mxu0
        %1844 = vmatpush.bf16.msra.mxu0 %v1443
        %1845 = vmatpush.bf16.msra.mxu0 %v1440
        %1846 = vmatpush.bf16.msra.mxu0 %v1437
        %1847 = vmatpush.bf16.msra.mxu0 %v1434
        %1848 = vmatpush.bf16.msra.mxu0 %v1431
        %1849 = vmatpush.bf16.msra.mxu0 %v1428
        %1850 = vmatpush.bf16.msra.mxu0 %v1425
        %1851 = vmatpush.bf16.msra.mxu0 %v1422
        %1852 = vmatmul.bf16.gmra.mxu0 %v986
        %v1853 = vpop.f32.mrf.mxu0
        %v1854 = vadd.f32 %v1236, %v1853
        %v1855 = vpop.f32.mrf.mxu0
        %v1856 = vadd.f32 %v1236, %v1855
        %1857 = vmatmul.bf16.gmra.mxu0 %v989
        %v1858 = vpop.f32.mrf.mxu0
        %v1859 = vadd.f32 %v1236, %v1858
        %v1860 = vpop.f32.mrf.mxu0
        %v1861 = vadd.f32 %v1236, %v1860
        %1862 = vmatmul.bf16.gmra.mxu0 %v992
        %v1863 = vpop.f32.mrf.mxu0
        %v1864 = vadd.f32 %v1236, %v1863
        %v1865 = vpop.f32.mrf.mxu0
        %v1866 = vadd.f32 %v1236, %v1865
        %1867 = vmatmul.bf16.gmra.mxu0 %v995
        %v1868 = vpop.f32.mrf.mxu0
        %v1869 = vadd.f32 %v1236, %v1868
        %v1870 = vpop.f32.mrf.mxu0
        %v1871 = vadd.f32 %v1236, %v1870
        %1872 = vmatmul.bf16.gmra.mxu0 %v998
        %v1873 = vpop.f32.mrf.mxu0
        %v1874 = vadd.f32 %v1236, %v1873
        %v1875 = vpop.f32.mrf.mxu0
        %v1876 = vadd.f32 %v1236, %v1875
        %1877 = vmatmul.bf16.gmra.mxu0 %v1001
        %v1878 = vpop.f32.mrf.mxu0
        %v1879 = vadd.f32 %v1236, %v1878
        %v1880 = vpop.f32.mrf.mxu0
        %v1881 = vadd.f32 %v1236, %v1880
        %1882 = vmatmul.bf16.gmra.mxu0 %v1004
        %v1883 = vpop.f32.mrf.mxu0
        %v1884 = vadd.f32 %v1236, %v1883
        %v1885 = vpop.f32.mrf.mxu0
        %v1886 = vadd.f32 %v1236, %v1885
        %1887 = vmatmul.bf16.gmra.mxu0 %v1007
        %v1888 = vpop.f32.mrf.mxu0
        %v1889 = vadd.f32 %v1236, %v1888
        %v1890 = vpop.f32.mrf.mxu0
        %v1891 = vadd.f32 %v1236, %v1890
        %1892 = vmatmul.bf16.gmra.mxu0 %v1010
        %v1893 = vpop.f32.mrf.mxu0
        %v1894 = vadd.f32 %v1236, %v1893
        %v1895 = vpop.f32.mrf.mxu0
        %v1896 = vadd.f32 %v1236, %v1895
        %1897 = vmatmul.bf16.gmra.mxu0 %v1013
        %v1898 = vpop.f32.mrf.mxu0
        %v1899 = vadd.f32 %v1236, %v1898
        %v1900 = vpop.f32.mrf.mxu0
        %v1901 = vadd.f32 %v1236, %v1900
        %1902 = vmatmul.bf16.gmra.mxu0 %v1016
        %v1903 = vpop.f32.mrf.mxu0
        %v1904 = vadd.f32 %v1236, %v1903
        %v1905 = vpop.f32.mrf.mxu0
        %v1906 = vadd.f32 %v1236, %v1905
        %1907 = vmatmul.bf16.gmra.mxu0 %v1019
        %v1908 = vpop.f32.mrf.mxu0
        %v1909 = vadd.f32 %v1236, %v1908
        %v1910 = vpop.f32.mrf.mxu0
        %v1911 = vadd.f32 %v1236, %v1910
        %1912 = vmatmul.bf16.gmra.mxu0 %v1022
        %v1913 = vpop.f32.mrf.mxu0
        %v1914 = vadd.f32 %v1236, %v1913
        %v1915 = vpop.f32.mrf.mxu0
        %v1916 = vadd.f32 %v1236, %v1915
        %1917 = vmatmul.bf16.gmra.mxu0 %v1025
        %v1918 = vpop.f32.mrf.mxu0
        %v1919 = vadd.f32 %v1236, %v1918
        %v1920 = vpop.f32.mrf.mxu0
        %v1921 = vadd.f32 %v1236, %v1920
        %1922 = vmatmul.bf16.gmra.mxu0 %v1028
        %v1923 = vpop.f32.mrf.mxu0
        %v1924 = vadd.f32 %v1236, %v1923
        %v1925 = vpop.f32.mrf.mxu0
        %v1926 = vadd.f32 %v1236, %v1925
        %1927 = vmatmul.bf16.gmra.mxu0 %v1031
        %v1928 = vpop.f32.mrf.mxu0
        %v1929 = vadd.f32 %v1236, %v1928
        %v1930 = vpop.f32.mrf.mxu0
        %v1931 = vadd.f32 %v1236, %v1930
        %1932 = vdwg.mxu0
        %1933 = vmatpush.bf16.msra.mxu0 %v1467
        %1934 = vmatpush.bf16.msra.mxu0 %v1464
        %1935 = vmatpush.bf16.msra.mxu0 %v1461
        %1936 = vmatpush.bf16.msra.mxu0 %v1458
        %1937 = vmatpush.bf16.msra.mxu0 %v1455
        %1938 = vmatpush.bf16.msra.mxu0 %v1452
        %1939 = vmatpush.bf16.msra.mxu0 %v1449
        %1940 = vmatpush.bf16.msra.mxu0 %v1446
        %1941 = vmatmul.bf16.gmra.mxu0 %v1114
        %v1942 = vpop.f32.mrf.mxu0
        %v1943 = vadd.f32 %v1854, %v1942
        %v1944 = vpop.f32.mrf.mxu0
        %v1945 = vadd.f32 %v1856, %v1944
        %1946 = vmatmul.bf16.gmra.mxu0 %v1117
        %v1947 = vpop.f32.mrf.mxu0
        %v1948 = vadd.f32 %v1859, %v1947
        %v1949 = vpop.f32.mrf.mxu0
        %v1950 = vadd.f32 %v1861, %v1949
        %1951 = vmatmul.bf16.gmra.mxu0 %v1120
        %v1952 = vpop.f32.mrf.mxu0
        %v1953 = vadd.f32 %v1864, %v1952
        %v1954 = vpop.f32.mrf.mxu0
        %v1955 = vadd.f32 %v1866, %v1954
        %1956 = vmatmul.bf16.gmra.mxu0 %v1123
        %v1957 = vpop.f32.mrf.mxu0
        %v1958 = vadd.f32 %v1869, %v1957
        %v1959 = vpop.f32.mrf.mxu0
        %v1960 = vadd.f32 %v1871, %v1959
        %1961 = vmatmul.bf16.gmra.mxu0 %v1126
        %v1962 = vpop.f32.mrf.mxu0
        %v1963 = vadd.f32 %v1874, %v1962
        %v1964 = vpop.f32.mrf.mxu0
        %v1965 = vadd.f32 %v1876, %v1964
        %1966 = vmatmul.bf16.gmra.mxu0 %v1129
        %v1967 = vpop.f32.mrf.mxu0
        %v1968 = vadd.f32 %v1879, %v1967
        %v1969 = vpop.f32.mrf.mxu0
        %v1970 = vadd.f32 %v1881, %v1969
        %1971 = vmatmul.bf16.gmra.mxu0 %v1132
        %v1972 = vpop.f32.mrf.mxu0
        %v1973 = vadd.f32 %v1884, %v1972
        %v1974 = vpop.f32.mrf.mxu0
        %v1975 = vadd.f32 %v1886, %v1974
        %1976 = vmatmul.bf16.gmra.mxu0 %v1135
        %v1977 = vpop.f32.mrf.mxu0
        %v1978 = vadd.f32 %v1889, %v1977
        %v1979 = vpop.f32.mrf.mxu0
        %v1980 = vadd.f32 %v1891, %v1979
        %1981 = vmatmul.bf16.gmra.mxu0 %v1138
        %v1982 = vpop.f32.mrf.mxu0
        %v1983 = vadd.f32 %v1894, %v1982
        %v1984 = vpop.f32.mrf.mxu0
        %v1985 = vadd.f32 %v1896, %v1984
        %1986 = vmatmul.bf16.gmra.mxu0 %v1141
        %v1987 = vpop.f32.mrf.mxu0
        %v1988 = vadd.f32 %v1899, %v1987
        %v1989 = vpop.f32.mrf.mxu0
        %v1990 = vadd.f32 %v1901, %v1989
        %1991 = vmatmul.bf16.gmra.mxu0 %v1144
        %v1992 = vpop.f32.mrf.mxu0
        %v1993 = vadd.f32 %v1904, %v1992
        %v1994 = vpop.f32.mrf.mxu0
        %v1995 = vadd.f32 %v1906, %v1994
        %1996 = vmatmul.bf16.gmra.mxu0 %v1147
        %v1997 = vpop.f32.mrf.mxu0
        %v1998 = vadd.f32 %v1909, %v1997
        %v1999 = vpop.f32.mrf.mxu0
        %v2000 = vadd.f32 %v1911, %v1999
        %2001 = vmatmul.bf16.gmra.mxu0 %v1150
        %v2002 = vpop.f32.mrf.mxu0
        %v2003 = vadd.f32 %v1914, %v2002
        %v2004 = vpop.f32.mrf.mxu0
        %v2005 = vadd.f32 %v1916, %v2004
        %2006 = vmatmul.bf16.gmra.mxu0 %v1153
        %v2007 = vpop.f32.mrf.mxu0
        %v2008 = vadd.f32 %v1919, %v2007
        %v2009 = vpop.f32.mrf.mxu0
        %v2010 = vadd.f32 %v1921, %v2009
        %2011 = vmatmul.bf16.gmra.mxu0 %v1156
        %v2012 = vpop.f32.mrf.mxu0
        %v2013 = vadd.f32 %v1924, %v2012
        %v2014 = vpop.f32.mrf.mxu0
        %v2015 = vadd.f32 %v1926, %v2014
        %2016 = vmatmul.bf16.gmra.mxu0 %v1159
        %v2017 = vpop.f32.mrf.mxu0
        %v2018 = vadd.f32 %v1929, %v2017
        %v2019 = vpop.f32.mrf.mxu0
        %v2020 = vadd.f32 %v1931, %v2019
        %2021 = vdwg.mxu0
        %2022 = vmatpush.bf16.msra.mxu0 0
        %2023 = vmatpush.bf16.msra.mxu0 0
        %2024 = vmatpush.bf16.msra.mxu0 0
        %2025 = vmatpush.bf16.msra.mxu0 0
        %2026 = vmatpush.bf16.msra.mxu0 0
        %2027 = vmatpush.bf16.msra.mxu0 0
        %2028 = vmatpush.bf16.msra.mxu0 %v1473
        %2029 = vmatpush.bf16.msra.mxu0 %v1470
        %2030 = vmatmul.bf16.gmra.mxu0 %v1530
        %v2031 = vpop.f32.mrf.mxu0
        %v2032 = vadd.f32 %v1943, %v2031
        %v2033 = vpop.f32.mrf.mxu0
        %v2034 = vadd.f32 %v1945, %v2033
        %2035 = vmatmul.bf16.gmra.mxu0 %v1533
        %v2036 = vpop.f32.mrf.mxu0
        %v2037 = vadd.f32 %v1948, %v2036
        %v2038 = vpop.f32.mrf.mxu0
        %v2039 = vadd.f32 %v1950, %v2038
        %2040 = vmatmul.bf16.gmra.mxu0 %v1536
        %v2041 = vpop.f32.mrf.mxu0
        %v2042 = vadd.f32 %v1953, %v2041
        %v2043 = vpop.f32.mrf.mxu0
        %v2044 = vadd.f32 %v1955, %v2043
        %2045 = vmatmul.bf16.gmra.mxu0 %v1539
        %v2046 = vpop.f32.mrf.mxu0
        %v2047 = vadd.f32 %v1958, %v2046
        %v2048 = vpop.f32.mrf.mxu0
        %v2049 = vadd.f32 %v1960, %v2048
        %2050 = vmatmul.bf16.gmra.mxu0 %v1542
        %v2051 = vpop.f32.mrf.mxu0
        %v2052 = vadd.f32 %v1963, %v2051
        %v2053 = vpop.f32.mrf.mxu0
        %v2054 = vadd.f32 %v1965, %v2053
        %2055 = vmatmul.bf16.gmra.mxu0 %v1545
        %v2056 = vpop.f32.mrf.mxu0
        %v2057 = vadd.f32 %v1968, %v2056
        %v2058 = vpop.f32.mrf.mxu0
        %v2059 = vadd.f32 %v1970, %v2058
        %2060 = vmatmul.bf16.gmra.mxu0 %v1548
        %v2061 = vpop.f32.mrf.mxu0
        %v2062 = vadd.f32 %v1973, %v2061
        %v2063 = vpop.f32.mrf.mxu0
        %v2064 = vadd.f32 %v1975, %v2063
        %2065 = vmatmul.bf16.gmra.mxu0 %v1551
        %v2066 = vpop.f32.mrf.mxu0
        %v2067 = vadd.f32 %v1978, %v2066
        %v2068 = vpop.f32.mrf.mxu0
        %v2069 = vadd.f32 %v1980, %v2068
        %2070 = vmatmul.bf16.gmra.mxu0 %v1554
        %v2071 = vpop.f32.mrf.mxu0
        %v2072 = vadd.f32 %v1983, %v2071
        %v2073 = vpop.f32.mrf.mxu0
        %v2074 = vadd.f32 %v1985, %v2073
        %2075 = vmatmul.bf16.gmra.mxu0 %v1557
        %v2076 = vpop.f32.mrf.mxu0
        %v2077 = vadd.f32 %v1988, %v2076
        %v2078 = vpop.f32.mrf.mxu0
        %v2079 = vadd.f32 %v1990, %v2078
        %2080 = vmatmul.bf16.gmra.mxu0 %v1560
        %v2081 = vpop.f32.mrf.mxu0
        %v2082 = vadd.f32 %v1993, %v2081
        %v2083 = vpop.f32.mrf.mxu0
        %v2084 = vadd.f32 %v1995, %v2083
        %2085 = vmatmul.bf16.gmra.mxu0 %v1563
        %v2086 = vpop.f32.mrf.mxu0
        %v2087 = vadd.f32 %v1998, %v2086
        %v2088 = vpop.f32.mrf.mxu0
        %v2089 = vadd.f32 %v2000, %v2088
        %2090 = vmatmul.bf16.gmra.mxu0 %v1566
        %v2091 = vpop.f32.mrf.mxu0
        %v2092 = vadd.f32 %v2003, %v2091
        %v2093 = vpop.f32.mrf.mxu0
        %v2094 = vadd.f32 %v2005, %v2093
        %2095 = vmatmul.bf16.gmra.mxu0 %v1569
        %v2096 = vpop.f32.mrf.mxu0
        %v2097 = vadd.f32 %v2008, %v2096
        %v2098 = vpop.f32.mrf.mxu0
        %v2099 = vadd.f32 %v2010, %v2098
        %2100 = vmatmul.bf16.gmra.mxu0 %v1572
        %v2101 = vpop.f32.mrf.mxu0
        %v2102 = vadd.f32 %v2013, %v2101
        %v2103 = vpop.f32.mrf.mxu0
        %v2104 = vadd.f32 %v2015, %v2103
        %2105 = vmatmul.bf16.gmra.mxu0 %v1575
        %v2106 = vpop.f32.mrf.mxu0
        %v2107 = vadd.f32 %v2018, %v2106
        %v2108 = vpop.f32.mrf.mxu0
        %v2109 = vadd.f32 %v2020, %v2108
        %2110 = vdwg.mxu0
        %2111 = vmatpush.bf16.msra.mxu0 %v1444
        %2112 = vmatpush.bf16.msra.mxu0 %v1441
        %2113 = vmatpush.bf16.msra.mxu0 %v1438
        %2114 = vmatpush.bf16.msra.mxu0 %v1435
        %2115 = vmatpush.bf16.msra.mxu0 %v1432
        %2116 = vmatpush.bf16.msra.mxu0 %v1429
        %2117 = vmatpush.bf16.msra.mxu0 %v1426
        %2118 = vmatpush.bf16.msra.mxu0 %v1423
        %2119 = vmatmul.bf16.gmra.mxu0 %v986
        %v2120 = vpop.f32.mrf.mxu0
        %v2121 = vadd.f32 %v1237, %v2120
        %v2122 = vpop.f32.mrf.mxu0
        %v2123 = vadd.f32 %v1237, %v2122
        %2124 = vmatmul.bf16.gmra.mxu0 %v989
        %v2125 = vpop.f32.mrf.mxu0
        %v2126 = vadd.f32 %v1237, %v2125
        %v2127 = vpop.f32.mrf.mxu0
        %v2128 = vadd.f32 %v1237, %v2127
        %2129 = vmatmul.bf16.gmra.mxu0 %v992
        %v2130 = vpop.f32.mrf.mxu0
        %v2131 = vadd.f32 %v1237, %v2130
        %v2132 = vpop.f32.mrf.mxu0
        %v2133 = vadd.f32 %v1237, %v2132
        %2134 = vmatmul.bf16.gmra.mxu0 %v995
        %v2135 = vpop.f32.mrf.mxu0
        %v2136 = vadd.f32 %v1237, %v2135
        %v2137 = vpop.f32.mrf.mxu0
        %v2138 = vadd.f32 %v1237, %v2137
        %2139 = vmatmul.bf16.gmra.mxu0 %v998
        %v2140 = vpop.f32.mrf.mxu0
        %v2141 = vadd.f32 %v1237, %v2140
        %v2142 = vpop.f32.mrf.mxu0
        %v2143 = vadd.f32 %v1237, %v2142
        %2144 = vmatmul.bf16.gmra.mxu0 %v1001
        %v2145 = vpop.f32.mrf.mxu0
        %v2146 = vadd.f32 %v1237, %v2145
        %v2147 = vpop.f32.mrf.mxu0
        %v2148 = vadd.f32 %v1237, %v2147
        %2149 = vmatmul.bf16.gmra.mxu0 %v1004
        %v2150 = vpop.f32.mrf.mxu0
        %v2151 = vadd.f32 %v1237, %v2150
        %v2152 = vpop.f32.mrf.mxu0
        %v2153 = vadd.f32 %v1237, %v2152
        %2154 = vmatmul.bf16.gmra.mxu0 %v1007
        %v2155 = vpop.f32.mrf.mxu0
        %v2156 = vadd.f32 %v1237, %v2155
        %v2157 = vpop.f32.mrf.mxu0
        %v2158 = vadd.f32 %v1237, %v2157
        %2159 = vmatmul.bf16.gmra.mxu0 %v1010
        %v2160 = vpop.f32.mrf.mxu0
        %v2161 = vadd.f32 %v1237, %v2160
        %v2162 = vpop.f32.mrf.mxu0
        %v2163 = vadd.f32 %v1237, %v2162
        %2164 = vmatmul.bf16.gmra.mxu0 %v1013
        %v2165 = vpop.f32.mrf.mxu0
        %v2166 = vadd.f32 %v1237, %v2165
        %v2167 = vpop.f32.mrf.mxu0
        %v2168 = vadd.f32 %v1237, %v2167
        %2169 = vmatmul.bf16.gmra.mxu0 %v1016
        %v2170 = vpop.f32.mrf.mxu0
        %v2171 = vadd.f32 %v1237, %v2170
        %v2172 = vpop.f32.mrf.mxu0
        %v2173 = vadd.f32 %v1237, %v2172
        %2174 = vmatmul.bf16.gmra.mxu0 %v1019
        %v2175 = vpop.f32.mrf.mxu0
        %v2176 = vadd.f32 %v1237, %v2175
        %v2177 = vpop.f32.mrf.mxu0
        %v2178 = vadd.f32 %v1237, %v2177
        %2179 = vmatmul.bf16.gmra.mxu0 %v1022
        %v2180 = vpop.f32.mrf.mxu0
        %v2181 = vadd.f32 %v1237, %v2180
        %v2182 = vpop.f32.mrf.mxu0
        %v2183 = vadd.f32 %v1237, %v2182
        %2184 = vmatmul.bf16.gmra.mxu0 %v1025
        %v2185 = vpop.f32.mrf.mxu0
        %v2186 = vadd.f32 %v1237, %v2185
        %v2187 = vpop.f32.mrf.mxu0
        %v2188 = vadd.f32 %v1237, %v2187
        %2189 = vmatmul.bf16.gmra.mxu0 %v1028
        %v2190 = vpop.f32.mrf.mxu0
        %v2191 = vadd.f32 %v1237, %v2190
        %v2192 = vpop.f32.mrf.mxu0
        %v2193 = vadd.f32 %v1237, %v2192
        %2194 = vmatmul.bf16.gmra.mxu0 %v1031
        %v2195 = vpop.f32.mrf.mxu0
        %v2196 = vadd.f32 %v1237, %v2195
        %v2197 = vpop.f32.mrf.mxu0
        %v2198 = vadd.f32 %v1237, %v2197
        %2199 = vdwg.mxu0
        %2200 = vmatpush.bf16.msra.mxu0 %v1468
        %2201 = vmatpush.bf16.msra.mxu0 %v1465
        %2202 = vmatpush.bf16.msra.mxu0 %v1462
        %2203 = vmatpush.bf16.msra.mxu0 %v1459
        %2204 = vmatpush.bf16.msra.mxu0 %v1456
        %2205 = vmatpush.bf16.msra.mxu0 %v1453
        %2206 = vmatpush.bf16.msra.mxu0 %v1450
        %2207 = vmatpush.bf16.msra.mxu0 %v1447
        %2208 = vmatmul.bf16.gmra.mxu0 %v1114
        %v2209 = vpop.f32.mrf.mxu0
        %v2210 = vadd.f32 %v2121, %v2209
        %v2211 = vpop.f32.mrf.mxu0
        %v2212 = vadd.f32 %v2123, %v2211
        %2213 = vmatmul.bf16.gmra.mxu0 %v1117
        %v2214 = vpop.f32.mrf.mxu0
        %v2215 = vadd.f32 %v2126, %v2214
        %v2216 = vpop.f32.mrf.mxu0
        %v2217 = vadd.f32 %v2128, %v2216
        %2218 = vmatmul.bf16.gmra.mxu0 %v1120
        %v2219 = vpop.f32.mrf.mxu0
        %v2220 = vadd.f32 %v2131, %v2219
        %v2221 = vpop.f32.mrf.mxu0
        %v2222 = vadd.f32 %v2133, %v2221
        %2223 = vmatmul.bf16.gmra.mxu0 %v1123
        %v2224 = vpop.f32.mrf.mxu0
        %v2225 = vadd.f32 %v2136, %v2224
        %v2226 = vpop.f32.mrf.mxu0
        %v2227 = vadd.f32 %v2138, %v2226
        %2228 = vmatmul.bf16.gmra.mxu0 %v1126
        %v2229 = vpop.f32.mrf.mxu0
        %v2230 = vadd.f32 %v2141, %v2229
        %v2231 = vpop.f32.mrf.mxu0
        %v2232 = vadd.f32 %v2143, %v2231
        %2233 = vmatmul.bf16.gmra.mxu0 %v1129
        %v2234 = vpop.f32.mrf.mxu0
        %v2235 = vadd.f32 %v2146, %v2234
        %v2236 = vpop.f32.mrf.mxu0
        %v2237 = vadd.f32 %v2148, %v2236
        %2238 = vmatmul.bf16.gmra.mxu0 %v1132
        %v2239 = vpop.f32.mrf.mxu0
        %v2240 = vadd.f32 %v2151, %v2239
        %v2241 = vpop.f32.mrf.mxu0
        %v2242 = vadd.f32 %v2153, %v2241
        %2243 = vmatmul.bf16.gmra.mxu0 %v1135
        %v2244 = vpop.f32.mrf.mxu0
        %v2245 = vadd.f32 %v2156, %v2244
        %v2246 = vpop.f32.mrf.mxu0
        %v2247 = vadd.f32 %v2158, %v2246
        %2248 = vmatmul.bf16.gmra.mxu0 %v1138
        %v2249 = vpop.f32.mrf.mxu0
        %v2250 = vadd.f32 %v2161, %v2249
        %v2251 = vpop.f32.mrf.mxu0
        %v2252 = vadd.f32 %v2163, %v2251
        %2253 = vmatmul.bf16.gmra.mxu0 %v1141
        %v2254 = vpop.f32.mrf.mxu0
        %v2255 = vadd.f32 %v2166, %v2254
        %v2256 = vpop.f32.mrf.mxu0
        %v2257 = vadd.f32 %v2168, %v2256
        %2258 = vmatmul.bf16.gmra.mxu0 %v1144
        %v2259 = vpop.f32.mrf.mxu0
        %v2260 = vadd.f32 %v2171, %v2259
        %v2261 = vpop.f32.mrf.mxu0
        %v2262 = vadd.f32 %v2173, %v2261
        %2263 = vmatmul.bf16.gmra.mxu0 %v1147
        %v2264 = vpop.f32.mrf.mxu0
        %v2265 = vadd.f32 %v2176, %v2264
        %v2266 = vpop.f32.mrf.mxu0
        %v2267 = vadd.f32 %v2178, %v2266
        %2268 = vmatmul.bf16.gmra.mxu0 %v1150
        %v2269 = vpop.f32.mrf.mxu0
        %v2270 = vadd.f32 %v2181, %v2269
        %v2271 = vpop.f32.mrf.mxu0
        %v2272 = vadd.f32 %v2183, %v2271
        %2273 = vmatmul.bf16.gmra.mxu0 %v1153
        %v2274 = vpop.f32.mrf.mxu0
        %v2275 = vadd.f32 %v2186, %v2274
        %v2276 = vpop.f32.mrf.mxu0
        %v2277 = vadd.f32 %v2188, %v2276
        %2278 = vmatmul.bf16.gmra.mxu0 %v1156
        %v2279 = vpop.f32.mrf.mxu0
        %v2280 = vadd.f32 %v2191, %v2279
        %v2281 = vpop.f32.mrf.mxu0
        %v2282 = vadd.f32 %v2193, %v2281
        %2283 = vmatmul.bf16.gmra.mxu0 %v1159
        %v2284 = vpop.f32.mrf.mxu0
        %v2285 = vadd.f32 %v2196, %v2284
        %v2286 = vpop.f32.mrf.mxu0
        %v2287 = vadd.f32 %v2198, %v2286
        %2288 = vdwg.mxu0
        %2289 = vmatpush.bf16.msra.mxu0 0
        %2290 = vmatpush.bf16.msra.mxu0 0
        %2291 = vmatpush.bf16.msra.mxu0 0
        %2292 = vmatpush.bf16.msra.mxu0 0
        %2293 = vmatpush.bf16.msra.mxu0 0
        %2294 = vmatpush.bf16.msra.mxu0 0
        %2295 = vmatpush.bf16.msra.mxu0 %v1474
        %2296 = vmatpush.bf16.msra.mxu0 %v1471
        %2297 = vmatmul.bf16.gmra.mxu0 %v1530
        %v2298 = vpop.f32.mrf.mxu0
        %v2299 = vadd.f32 %v2210, %v2298
        %v2300 = vpop.f32.mrf.mxu0
        %v2301 = vadd.f32 %v2212, %v2300
        %2302 = vmatmul.bf16.gmra.mxu0 %v1533
        %v2303 = vpop.f32.mrf.mxu0
        %v2304 = vadd.f32 %v2215, %v2303
        %v2305 = vpop.f32.mrf.mxu0
        %v2306 = vadd.f32 %v2217, %v2305
        %2307 = vmatmul.bf16.gmra.mxu0 %v1536
        %v2308 = vpop.f32.mrf.mxu0
        %v2309 = vadd.f32 %v2220, %v2308
        %v2310 = vpop.f32.mrf.mxu0
        %v2311 = vadd.f32 %v2222, %v2310
        %2312 = vmatmul.bf16.gmra.mxu0 %v1539
        %v2313 = vpop.f32.mrf.mxu0
        %v2314 = vadd.f32 %v2225, %v2313
        %v2315 = vpop.f32.mrf.mxu0
        %v2316 = vadd.f32 %v2227, %v2315
        %2317 = vmatmul.bf16.gmra.mxu0 %v1542
        %v2318 = vpop.f32.mrf.mxu0
        %v2319 = vadd.f32 %v2230, %v2318
        %v2320 = vpop.f32.mrf.mxu0
        %v2321 = vadd.f32 %v2232, %v2320
        %2322 = vmatmul.bf16.gmra.mxu0 %v1545
        %v2323 = vpop.f32.mrf.mxu0
        %v2324 = vadd.f32 %v2235, %v2323
        %v2325 = vpop.f32.mrf.mxu0
        %v2326 = vadd.f32 %v2237, %v2325
        %2327 = vmatmul.bf16.gmra.mxu0 %v1548
        %v2328 = vpop.f32.mrf.mxu0
        %v2329 = vadd.f32 %v2240, %v2328
        %v2330 = vpop.f32.mrf.mxu0
        %v2331 = vadd.f32 %v2242, %v2330
        %2332 = vmatmul.bf16.gmra.mxu0 %v1551
        %v2333 = vpop.f32.mrf.mxu0
        %v2334 = vadd.f32 %v2245, %v2333
        %v2335 = vpop.f32.mrf.mxu0
        %v2336 = vadd.f32 %v2247, %v2335
        %2337 = vmatmul.bf16.gmra.mxu0 %v1554
        %v2338 = vpop.f32.mrf.mxu0
        %v2339 = vadd.f32 %v2250, %v2338
        %v2340 = vpop.f32.mrf.mxu0
        %v2341 = vadd.f32 %v2252, %v2340
        %2342 = vmatmul.bf16.gmra.mxu0 %v1557
        %v2343 = vpop.f32.mrf.mxu0
        %v2344 = vadd.f32 %v2255, %v2343
        %v2345 = vpop.f32.mrf.mxu0
        %v2346 = vadd.f32 %v2257, %v2345
        %2347 = vmatmul.bf16.gmra.mxu0 %v1560
        %v2348 = vpop.f32.mrf.mxu0
        %v2349 = vadd.f32 %v2260, %v2348
        %v2350 = vpop.f32.mrf.mxu0
        %v2351 = vadd.f32 %v2262, %v2350
        %2352 = vmatmul.bf16.gmra.mxu0 %v1563
        %v2353 = vpop.f32.mrf.mxu0
        %v2354 = vadd.f32 %v2265, %v2353
        %v2355 = vpop.f32.mrf.mxu0
        %v2356 = vadd.f32 %v2267, %v2355
        %2357 = vmatmul.bf16.gmra.mxu0 %v1566
        %v2358 = vpop.f32.mrf.mxu0
        %v2359 = vadd.f32 %v2270, %v2358
        %v2360 = vpop.f32.mrf.mxu0
        %v2361 = vadd.f32 %v2272, %v2360
        %2362 = vmatmul.bf16.gmra.mxu0 %v1569
        %v2363 = vpop.f32.mrf.mxu0
        %v2364 = vadd.f32 %v2275, %v2363
        %v2365 = vpop.f32.mrf.mxu0
        %v2366 = vadd.f32 %v2277, %v2365
        %2367 = vmatmul.bf16.gmra.mxu0 %v1572
        %v2368 = vpop.f32.mrf.mxu0
        %v2369 = vadd.f32 %v2280, %v2368
        %v2370 = vpop.f32.mrf.mxu0
        %v2371 = vadd.f32 %v2282, %v2370
        %2372 = vmatmul.bf16.gmra.mxu0 %v1575
        %v2373 = vpop.f32.mrf.mxu0
        %v2374 = vadd.f32 %v2285, %v2373
        %v2375 = vpop.f32.mrf.mxu0
        %v2376 = vadd.f32 %v2287, %v2375
        %2377 = vdwg.mxu0
        %v2378 = vmax.f32 %v1765, 0.0
        %v2379 = vmax.f32 %v2032, 0.0
        %v2380 = vmax.f32 %v2299, 0.0
        %v2381 = vmax.f32 %v1767, 0.0
        %v2382 = vmax.f32 %v2034, 0.0
        %v2383 = vmax.f32 %v2301, 0.0
        %v2384 = vmax.f32 %v1770, 0.0
        %v2385 = vmax.f32 %v2037, 0.0
        %v2386 = vmax.f32 %v2304, 0.0
        %v2387 = vmax.f32 %v1772, 0.0
        %v2388 = vmax.f32 %v2039, 0.0
        %v2389 = vmax.f32 %v2306, 0.0
        %v2390 = vmax.f32 %v1775, 0.0
        %v2391 = vmax.f32 %v2042, 0.0
        %v2392 = vmax.f32 %v2309, 0.0
        %v2393 = vmax.f32 %v1777, 0.0
        %v2394 = vmax.f32 %v2044, 0.0
        %v2395 = vmax.f32 %v2311, 0.0
        %v2396 = vmax.f32 %v1780, 0.0
        %v2397 = vmax.f32 %v2047, 0.0
        %v2398 = vmax.f32 %v2314, 0.0
        %v2399 = vmax.f32 %v1782, 0.0
        %v2400 = vmax.f32 %v2049, 0.0
        %v2401 = vmax.f32 %v2316, 0.0
        %v2402 = vmax.f32 %v1785, 0.0
        %v2403 = vmax.f32 %v2052, 0.0
        %v2404 = vmax.f32 %v2319, 0.0
        %v2405 = vmax.f32 %v1787, 0.0
        %v2406 = vmax.f32 %v2054, 0.0
        %v2407 = vmax.f32 %v2321, 0.0
        %v2408 = vmax.f32 %v1790, 0.0
        %v2409 = vmax.f32 %v2057, 0.0
        %v2410 = vmax.f32 %v2324, 0.0
        %v2411 = vmax.f32 %v1792, 0.0
        %v2412 = vmax.f32 %v2059, 0.0
        %v2413 = vmax.f32 %v2326, 0.0
        %v2414 = vmax.f32 %v1795, 0.0
        %v2415 = vmax.f32 %v2062, 0.0
        %v2416 = vmax.f32 %v2329, 0.0
        %v2417 = vmax.f32 %v1797, 0.0
        %v2418 = vmax.f32 %v2064, 0.0
        %v2419 = vmax.f32 %v2331, 0.0
        %v2420 = vmax.f32 %v1800, 0.0
        %v2421 = vmax.f32 %v2067, 0.0
        %v2422 = vmax.f32 %v2334, 0.0
        %v2423 = vmax.f32 %v1802, 0.0
        %v2424 = vmax.f32 %v2069, 0.0
        %v2425 = vmax.f32 %v2336, 0.0
        %v2426 = vmax.f32 %v1805, 0.0
        %v2427 = vmax.f32 %v2072, 0.0
        %v2428 = vmax.f32 %v2339, 0.0
        %v2429 = vmax.f32 %v1807, 0.0
        %v2430 = vmax.f32 %v2074, 0.0
        %v2431 = vmax.f32 %v2341, 0.0
        %v2432 = vmax.f32 %v1810, 0.0
        %v2433 = vmax.f32 %v2077, 0.0
        %v2434 = vmax.f32 %v2344, 0.0
        %v2435 = vmax.f32 %v1812, 0.0
        %v2436 = vmax.f32 %v2079, 0.0
        %v2437 = vmax.f32 %v2346, 0.0
        %v2438 = vmax.f32 %v1815, 0.0
        %v2439 = vmax.f32 %v2082, 0.0
        %v2440 = vmax.f32 %v2349, 0.0
        %v2441 = vmax.f32 %v1817, 0.0
        %v2442 = vmax.f32 %v2084, 0.0
        %v2443 = vmax.f32 %v2351, 0.0
        %v2444 = vmax.f32 %v1820, 0.0
        %v2445 = vmax.f32 %v2087, 0.0
        %v2446 = vmax.f32 %v2354, 0.0
        %v2447 = vmax.f32 %v1822, 0.0
        %v2448 = vmax.f32 %v2089, 0.0
        %v2449 = vmax.f32 %v2356, 0.0
        %v2450 = vmax.f32 %v1825, 0.0
        %v2451 = vmax.f32 %v2092, 0.0
        %v2452 = vmax.f32 %v2359, 0.0
        %v2453 = vmax.f32 %v1827, 0.0
        %v2454 = vmax.f32 %v2094, 0.0
        %v2455 = vmax.f32 %v2361, 0.0
        %v2456 = vmax.f32 %v1830, 0.0
        %v2457 = vmax.f32 %v2097, 0.0
        %v2458 = vmax.f32 %v2364, 0.0
        %v2459 = vmax.f32 %v1832, 0.0
        %v2460 = vmax.f32 %v2099, 0.0
        %v2461 = vmax.f32 %v2366, 0.0
        %v2462 = vmax.f32 %v1835, 0.0
        %v2463 = vmax.f32 %v2102, 0.0
        %v2464 = vmax.f32 %v2369, 0.0
        %v2465 = vmax.f32 %v1837, 0.0
        %v2466 = vmax.f32 %v2104, 0.0
        %v2467 = vmax.f32 %v2371, 0.0
        %v2468 = vmax.f32 %v1840, 0.0
        %v2469 = vmax.f32 %v2107, 0.0
        %v2470 = vmax.f32 %v2374, 0.0
        %v2471 = vmax.f32 %v1842, 0.0
        %v2472 = vmax.f32 %v2109, 0.0
        %v2473 = vmax.f32 %v2376, 0.0
        %v2474 = vpack.c.bf16 %v2381, %v2378
        %v2475 = vpack.c.bf16 %v2382, %v2379
        %v2476 = vpack.c.bf16 %v2383, %v2380
        %v2477 = vpack.c.bf16 %v2387, %v2384
        %v2478 = vpack.c.bf16 %v2388, %v2385
        %v2479 = vpack.c.bf16 %v2389, %v2386
        %v2480 = vpack.c.bf16 %v2393, %v2390
        %v2481 = vpack.c.bf16 %v2394, %v2391
        %v2482 = vpack.c.bf16 %v2395, %v2392
        %v2483 = vpack.c.bf16 %v2399, %v2396
        %v2484 = vpack.c.bf16 %v2400, %v2397
        %v2485 = vpack.c.bf16 %v2401, %v2398
        %v2486 = vpack.c.bf16 %v2405, %v2402
        %v2487 = vpack.c.bf16 %v2406, %v2403
        %v2488 = vpack.c.bf16 %v2407, %v2404
        %v2489 = vpack.c.bf16 %v2411, %v2408
        %v2490 = vpack.c.bf16 %v2412, %v2409
        %v2491 = vpack.c.bf16 %v2413, %v2410
        %v2492 = vpack.c.bf16 %v2417, %v2414
        %v2493 = vpack.c.bf16 %v2418, %v2415
        %v2494 = vpack.c.bf16 %v2419, %v2416
        %v2495 = vpack.c.bf16 %v2423, %v2420
        %v2496 = vpack.c.bf16 %v2424, %v2421
        %v2497 = vpack.c.bf16 %v2425, %v2422
        %v2498 = vpack.c.bf16 %v2429, %v2426
        %v2499 = vpack.c.bf16 %v2430, %v2427
        %v2500 = vpack.c.bf16 %v2431, %v2428
        %v2501 = vpack.c.bf16 %v2435, %v2432
        %v2502 = vpack.c.bf16 %v2436, %v2433
        %v2503 = vpack.c.bf16 %v2437, %v2434
        %v2504 = vpack.c.bf16 %v2441, %v2438
        %v2505 = vpack.c.bf16 %v2442, %v2439
        %v2506 = vpack.c.bf16 %v2443, %v2440
        %v2507 = vpack.c.bf16 %v2447, %v2444
        %v2508 = vpack.c.bf16 %v2448, %v2445
        %v2509 = vpack.c.bf16 %v2449, %v2446
        %v2510 = vpack.c.bf16 %v2453, %v2450
        %v2511 = vpack.c.bf16 %v2454, %v2451
        %v2512 = vpack.c.bf16 %v2455, %v2452
        %v2513 = vpack.c.bf16 %v2459, %v2456
        %v2514 = vpack.c.bf16 %v2460, %v2457
        %v2515 = vpack.c.bf16 %v2461, %v2458
        %v2516 = vpack.c.bf16 %v2465, %v2462
        %v2517 = vpack.c.bf16 %v2466, %v2463
        %v2518 = vpack.c.bf16 %v2467, %v2464
        %v2519 = vpack.c.bf16 %v2471, %v2468
        %v2520 = vpack.c.bf16 %v2472, %v2469
        %v2521 = vpack.c.bf16 %v2473, %v2470
        %v2522 = vld [vmem:[%s3] sm:$0xf]
        %v2523 = vld [vmem:[%s3 + $0x4] sm:$0xf]
        %v2524 = vld [vmem:[%s3 + $0x8] sm:$0xf]
        %v2525 = vld [vmem:[%s3 + $0xc] sm:$0xf]
        %v2526 = vld [vmem:[%s3 + $0x10] sm:$0xf]
        %v2527 = vld [vmem:[%s3 + $0x14] sm:$0xf]
        %v2528 = vld [vmem:[%s3 + $0x18] sm:$0xf]
        %v2529 = vld [vmem:[%s3 + $0x1c] sm:$0xf]
        %v2530 = vld [vmem:[%s3 + $0x20] sm:$0xf]
        %v2531 = vld [vmem:[%s3 + $0x24] sm:$0xf]
        %v2532 = vld [vmem:[%s3 + $0x28] sm:$0xf]
        %v2533 = vld [vmem:[%s3 + $0x2c] sm:$0xf]
        %v2534 = vld [vmem:[%s3 + $0x30] sm:$0xf]
        %v2535 = vld [vmem:[%s3 + $0x34] sm:$0xf]
        %v2536 = vld [vmem:[%s3 + $0x38] sm:$0xf]
        %v2537 = vld [vmem:[%s3 + $0x3c] sm:$0xf]
        %v2538 = vld [vmem:[%s3 + $0x40] sm:$0xf]
        %v2539 = vld [vmem:[%s3 + $0x44] sm:$0xf]
        %v2540 = vld [vmem:[%s3 + $0x48] sm:$0xf]
        %v2541 = vld [vmem:[%s3 + $0x4c] sm:$0xf]
        %v2542 = vld [vmem:[%s3 + $0x50] sm:$0xf]
        %v2543 = vld [vmem:[%s3 + $0x54] sm:$0xf]
        %v2544 = vld [vmem:[%s3 + $0x58] sm:$0xf]
        %v2545 = vld [vmem:[%s3 + $0x5c] sm:$0xf]
        %v2546 = vld [vmem:[%s3 + $0x60] sm:$0xf]
        %v2547 = vld [vmem:[%s3 + $0x64] sm:$0xf]
        %v2548 = vld [vmem:[%s3 + $0x68] sm:$0xf]
        %v2549 = vld [vmem:[%s3 + $0x6c] sm:$0xf]
        %v2550 = vld [vmem:[%s3 + $0x70] sm:$0xf]
        %v2551 = vld [vmem:[%s3 + $0x74] sm:$0xf]
        %v2552 = vld [vmem:[%s3 + $0x78] sm:$0xf]
        %v2553 = vld [vmem:[%s3 + $0x7c] sm:$0xf]
        %v2554 = vld [vmem:[%s3 + $0x80] sm:$0xf]
        %v2555 = vld [vmem:[%s3 + $0x84] sm:$0xf]
        %v2556 = vld [vmem:[%s3 + $0x88] sm:$0xf]
        %v2557 = vld [vmem:[%s3 + $0x8c] sm:$0xf]
        %v2558 = vld [vmem:[%s4] sm:$0x1]
        %v2560 = vperm.slane %v2558, 0
        %v2598 = vunpack.c.l.b16 %v2522
        %v2599 = vunpack.c.l.b16 %v2523
        %v2600 = vunpack.c.l.b16 %v2524
        %v2601 = vunpack.c.l.b16 %v2525
        %v2602 = vunpack.c.l.b16 %v2526
        %v2603 = vunpack.c.l.b16 %v2527
        %v2604 = vunpack.c.l.b16 %v2528
        %v2605 = vunpack.c.l.b16 %v2529
        %v2606 = vunpack.c.l.b16 %v2530
        %v2607 = vunpack.c.l.b16 %v2531
        %v2608 = vunpack.c.l.b16 %v2532
        %v2609 = vunpack.c.l.b16 %v2533
        %v2610 = vunpack.c.l.b16 %v2534
        %v2611 = vunpack.c.l.b16 %v2535
        %v2612 = vunpack.c.l.b16 %v2536
        %v2613 = vunpack.c.l.b16 %v2537
        %v2614 = vunpack.c.l.b16 %v2538
        %v2615 = vunpack.c.l.b16 %v2539
        %v2616 = vunpack.c.l.b16 %v2540
        %v2617 = vunpack.c.l.b16 %v2541
        %v2618 = vunpack.c.l.b16 %v2542
        %v2619 = vunpack.c.l.b16 %v2543
        %v2620 = vunpack.c.l.b16 %v2544
        %v2621 = vunpack.c.l.b16 %v2545
        %v2622 = vunpack.c.l.b16 %v2546
        %v2623 = vunpack.c.l.b16 %v2547
        %v2624 = vunpack.c.l.b16 %v2548
        %v2625 = vunpack.c.l.b16 %v2549
        %v2626 = vunpack.c.l.b16 %v2550
        %v2627 = vunpack.c.l.b16 %v2551
        %v2628 = vunpack.c.l.b16 %v2552
        %v2629 = vunpack.c.l.b16 %v2553
        %v2630 = vunpack.c.l.b16 %v2554
        %v2631 = vunpack.c.l.b16 %v2555
        %v2632 = vunpack.c.l.b16 %v2556
        %v2633 = vunpack.c.l.b16 %v2557
        %v2634 = vpack.c.b16 %v2599, %v2598
        %v2635 = vpack.c.b16 %v2601, %v2600
        %v2636 = vpack.c.b16 %v2603, %v2602
        %v2637 = vpack.c.b16 %v2605, %v2604
        %v2638 = vpack.c.b16 %v2607, %v2606
        %v2639 = vpack.c.b16 %v2609, %v2608
        %v2640 = vpack.c.b16 %v2611, %v2610
        %v2641 = vpack.c.b16 %v2613, %v2612
        %v2642 = vpack.c.b16 %v2615, %v2614
        %v2643 = vpack.c.b16 %v2617, %v2616
        %v2644 = vpack.c.b16 %v2619, %v2618
        %v2645 = vpack.c.b16 %v2621, %v2620
        %v2646 = vpack.c.b16 %v2623, %v2622
        %v2647 = vpack.c.b16 %v2625, %v2624
        %v2648 = vpack.c.b16 %v2627, %v2626
        %v2649 = vpack.c.b16 %v2629, %v2628
        %v2650 = vpack.c.b16 %v2631, %v2630
        %v2651 = vpack.c.b16 %v2633, %v2632
        %v2671 = vsel %vm918, %v2476, 0
        %v2674 = vsel %vm918, %v2479, 0
        %v2677 = vsel %vm918, %v2482, 0
        %v2680 = vsel %vm918, %v2485, 0
        %v2683 = vsel %vm918, %v2488, 0
        %v2686 = vsel %vm918, %v2491, 0
        %v2689 = vsel %vm918, %v2494, 0
        %v2692 = vsel %vm918, %v2497, 0
        %v2695 = vsel %vm918, %v2500, 0
        %v2698 = vsel %vm918, %v2503, 0
        %v2701 = vsel %vm918, %v2506, 0
        %v2704 = vsel %vm918, %v2509, 0
        %v2707 = vsel %vm918, %v2512, 0
        %v2710 = vsel %vm918, %v2515, 0
        %v2713 = vsel %vm918, %v2518, 0
        %v2716 = vsel %vm918, %v2521, 0
        %2718 = vmatpush.bf16.msra.mxu0 %v2641
        %2719 = vmatpush.bf16.msra.mxu0 %v2640
        %2720 = vmatpush.bf16.msra.mxu0 %v2639
        %2721 = vmatpush.bf16.msra.mxu0 %v2638
        %2722 = vmatpush.bf16.msra.mxu0 %v2637
        %2723 = vmatpush.bf16.msra.mxu0 %v2636
        %2724 = vmatpush.bf16.msra.mxu0 %v2635
        %2725 = vmatpush.bf16.msra.mxu0 %v2634
        %2726 = vmatmul.bf16.gmra.mxu0 %v2474
        %v2727 = vpop.f32.mrf.mxu0
        %v2728 = vadd.f32 %v2560, %v2727
        %v2729 = vpop.f32.mrf.mxu0
        %v2730 = vadd.f32 %v2560, %v2729
        %2731 = vmatmul.bf16.gmra.mxu0 %v2477
        %v2732 = vpop.f32.mrf.mxu0
        %v2733 = vadd.f32 %v2560, %v2732
        %v2734 = vpop.f32.mrf.mxu0
        %v2735 = vadd.f32 %v2560, %v2734
        %2736 = vmatmul.bf16.gmra.mxu0 %v2480
        %v2737 = vpop.f32.mrf.mxu0
        %v2738 = vadd.f32 %v2560, %v2737
        %v2739 = vpop.f32.mrf.mxu0
        %v2740 = vadd.f32 %v2560, %v2739
        %2741 = vmatmul.bf16.gmra.mxu0 %v2483
        %v2742 = vpop.f32.mrf.mxu0
        %v2743 = vadd.f32 %v2560, %v2742
        %v2744 = vpop.f32.mrf.mxu0
        %v2745 = vadd.f32 %v2560, %v2744
        %2746 = vmatmul.bf16.gmra.mxu0 %v2486
        %v2747 = vpop.f32.mrf.mxu0
        %v2748 = vadd.f32 %v2560, %v2747
        %v2749 = vpop.f32.mrf.mxu0
        %v2750 = vadd.f32 %v2560, %v2749
        %2751 = vmatmul.bf16.gmra.mxu0 %v2489
        %v2752 = vpop.f32.mrf.mxu0
        %v2753 = vadd.f32 %v2560, %v2752
        %v2754 = vpop.f32.mrf.mxu0
        %v2755 = vadd.f32 %v2560, %v2754
        %2756 = vmatmul.bf16.gmra.mxu0 %v2492
        %v2757 = vpop.f32.mrf.mxu0
        %v2758 = vadd.f32 %v2560, %v2757
        %v2759 = vpop.f32.mrf.mxu0
        %v2760 = vadd.f32 %v2560, %v2759
        %2761 = vmatmul.bf16.gmra.mxu0 %v2495
        %v2762 = vpop.f32.mrf.mxu0
        %v2763 = vadd.f32 %v2560, %v2762
        %v2764 = vpop.f32.mrf.mxu0
        %v2765 = vadd.f32 %v2560, %v2764
        %2766 = vmatmul.bf16.gmra.mxu0 %v2498
        %v2767 = vpop.f32.mrf.mxu0
        %v2768 = vadd.f32 %v2560, %v2767
        %v2769 = vpop.f32.mrf.mxu0
        %v2770 = vadd.f32 %v2560, %v2769
        %2771 = vmatmul.bf16.gmra.mxu0 %v2501
        %v2772 = vpop.f32.mrf.mxu0
        %v2773 = vadd.f32 %v2560, %v2772
        %v2774 = vpop.f32.mrf.mxu0
        %v2775 = vadd.f32 %v2560, %v2774
        %2776 = vmatmul.bf16.gmra.mxu0 %v2504
        %v2777 = vpop.f32.mrf.mxu0
        %v2778 = vadd.f32 %v2560, %v2777
        %v2779 = vpop.f32.mrf.mxu0
        %v2780 = vadd.f32 %v2560, %v2779
        %2781 = vmatmul.bf16.gmra.mxu0 %v2507
        %v2782 = vpop.f32.mrf.mxu0
        %v2783 = vadd.f32 %v2560, %v2782
        %v2784 = vpop.f32.mrf.mxu0
        %v2785 = vadd.f32 %v2560, %v2784
        %2786 = vmatmul.bf16.gmra.mxu0 %v2510
        %v2787 = vpop.f32.mrf.mxu0
        %v2788 = vadd.f32 %v2560, %v2787
        %v2789 = vpop.f32.mrf.mxu0
        %v2790 = vadd.f32 %v2560, %v2789
        %2791 = vmatmul.bf16.gmra.mxu0 %v2513
        %v2792 = vpop.f32.mrf.mxu0
        %v2793 = vadd.f32 %v2560, %v2792
        %v2794 = vpop.f32.mrf.mxu0
        %v2795 = vadd.f32 %v2560, %v2794
        %2796 = vmatmul.bf16.gmra.mxu0 %v2516
        %v2797 = vpop.f32.mrf.mxu0
        %v2798 = vadd.f32 %v2560, %v2797
        %v2799 = vpop.f32.mrf.mxu0
        %v2800 = vadd.f32 %v2560, %v2799
        %2801 = vmatmul.bf16.gmra.mxu0 %v2519
        %v2802 = vpop.f32.mrf.mxu0
        %v2803 = vadd.f32 %v2560, %v2802
        %v2804 = vpop.f32.mrf.mxu0
        %v2805 = vadd.f32 %v2560, %v2804
        %2806 = vdwg.mxu0
        %2807 = vmatpush.bf16.msra.mxu0 %v2649
        %2808 = vmatpush.bf16.msra.mxu0 %v2648
        %2809 = vmatpush.bf16.msra.mxu0 %v2647
        %2810 = vmatpush.bf16.msra.mxu0 %v2646
        %2811 = vmatpush.bf16.msra.mxu0 %v2645
        %2812 = vmatpush.bf16.msra.mxu0 %v2644
        %2813 = vmatpush.bf16.msra.mxu0 %v2643
        %2814 = vmatpush.bf16.msra.mxu0 %v2642
        %2815 = vmatmul.bf16.gmra.mxu0 %v2475
        %v2816 = vpop.f32.mrf.mxu0
        %v2817 = vadd.f32 %v2728, %v2816
        %v2818 = vpop.f32.mrf.mxu0
        %v2819 = vadd.f32 %v2730, %v2818
        %2820 = vmatmul.bf16.gmra.mxu0 %v2478
        %v2821 = vpop.f32.mrf.mxu0
        %v2822 = vadd.f32 %v2733, %v2821
        %v2823 = vpop.f32.mrf.mxu0
        %v2824 = vadd.f32 %v2735, %v2823
        %2825 = vmatmul.bf16.gmra.mxu0 %v2481
        %v2826 = vpop.f32.mrf.mxu0
        %v2827 = vadd.f32 %v2738, %v2826
        %v2828 = vpop.f32.mrf.mxu0
        %v2829 = vadd.f32 %v2740, %v2828
        %2830 = vmatmul.bf16.gmra.mxu0 %v2484
        %v2831 = vpop.f32.mrf.mxu0
        %v2832 = vadd.f32 %v2743, %v2831
        %v2833 = vpop.f32.mrf.mxu0
        %v2834 = vadd.f32 %v2745, %v2833
        %2835 = vmatmul.bf16.gmra.mxu0 %v2487
        %v2836 = vpop.f32.mrf.mxu0
        %v2837 = vadd.f32 %v2748, %v2836
        %v2838 = vpop.f32.mrf.mxu0
        %v2839 = vadd.f32 %v2750, %v2838
        %2840 = vmatmul.bf16.gmra.mxu0 %v2490
        %v2841 = vpop.f32.mrf.mxu0
        %v2842 = vadd.f32 %v2753, %v2841
        %v2843 = vpop.f32.mrf.mxu0
        %v2844 = vadd.f32 %v2755, %v2843
        %2845 = vmatmul.bf16.gmra.mxu0 %v2493
        %v2846 = vpop.f32.mrf.mxu0
        %v2847 = vadd.f32 %v2758, %v2846
        %v2848 = vpop.f32.mrf.mxu0
        %v2849 = vadd.f32 %v2760, %v2848
        %2850 = vmatmul.bf16.gmra.mxu0 %v2496
        %v2851 = vpop.f32.mrf.mxu0
        %v2852 = vadd.f32 %v2763, %v2851
        %v2853 = vpop.f32.mrf.mxu0
        %v2854 = vadd.f32 %v2765, %v2853
        %2855 = vmatmul.bf16.gmra.mxu0 %v2499
        %v2856 = vpop.f32.mrf.mxu0
        %v2857 = vadd.f32 %v2768, %v2856
        %v2858 = vpop.f32.mrf.mxu0
        %v2859 = vadd.f32 %v2770, %v2858
        %2860 = vmatmul.bf16.gmra.mxu0 %v2502
        %v2861 = vpop.f32.mrf.mxu0
        %v2862 = vadd.f32 %v2773, %v2861
        %v2863 = vpop.f32.mrf.mxu0
        %v2864 = vadd.f32 %v2775, %v2863
        %2865 = vmatmul.bf16.gmra.mxu0 %v2505
        %v2866 = vpop.f32.mrf.mxu0
        %v2867 = vadd.f32 %v2778, %v2866
        %v2868 = vpop.f32.mrf.mxu0
        %v2869 = vadd.f32 %v2780, %v2868
        %2870 = vmatmul.bf16.gmra.mxu0 %v2508
        %v2871 = vpop.f32.mrf.mxu0
        %v2872 = vadd.f32 %v2783, %v2871
        %v2873 = vpop.f32.mrf.mxu0
        %v2874 = vadd.f32 %v2785, %v2873
        %2875 = vmatmul.bf16.gmra.mxu0 %v2511
        %v2876 = vpop.f32.mrf.mxu0
        %v2877 = vadd.f32 %v2788, %v2876
        %v2878 = vpop.f32.mrf.mxu0
        %v2879 = vadd.f32 %v2790, %v2878
        %2880 = vmatmul.bf16.gmra.mxu0 %v2514
        %v2881 = vpop.f32.mrf.mxu0
        %v2882 = vadd.f32 %v2793, %v2881
        %v2883 = vpop.f32.mrf.mxu0
        %v2884 = vadd.f32 %v2795, %v2883
        %2885 = vmatmul.bf16.gmra.mxu0 %v2517
        %v2886 = vpop.f32.mrf.mxu0
        %v2887 = vadd.f32 %v2798, %v2886
        %v2888 = vpop.f32.mrf.mxu0
        %v2889 = vadd.f32 %v2800, %v2888
        %2890 = vmatmul.bf16.gmra.mxu0 %v2520
        %v2891 = vpop.f32.mrf.mxu0
        %v2892 = vadd.f32 %v2803, %v2891
        %v2893 = vpop.f32.mrf.mxu0
        %v2894 = vadd.f32 %v2805, %v2893
        %2895 = vdwg.mxu0
        %2896 = vmatpush.bf16.msra.mxu0 0
        %2897 = vmatpush.bf16.msra.mxu0 0
        %2898 = vmatpush.bf16.msra.mxu0 0
        %2899 = vmatpush.bf16.msra.mxu0 0
        %2900 = vmatpush.bf16.msra.mxu0 0
        %2901 = vmatpush.bf16.msra.mxu0 0
        %2902 = vmatpush.bf16.msra.mxu0 %v2651
        %2903 = vmatpush.bf16.msra.mxu0 %v2650
        %2904 = vmatmul.bf16.gmra.mxu0 %v2671
        %v2905 = vpop.f32.mrf.mxu0
        %v2906 = vadd.f32 %v2817, %v2905
        %v2907 = vpop.f32.mrf.mxu0
        %v2908 = vadd.f32 %v2819, %v2907
        %2909 = vmatmul.bf16.gmra.mxu0 %v2674
        %v2910 = vpop.f32.mrf.mxu0
        %v2911 = vadd.f32 %v2822, %v2910
        %v2912 = vpop.f32.mrf.mxu0
        %v2913 = vadd.f32 %v2824, %v2912
        %2914 = vmatmul.bf16.gmra.mxu0 %v2677
        %v2915 = vpop.f32.mrf.mxu0
        %v2916 = vadd.f32 %v2827, %v2915
        %v2917 = vpop.f32.mrf.mxu0
        %v2918 = vadd.f32 %v2829, %v2917
        %2919 = vmatmul.bf16.gmra.mxu0 %v2680
        %v2920 = vpop.f32.mrf.mxu0
        %v2921 = vadd.f32 %v2832, %v2920
        %v2922 = vpop.f32.mrf.mxu0
        %v2923 = vadd.f32 %v2834, %v2922
        %2924 = vmatmul.bf16.gmra.mxu0 %v2683
        %v2925 = vpop.f32.mrf.mxu0
        %v2926 = vadd.f32 %v2837, %v2925
        %v2927 = vpop.f32.mrf.mxu0
        %v2928 = vadd.f32 %v2839, %v2927
        %2929 = vmatmul.bf16.gmra.mxu0 %v2686
        %v2930 = vpop.f32.mrf.mxu0
        %v2931 = vadd.f32 %v2842, %v2930
        %v2932 = vpop.f32.mrf.mxu0
        %v2933 = vadd.f32 %v2844, %v2932
        %2934 = vmatmul.bf16.gmra.mxu0 %v2689
        %v2935 = vpop.f32.mrf.mxu0
        %v2936 = vadd.f32 %v2847, %v2935
        %v2937 = vpop.f32.mrf.mxu0
        %v2938 = vadd.f32 %v2849, %v2937
        %2939 = vmatmul.bf16.gmra.mxu0 %v2692
        %v2940 = vpop.f32.mrf.mxu0
        %v2941 = vadd.f32 %v2852, %v2940
        %v2942 = vpop.f32.mrf.mxu0
        %v2943 = vadd.f32 %v2854, %v2942
        %2944 = vmatmul.bf16.gmra.mxu0 %v2695
        %v2945 = vpop.f32.mrf.mxu0
        %v2946 = vadd.f32 %v2857, %v2945
        %v2947 = vpop.f32.mrf.mxu0
        %v2948 = vadd.f32 %v2859, %v2947
        %2949 = vmatmul.bf16.gmra.mxu0 %v2698
        %v2950 = vpop.f32.mrf.mxu0
        %v2951 = vadd.f32 %v2862, %v2950
        %v2952 = vpop.f32.mrf.mxu0
        %v2953 = vadd.f32 %v2864, %v2952
        %2954 = vmatmul.bf16.gmra.mxu0 %v2701
        %v2955 = vpop.f32.mrf.mxu0
        %v2956 = vadd.f32 %v2867, %v2955
        %v2957 = vpop.f32.mrf.mxu0
        %v2958 = vadd.f32 %v2869, %v2957
        %2959 = vmatmul.bf16.gmra.mxu0 %v2704
        %v2960 = vpop.f32.mrf.mxu0
        %v2961 = vadd.f32 %v2872, %v2960
        %v2962 = vpop.f32.mrf.mxu0
        %v2963 = vadd.f32 %v2874, %v2962
        %2964 = vmatmul.bf16.gmra.mxu0 %v2707
        %v2965 = vpop.f32.mrf.mxu0
        %v2966 = vadd.f32 %v2877, %v2965
        %v2967 = vpop.f32.mrf.mxu0
        %v2968 = vadd.f32 %v2879, %v2967
        %2969 = vmatmul.bf16.gmra.mxu0 %v2710
        %v2970 = vpop.f32.mrf.mxu0
        %v2971 = vadd.f32 %v2882, %v2970
        %v2972 = vpop.f32.mrf.mxu0
        %v2973 = vadd.f32 %v2884, %v2972
        %2974 = vmatmul.bf16.gmra.mxu0 %v2713
        %v2975 = vpop.f32.mrf.mxu0
        %v2976 = vadd.f32 %v2887, %v2975
        %v2977 = vpop.f32.mrf.mxu0
        %v2978 = vadd.f32 %v2889, %v2977
        %2979 = vmatmul.bf16.gmra.mxu0 %v2716
        %v2980 = vpop.f32.mrf.mxu0
        %v2981 = vadd.f32 %v2892, %v2980
        %v2982 = vpop.f32.mrf.mxu0
        %v2983 = vadd.f32 %v2894, %v2982
        %2984 = vdwg.mxu0
        %v2985 = vlaneseq
        %v2986 = vand.u32 %v2985, 127
        %vm2987 = vcmp.lt.s32.totalorder %v2986, 4
        %v2988 = vxor.u32 %v2906, 2147483648
        %v2989 = vxor.u32 %v2908, 2147483648
        %v2990 = vxor.u32 %v2911, 2147483648
        %v2991 = vxor.u32 %v2913, 2147483648
        %v2992 = vxor.u32 %v2916, 2147483648
        %v2993 = vxor.u32 %v2918, 2147483648
        %v2994 = vxor.u32 %v2921, 2147483648
        %v2995 = vxor.u32 %v2923, 2147483648
        %v2996 = vxor.u32 %v2926, 2147483648
        %v2997 = vxor.u32 %v2928, 2147483648
        %v2998 = vxor.u32 %v2931, 2147483648
        %v2999 = vxor.u32 %v2933, 2147483648
        %v3000 = vxor.u32 %v2936, 2147483648
        %v3001 = vxor.u32 %v2938, 2147483648
        %v3002 = vxor.u32 %v2941, 2147483648
        %v3003 = vxor.u32 %v2943, 2147483648
        %v3004 = vxor.u32 %v2946, 2147483648
        %v3005 = vxor.u32 %v2948, 2147483648
        %v3006 = vxor.u32 %v2951, 2147483648
        %v3007 = vxor.u32 %v2953, 2147483648
        %v3008 = vxor.u32 %v2956, 2147483648
        %v3009 = vxor.u32 %v2958, 2147483648
        %v3010 = vxor.u32 %v2961, 2147483648
        %v3011 = vxor.u32 %v2963, 2147483648
        %v3012 = vxor.u32 %v2966, 2147483648
        %v3013 = vxor.u32 %v2968, 2147483648
        %v3014 = vxor.u32 %v2971, 2147483648
        %v3015 = vxor.u32 %v2973, 2147483648
        %v3016 = vxor.u32 %v2976, 2147483648
        %v3017 = vxor.u32 %v2978, 2147483648
        %v3018 = vxor.u32 %v2981, 2147483648
        %v3019 = vxor.u32 %v2983, 2147483648
        %v3020 = vmul.f32 %v2988, 1.442695
        %v3021 = vpow.pop %v3020
        %v3022 = vmul.f32 %v2989, 1.442695
        %v3023 = vpow.pop %v3022
        %v3024 = vmul.f32 %v2990, 1.442695
        %v3025 = vpow.pop %v3024
        %v3026 = vmul.f32 %v2991, 1.442695
        %v3027 = vpow.pop %v3026
        %v3028 = vmul.f32 %v2992, 1.442695
        %v3029 = vpow.pop %v3028
        %v3030 = vmul.f32 %v2993, 1.442695
        %v3031 = vpow.pop %v3030
        %v3032 = vmul.f32 %v2994, 1.442695
        %v3033 = vpow.pop %v3032
        %v3034 = vmul.f32 %v2995, 1.442695
        %v3035 = vpow.pop %v3034
        %v3036 = vmul.f32 %v2996, 1.442695
        %v3037 = vpow.pop %v3036
        %v3038 = vmul.f32 %v2997, 1.442695
        %v3039 = vpow.pop %v3038
        %v3040 = vmul.f32 %v2998, 1.442695
        %v3041 = vpow.pop %v3040
        %v3042 = vmul.f32 %v2999, 1.442695
        %v3043 = vpow.pop %v3042
        %v3044 = vmul.f32 %v3000, 1.442695
        %v3045 = vpow.pop %v3044
        %v3046 = vmul.f32 %v3001, 1.442695
        %v3047 = vpow.pop %v3046
        %v3048 = vmul.f32 %v3002, 1.442695
        %v3049 = vpow.pop %v3048
        %v3050 = vmul.f32 %v3003, 1.442695
        %v3051 = vpow.pop %v3050
        %v3052 = vmul.f32 %v3004, 1.442695
        %v3053 = vpow.pop %v3052
        %v3054 = vmul.f32 %v3005, 1.442695
        %v3055 = vpow.pop %v3054
        %v3056 = vmul.f32 %v3006, 1.442695
        %v3057 = vpow.pop %v3056
        %v3058 = vmul.f32 %v3007, 1.442695
        %v3059 = vpow.pop %v3058
        %v3060 = vmul.f32 %v3008, 1.442695
        %v3061 = vpow.pop %v3060
        %v3062 = vmul.f32 %v3009, 1.442695
        %v3063 = vpow.pop %v3062
        %v3064 = vmul.f32 %v3010, 1.442695
        %v3065 = vpow.pop %v3064
        %v3066 = vmul.f32 %v3011, 1.442695
        %v3067 = vpow.pop %v3066
        %v3068 = vmul.f32 %v3012, 1.442695
        %v3069 = vpow.pop %v3068
        %v3070 = vmul.f32 %v3013, 1.442695
        %v3071 = vpow.pop %v3070
        %v3072 = vmul.f32 %v3014, 1.442695
        %v3073 = vpow.pop %v3072
        %v3074 = vmul.f32 %v3015, 1.442695
        %v3075 = vpow.pop %v3074
        %v3076 = vmul.f32 %v3016, 1.442695
        %v3077 = vpow.pop %v3076
        %v3078 = vmul.f32 %v3017, 1.442695
        %v3079 = vpow.pop %v3078
        %v3080 = vmul.f32 %v3018, 1.442695
        %v3081 = vpow.pop %v3080
        %v3082 = vmul.f32 %v3019, 1.442695
        %v3083 = vpow.pop %v3082
        %v3084 = vadd.f32 %v3021, 1.0
        %v3085 = vadd.f32 %v3023, 1.0
        %v3086 = vadd.f32 %v3025, 1.0
        %v3087 = vadd.f32 %v3027, 1.0
        %v3088 = vadd.f32 %v3029, 1.0
        %v3089 = vadd.f32 %v3031, 1.0
        %v3090 = vadd.f32 %v3033, 1.0
        %v3091 = vadd.f32 %v3035, 1.0
        %v3092 = vadd.f32 %v3037, 1.0
        %v3093 = vadd.f32 %v3039, 1.0
        %v3094 = vadd.f32 %v3041, 1.0
        %v3095 = vadd.f32 %v3043, 1.0
        %v3096 = vadd.f32 %v3045, 1.0
        %v3097 = vadd.f32 %v3047, 1.0
        %v3098 = vadd.f32 %v3049, 1.0
        %v3099 = vadd.f32 %v3051, 1.0
        %v3100 = vadd.f32 %v3053, 1.0
        %v3101 = vadd.f32 %v3055, 1.0
        %v3102 = vadd.f32 %v3057, 1.0
        %v3103 = vadd.f32 %v3059, 1.0
        %v3104 = vadd.f32 %v3061, 1.0
        %v3105 = vadd.f32 %v3063, 1.0
        %v3106 = vadd.f32 %v3065, 1.0
        %v3107 = vadd.f32 %v3067, 1.0
        %v3108 = vadd.f32 %v3069, 1.0
        %v3109 = vadd.f32 %v3071, 1.0
        %v3110 = vadd.f32 %v3073, 1.0
        %v3111 = vadd.f32 %v3075, 1.0
        %v3112 = vadd.f32 %v3077, 1.0
        %v3113 = vadd.f32 %v3079, 1.0
        %v3114 = vadd.f32 %v3081, 1.0
        %v3115 = vadd.f32 %v3083, 1.0
        %v3116 = vrcp.pop %v3084
        %v3117 = vmul.f32 %v3084, %v3116
        %v3118 = vsub.f32 1.0, %v3117
        %v3119 = vmul.f32 %v3116, %v3118
        %v3120 = vadd.f32 %v3116, %v3119
        %vm3121 = vweird.f32 %v3084
        %vm3122 = vweird.f32 %v3116
        %vm3123 = vmor %vm3121, %vm3122
        %v3124 = vsel %vm3123, %v3116, %v3120
        %v3125 = vand.u32 2147483647, %v3084
        %vm3126 = vcmp.eq.f32.partialorder %v3125, 8.507059e+37
        %v3127 = vand.u32 %v3084, 2147483648
        %v3128 = vor.u32 1.1754944e-38, %v3127
        %v3129 = vsel %vm3126, %v3128, %v3124
        %v3130 = vmul.f32 1.0, %v3129
        %v3131 = vrcp.pop %v3085
        %v3132 = vmul.f32 %v3085, %v3131
        %v3133 = vsub.f32 1.0, %v3132
        %v3134 = vmul.f32 %v3131, %v3133
        %v3135 = vadd.f32 %v3131, %v3134
        %vm3136 = vweird.f32 %v3085
        %vm3137 = vweird.f32 %v3131
        %vm3138 = vmor %vm3136, %vm3137
        %v3139 = vsel %vm3138, %v3131, %v3135
        %v3140 = vand.u32 2147483647, %v3085
        %vm3141 = vcmp.eq.f32.partialorder %v3140, 8.507059e+37
        %v3142 = vand.u32 %v3085, 2147483648
        %v3143 = vor.u32 1.1754944e-38, %v3142
        %v3144 = vsel %vm3141, %v3143, %v3139
        %v3145 = vmul.f32 1.0, %v3144
        %v3146 = vrcp.pop %v3086
        %v3147 = vmul.f32 %v3086, %v3146
        %v3148 = vsub.f32 1.0, %v3147
        %v3149 = vmul.f32 %v3146, %v3148
        %v3150 = vadd.f32 %v3146, %v3149
        %vm3151 = vweird.f32 %v3086
        %vm3152 = vweird.f32 %v3146
        %vm3153 = vmor %vm3151, %vm3152
        %v3154 = vsel %vm3153, %v3146, %v3150
        %v3155 = vand.u32 2147483647, %v3086
        %vm3156 = vcmp.eq.f32.partialorder %v3155, 8.507059e+37
        %v3157 = vand.u32 %v3086, 2147483648
        %v3158 = vor.u32 1.1754944e-38, %v3157
        %v3159 = vsel %vm3156, %v3158, %v3154
        %v3160 = vmul.f32 1.0, %v3159
        %v3161 = vrcp.pop %v3087
        %v3162 = vmul.f32 %v3087, %v3161
        %v3163 = vsub.f32 1.0, %v3162
        %v3164 = vmul.f32 %v3161, %v3163
        %v3165 = vadd.f32 %v3161, %v3164
        %vm3166 = vweird.f32 %v3087
        %vm3167 = vweird.f32 %v3161
        %vm3168 = vmor %vm3166, %vm3167
        %v3169 = vsel %vm3168, %v3161, %v3165
        %v3170 = vand.u32 2147483647, %v3087
        %vm3171 = vcmp.eq.f32.partialorder %v3170, 8.507059e+37
        %v3172 = vand.u32 %v3087, 2147483648
        %v3173 = vor.u32 1.1754944e-38, %v3172
        %v3174 = vsel %vm3171, %v3173, %v3169
        %v3175 = vmul.f32 1.0, %v3174
        %v3176 = vrcp.pop %v3088
        %v3177 = vmul.f32 %v3088, %v3176
        %v3178 = vsub.f32 1.0, %v3177
        %v3179 = vmul.f32 %v3176, %v3178
        %v3180 = vadd.f32 %v3176, %v3179
        %vm3181 = vweird.f32 %v3088
        %vm3182 = vweird.f32 %v3176
        %vm3183 = vmor %vm3181, %vm3182
        %v3184 = vsel %vm3183, %v3176, %v3180
        %v3185 = vand.u32 2147483647, %v3088
        %vm3186 = vcmp.eq.f32.partialorder %v3185, 8.507059e+37
        %v3187 = vand.u32 %v3088, 2147483648
        %v3188 = vor.u32 1.1754944e-38, %v3187
        %v3189 = vsel %vm3186, %v3188, %v3184
        %v3190 = vmul.f32 1.0, %v3189
        %v3191 = vrcp.pop %v3089
        %v3192 = vmul.f32 %v3089, %v3191
        %v3193 = vsub.f32 1.0, %v3192
        %v3194 = vmul.f32 %v3191, %v3193
        %v3195 = vadd.f32 %v3191, %v3194
        %vm3196 = vweird.f32 %v3089
        %vm3197 = vweird.f32 %v3191
        %vm3198 = vmor %vm3196, %vm3197
        %v3199 = vsel %vm3198, %v3191, %v3195
        %v3200 = vand.u32 2147483647, %v3089
        %vm3201 = vcmp.eq.f32.partialorder %v3200, 8.507059e+37
        %v3202 = vand.u32 %v3089, 2147483648
        %v3203 = vor.u32 1.1754944e-38, %v3202
        %v3204 = vsel %vm3201, %v3203, %v3199
        %v3205 = vmul.f32 1.0, %v3204
        %v3206 = vrcp.pop %v3090
        %v3207 = vmul.f32 %v3090, %v3206
        %v3208 = vsub.f32 1.0, %v3207
        %v3209 = vmul.f32 %v3206, %v3208
        %v3210 = vadd.f32 %v3206, %v3209
        %vm3211 = vweird.f32 %v3090
        %vm3212 = vweird.f32 %v3206
        %vm3213 = vmor %vm3211, %vm3212
        %v3214 = vsel %vm3213, %v3206, %v3210
        %v3215 = vand.u32 2147483647, %v3090
        %vm3216 = vcmp.eq.f32.partialorder %v3215, 8.507059e+37
        %v3217 = vand.u32 %v3090, 2147483648
        %v3218 = vor.u32 1.1754944e-38, %v3217
        %v3219 = vsel %vm3216, %v3218, %v3214
        %v3220 = vmul.f32 1.0, %v3219
        %v3221 = vrcp.pop %v3091
        %v3222 = vmul.f32 %v3091, %v3221
        %v3223 = vsub.f32 1.0, %v3222
        %v3224 = vmul.f32 %v3221, %v3223
        %v3225 = vadd.f32 %v3221, %v3224
        %vm3226 = vweird.f32 %v3091
        %vm3227 = vweird.f32 %v3221
        %vm3228 = vmor %vm3226, %vm3227
        %v3229 = vsel %vm3228, %v3221, %v3225
        %v3230 = vand.u32 2147483647, %v3091
        %vm3231 = vcmp.eq.f32.partialorder %v3230, 8.507059e+37
        %v3232 = vand.u32 %v3091, 2147483648
        %v3233 = vor.u32 1.1754944e-38, %v3232
        %v3234 = vsel %vm3231, %v3233, %v3229
        %v3235 = vmul.f32 1.0, %v3234
        %v3236 = vrcp.pop %v3092
        %v3237 = vmul.f32 %v3092, %v3236
        %v3238 = vsub.f32 1.0, %v3237
        %v3239 = vmul.f32 %v3236, %v3238
        %v3240 = vadd.f32 %v3236, %v3239
        %vm3241 = vweird.f32 %v3092
        %vm3242 = vweird.f32 %v3236
        %vm3243 = vmor %vm3241, %vm3242
        %v3244 = vsel %vm3243, %v3236, %v3240
        %v3245 = vand.u32 2147483647, %v3092
        %vm3246 = vcmp.eq.f32.partialorder %v3245, 8.507059e+37
        %v3247 = vand.u32 %v3092, 2147483648
        %v3248 = vor.u32 1.1754944e-38, %v3247
        %v3249 = vsel %vm3246, %v3248, %v3244
        %v3250 = vmul.f32 1.0, %v3249
        %v3251 = vrcp.pop %v3093
        %v3252 = vmul.f32 %v3093, %v3251
        %v3253 = vsub.f32 1.0, %v3252
        %v3254 = vmul.f32 %v3251, %v3253
        %v3255 = vadd.f32 %v3251, %v3254
        %vm3256 = vweird.f32 %v3093
        %vm3257 = vweird.f32 %v3251
        %vm3258 = vmor %vm3256, %vm3257
        %v3259 = vsel %vm3258, %v3251, %v3255
        %v3260 = vand.u32 2147483647, %v3093
        %vm3261 = vcmp.eq.f32.partialorder %v3260, 8.507059e+37
        %v3262 = vand.u32 %v3093, 2147483648
        %v3263 = vor.u32 1.1754944e-38, %v3262
        %v3264 = vsel %vm3261, %v3263, %v3259
        %v3265 = vmul.f32 1.0, %v3264
        %v3266 = vrcp.pop %v3094
        %v3267 = vmul.f32 %v3094, %v3266
        %v3268 = vsub.f32 1.0, %v3267
        %v3269 = vmul.f32 %v3266, %v3268
        %v3270 = vadd.f32 %v3266, %v3269
        %vm3271 = vweird.f32 %v3094
        %vm3272 = vweird.f32 %v3266
        %vm3273 = vmor %vm3271, %vm3272
        %v3274 = vsel %vm3273, %v3266, %v3270
        %v3275 = vand.u32 2147483647, %v3094
        %vm3276 = vcmp.eq.f32.partialorder %v3275, 8.507059e+37
        %v3277 = vand.u32 %v3094, 2147483648
        %v3278 = vor.u32 1.1754944e-38, %v3277
        %v3279 = vsel %vm3276, %v3278, %v3274
        %v3280 = vmul.f32 1.0, %v3279
        %v3281 = vrcp.pop %v3095
        %v3282 = vmul.f32 %v3095, %v3281
        %v3283 = vsub.f32 1.0, %v3282
        %v3284 = vmul.f32 %v3281, %v3283
        %v3285 = vadd.f32 %v3281, %v3284
        %vm3286 = vweird.f32 %v3095
        %vm3287 = vweird.f32 %v3281
        %vm3288 = vmor %vm3286, %vm3287
        %v3289 = vsel %vm3288, %v3281, %v3285
        %v3290 = vand.u32 2147483647, %v3095
        %vm3291 = vcmp.eq.f32.partialorder %v3290, 8.507059e+37
        %v3292 = vand.u32 %v3095, 2147483648
        %v3293 = vor.u32 1.1754944e-38, %v3292
        %v3294 = vsel %vm3291, %v3293, %v3289
        %v3295 = vmul.f32 1.0, %v3294
        %v3296 = vrcp.pop %v3096
        %v3297 = vmul.f32 %v3096, %v3296
        %v3298 = vsub.f32 1.0, %v3297
        %v3299 = vmul.f32 %v3296, %v3298
        %v3300 = vadd.f32 %v3296, %v3299
        %vm3301 = vweird.f32 %v3096
        %vm3302 = vweird.f32 %v3296
        %vm3303 = vmor %vm3301, %vm3302
        %v3304 = vsel %vm3303, %v3296, %v3300
        %v3305 = vand.u32 2147483647, %v3096
        %vm3306 = vcmp.eq.f32.partialorder %v3305, 8.507059e+37
        %v3307 = vand.u32 %v3096, 2147483648
        %v3308 = vor.u32 1.1754944e-38, %v3307
        %v3309 = vsel %vm3306, %v3308, %v3304
        %v3310 = vmul.f32 1.0, %v3309
        %v3311 = vrcp.pop %v3097
        %v3312 = vmul.f32 %v3097, %v3311
        %v3313 = vsub.f32 1.0, %v3312
        %v3314 = vmul.f32 %v3311, %v3313
        %v3315 = vadd.f32 %v3311, %v3314
        %vm3316 = vweird.f32 %v3097
        %vm3317 = vweird.f32 %v3311
        %vm3318 = vmor %vm3316, %vm3317
        %v3319 = vsel %vm3318, %v3311, %v3315
        %v3320 = vand.u32 2147483647, %v3097
        %vm3321 = vcmp.eq.f32.partialorder %v3320, 8.507059e+37
        %v3322 = vand.u32 %v3097, 2147483648
        %v3323 = vor.u32 1.1754944e-38, %v3322
        %v3324 = vsel %vm3321, %v3323, %v3319
        %v3325 = vmul.f32 1.0, %v3324
        %v3326 = vrcp.pop %v3098
        %v3327 = vmul.f32 %v3098, %v3326
        %v3328 = vsub.f32 1.0, %v3327
        %v3329 = vmul.f32 %v3326, %v3328
        %v3330 = vadd.f32 %v3326, %v3329
        %vm3331 = vweird.f32 %v3098
        %vm3332 = vweird.f32 %v3326
        %vm3333 = vmor %vm3331, %vm3332
        %v3334 = vsel %vm3333, %v3326, %v3330
        %v3335 = vand.u32 2147483647, %v3098
        %vm3336 = vcmp.eq.f32.partialorder %v3335, 8.507059e+37
        %v3337 = vand.u32 %v3098, 2147483648
        %v3338 = vor.u32 1.1754944e-38, %v3337
        %v3339 = vsel %vm3336, %v3338, %v3334
        %v3340 = vmul.f32 1.0, %v3339
        %v3341 = vrcp.pop %v3099
        %v3342 = vmul.f32 %v3099, %v3341
        %v3343 = vsub.f32 1.0, %v3342
        %v3344 = vmul.f32 %v3341, %v3343
        %v3345 = vadd.f32 %v3341, %v3344
        %vm3346 = vweird.f32 %v3099
        %vm3347 = vweird.f32 %v3341
        %vm3348 = vmor %vm3346, %vm3347
        %v3349 = vsel %vm3348, %v3341, %v3345
        %v3350 = vand.u32 2147483647, %v3099
        %vm3351 = vcmp.eq.f32.partialorder %v3350, 8.507059e+37
        %v3352 = vand.u32 %v3099, 2147483648
        %v3353 = vor.u32 1.1754944e-38, %v3352
        %v3354 = vsel %vm3351, %v3353, %v3349
        %v3355 = vmul.f32 1.0, %v3354
        %v3356 = vrcp.pop %v3100
        %v3357 = vmul.f32 %v3100, %v3356
        %v3358 = vsub.f32 1.0, %v3357
        %v3359 = vmul.f32 %v3356, %v3358
        %v3360 = vadd.f32 %v3356, %v3359
        %vm3361 = vweird.f32 %v3100
        %vm3362 = vweird.f32 %v3356
        %vm3363 = vmor %vm3361, %vm3362
        %v3364 = vsel %vm3363, %v3356, %v3360
        %v3365 = vand.u32 2147483647, %v3100
        %vm3366 = vcmp.eq.f32.partialorder %v3365, 8.507059e+37
        %v3367 = vand.u32 %v3100, 2147483648
        %v3368 = vor.u32 1.1754944e-38, %v3367
        %v3369 = vsel %vm3366, %v3368, %v3364
        %v3370 = vmul.f32 1.0, %v3369
        %v3371 = vrcp.pop %v3101
        %v3372 = vmul.f32 %v3101, %v3371
        %v3373 = vsub.f32 1.0, %v3372
        %v3374 = vmul.f32 %v3371, %v3373
        %v3375 = vadd.f32 %v3371, %v3374
        %vm3376 = vweird.f32 %v3101
        %vm3377 = vweird.f32 %v3371
        %vm3378 = vmor %vm3376, %vm3377
        %v3379 = vsel %vm3378, %v3371, %v3375
        %v3380 = vand.u32 2147483647, %v3101
        %vm3381 = vcmp.eq.f32.partialorder %v3380, 8.507059e+37
        %v3382 = vand.u32 %v3101, 2147483648
        %v3383 = vor.u32 1.1754944e-38, %v3382
        %v3384 = vsel %vm3381, %v3383, %v3379
        %v3385 = vmul.f32 1.0, %v3384
        %v3386 = vrcp.pop %v3102
        %v3387 = vmul.f32 %v3102, %v3386
        %v3388 = vsub.f32 1.0, %v3387
        %v3389 = vmul.f32 %v3386, %v3388
        %v3390 = vadd.f32 %v3386, %v3389
        %vm3391 = vweird.f32 %v3102
        %vm3392 = vweird.f32 %v3386
        %vm3393 = vmor %vm3391, %vm3392
        %v3394 = vsel %vm3393, %v3386, %v3390
        %v3395 = vand.u32 2147483647, %v3102
        %vm3396 = vcmp.eq.f32.partialorder %v3395, 8.507059e+37
        %v3397 = vand.u32 %v3102, 2147483648
        %v3398 = vor.u32 1.1754944e-38, %v3397
        %v3399 = vsel %vm3396, %v3398, %v3394
        %v3400 = vmul.f32 1.0, %v3399
        %v3401 = vrcp.pop %v3103
        %v3402 = vmul.f32 %v3103, %v3401
        %v3403 = vsub.f32 1.0, %v3402
        %v3404 = vmul.f32 %v3401, %v3403
        %v3405 = vadd.f32 %v3401, %v3404
        %vm3406 = vweird.f32 %v3103
        %vm3407 = vweird.f32 %v3401
        %vm3408 = vmor %vm3406, %vm3407
        %v3409 = vsel %vm3408, %v3401, %v3405
        %v3410 = vand.u32 2147483647, %v3103
        %vm3411 = vcmp.eq.f32.partialorder %v3410, 8.507059e+37
        %v3412 = vand.u32 %v3103, 2147483648
        %v3413 = vor.u32 1.1754944e-38, %v3412
        %v3414 = vsel %vm3411, %v3413, %v3409
        %v3415 = vmul.f32 1.0, %v3414
        %v3416 = vrcp.pop %v3104
        %v3417 = vmul.f32 %v3104, %v3416
        %v3418 = vsub.f32 1.0, %v3417
        %v3419 = vmul.f32 %v3416, %v3418
        %v3420 = vadd.f32 %v3416, %v3419
        %vm3421 = vweird.f32 %v3104
        %vm3422 = vweird.f32 %v3416
        %vm3423 = vmor %vm3421, %vm3422
        %v3424 = vsel %vm3423, %v3416, %v3420
        %v3425 = vand.u32 2147483647, %v3104
        %vm3426 = vcmp.eq.f32.partialorder %v3425, 8.507059e+37
        %v3427 = vand.u32 %v3104, 2147483648
        %v3428 = vor.u32 1.1754944e-38, %v3427
        %v3429 = vsel %vm3426, %v3428, %v3424
        %v3430 = vmul.f32 1.0, %v3429
        %v3431 = vrcp.pop %v3105
        %v3432 = vmul.f32 %v3105, %v3431
        %v3433 = vsub.f32 1.0, %v3432
        %v3434 = vmul.f32 %v3431, %v3433
        %v3435 = vadd.f32 %v3431, %v3434
        %vm3436 = vweird.f32 %v3105
        %vm3437 = vweird.f32 %v3431
        %vm3438 = vmor %vm3436, %vm3437
        %v3439 = vsel %vm3438, %v3431, %v3435
        %v3440 = vand.u32 2147483647, %v3105
        %vm3441 = vcmp.eq.f32.partialorder %v3440, 8.507059e+37
        %v3442 = vand.u32 %v3105, 2147483648
        %v3443 = vor.u32 1.1754944e-38, %v3442
        %v3444 = vsel %vm3441, %v3443, %v3439
        %v3445 = vmul.f32 1.0, %v3444
        %v3446 = vrcp.pop %v3106
        %v3447 = vmul.f32 %v3106, %v3446
        %v3448 = vsub.f32 1.0, %v3447
        %v3449 = vmul.f32 %v3446, %v3448
        %v3450 = vadd.f32 %v3446, %v3449
        %vm3451 = vweird.f32 %v3106
        %vm3452 = vweird.f32 %v3446
        %vm3453 = vmor %vm3451, %vm3452
        %v3454 = vsel %vm3453, %v3446, %v3450
        %v3455 = vand.u32 2147483647, %v3106
        %vm3456 = vcmp.eq.f32.partialorder %v3455, 8.507059e+37
        %v3457 = vand.u32 %v3106, 2147483648
        %v3458 = vor.u32 1.1754944e-38, %v3457
        %v3459 = vsel %vm3456, %v3458, %v3454
        %v3460 = vmul.f32 1.0, %v3459
        %v3461 = vrcp.pop %v3107
        %v3462 = vmul.f32 %v3107, %v3461
        %v3463 = vsub.f32 1.0, %v3462
        %v3464 = vmul.f32 %v3461, %v3463
        %v3465 = vadd.f32 %v3461, %v3464
        %vm3466 = vweird.f32 %v3107
        %vm3467 = vweird.f32 %v3461
        %vm3468 = vmor %vm3466, %vm3467
        %v3469 = vsel %vm3468, %v3461, %v3465
        %v3470 = vand.u32 2147483647, %v3107
        %vm3471 = vcmp.eq.f32.partialorder %v3470, 8.507059e+37
        %v3472 = vand.u32 %v3107, 2147483648
        %v3473 = vor.u32 1.1754944e-38, %v3472
        %v3474 = vsel %vm3471, %v3473, %v3469
        %v3475 = vmul.f32 1.0, %v3474
        %v3476 = vrcp.pop %v3108
        %v3477 = vmul.f32 %v3108, %v3476
        %v3478 = vsub.f32 1.0, %v3477
        %v3479 = vmul.f32 %v3476, %v3478
        %v3480 = vadd.f32 %v3476, %v3479
        %vm3481 = vweird.f32 %v3108
        %vm3482 = vweird.f32 %v3476
        %vm3483 = vmor %vm3481, %vm3482
        %v3484 = vsel %vm3483, %v3476, %v3480
        %v3485 = vand.u32 2147483647, %v3108
        %vm3486 = vcmp.eq.f32.partialorder %v3485, 8.507059e+37
        %v3487 = vand.u32 %v3108, 2147483648
        %v3488 = vor.u32 1.1754944e-38, %v3487
        %v3489 = vsel %vm3486, %v3488, %v3484
        %v3490 = vmul.f32 1.0, %v3489
        %v3491 = vrcp.pop %v3109
        %v3492 = vmul.f32 %v3109, %v3491
        %v3493 = vsub.f32 1.0, %v3492
        %v3494 = vmul.f32 %v3491, %v3493
        %v3495 = vadd.f32 %v3491, %v3494
        %vm3496 = vweird.f32 %v3109
        %vm3497 = vweird.f32 %v3491
        %vm3498 = vmor %vm3496, %vm3497
        %v3499 = vsel %vm3498, %v3491, %v3495
        %v3500 = vand.u32 2147483647, %v3109
        %vm3501 = vcmp.eq.f32.partialorder %v3500, 8.507059e+37
        %v3502 = vand.u32 %v3109, 2147483648
        %v3503 = vor.u32 1.1754944e-38, %v3502
        %v3504 = vsel %vm3501, %v3503, %v3499
        %v3505 = vmul.f32 1.0, %v3504
        %v3506 = vrcp.pop %v3110
        %v3507 = vmul.f32 %v3110, %v3506
        %v3508 = vsub.f32 1.0, %v3507
        %v3509 = vmul.f32 %v3506, %v3508
        %v3510 = vadd.f32 %v3506, %v3509
        %vm3511 = vweird.f32 %v3110
        %vm3512 = vweird.f32 %v3506
        %vm3513 = vmor %vm3511, %vm3512
        %v3514 = vsel %vm3513, %v3506, %v3510
        %v3515 = vand.u32 2147483647, %v3110
        %vm3516 = vcmp.eq.f32.partialorder %v3515, 8.507059e+37
        %v3517 = vand.u32 %v3110, 2147483648
        %v3518 = vor.u32 1.1754944e-38, %v3517
        %v3519 = vsel %vm3516, %v3518, %v3514
        %v3520 = vmul.f32 1.0, %v3519
        %v3521 = vrcp.pop %v3111
        %v3522 = vmul.f32 %v3111, %v3521
        %v3523 = vsub.f32 1.0, %v3522
        %v3524 = vmul.f32 %v3521, %v3523
        %v3525 = vadd.f32 %v3521, %v3524
        %vm3526 = vweird.f32 %v3111
        %vm3527 = vweird.f32 %v3521
        %vm3528 = vmor %vm3526, %vm3527
        %v3529 = vsel %vm3528, %v3521, %v3525
        %v3530 = vand.u32 2147483647, %v3111
        %vm3531 = vcmp.eq.f32.partialorder %v3530, 8.507059e+37
        %v3532 = vand.u32 %v3111, 2147483648
        %v3533 = vor.u32 1.1754944e-38, %v3532
        %v3534 = vsel %vm3531, %v3533, %v3529
        %v3535 = vmul.f32 1.0, %v3534
        %v3536 = vrcp.pop %v3112
        %v3537 = vmul.f32 %v3112, %v3536
        %v3538 = vsub.f32 1.0, %v3537
        %v3539 = vmul.f32 %v3536, %v3538
        %v3540 = vadd.f32 %v3536, %v3539
        %vm3541 = vweird.f32 %v3112
        %vm3542 = vweird.f32 %v3536
        %vm3543 = vmor %vm3541, %vm3542
        %v3544 = vsel %vm3543, %v3536, %v3540
        %v3545 = vand.u32 2147483647, %v3112
        %vm3546 = vcmp.eq.f32.partialorder %v3545, 8.507059e+37
        %v3547 = vand.u32 %v3112, 2147483648
        %v3548 = vor.u32 1.1754944e-38, %v3547
        %v3549 = vsel %vm3546, %v3548, %v3544
        %v3550 = vmul.f32 1.0, %v3549
        %v3551 = vrcp.pop %v3113
        %v3552 = vmul.f32 %v3113, %v3551
        %v3553 = vsub.f32 1.0, %v3552
        %v3554 = vmul.f32 %v3551, %v3553
        %v3555 = vadd.f32 %v3551, %v3554
        %vm3556 = vweird.f32 %v3113
        %vm3557 = vweird.f32 %v3551
        %vm3558 = vmor %vm3556, %vm3557
        %v3559 = vsel %vm3558, %v3551, %v3555
        %v3560 = vand.u32 2147483647, %v3113
        %vm3561 = vcmp.eq.f32.partialorder %v3560, 8.507059e+37
        %v3562 = vand.u32 %v3113, 2147483648
        %v3563 = vor.u32 1.1754944e-38, %v3562
        %v3564 = vsel %vm3561, %v3563, %v3559
        %v3565 = vmul.f32 1.0, %v3564
        %v3566 = vrcp.pop %v3114
        %v3567 = vmul.f32 %v3114, %v3566
        %v3568 = vsub.f32 1.0, %v3567
        %v3569 = vmul.f32 %v3566, %v3568
        %v3570 = vadd.f32 %v3566, %v3569
        %vm3571 = vweird.f32 %v3114
        %vm3572 = vweird.f32 %v3566
        %vm3573 = vmor %vm3571, %vm3572
        %v3574 = vsel %vm3573, %v3566, %v3570
        %v3575 = vand.u32 2147483647, %v3114
        %vm3576 = vcmp.eq.f32.partialorder %v3575, 8.507059e+37
        %v3577 = vand.u32 %v3114, 2147483648
        %v3578 = vor.u32 1.1754944e-38, %v3577
        %v3579 = vsel %vm3576, %v3578, %v3574
        %v3580 = vmul.f32 1.0, %v3579
        %v3581 = vrcp.pop %v3115
        %v3582 = vmul.f32 %v3115, %v3581
        %v3583 = vsub.f32 1.0, %v3582
        %v3584 = vmul.f32 %v3581, %v3583
        %v3585 = vadd.f32 %v3581, %v3584
        %vm3586 = vweird.f32 %v3115
        %vm3587 = vweird.f32 %v3581
        %vm3588 = vmor %vm3586, %vm3587
        %v3589 = vsel %vm3588, %v3581, %v3585
        %v3590 = vand.u32 2147483647, %v3115
        %vm3591 = vcmp.eq.f32.partialorder %v3590, 8.507059e+37
        %v3592 = vand.u32 %v3115, 2147483648
        %v3593 = vor.u32 1.1754944e-38, %v3592
        %v3594 = vsel %vm3591, %v3593, %v3589
        %v3595 = vmul.f32 1.0, %v3594
        %v3596 = vsel %vm2987, %v3130, %v2906
        %v3597 = vsel %vm2987, %v3145, %v2908
        %v3598 = vsel %vm2987, %v3160, %v2911
        %v3599 = vsel %vm2987, %v3175, %v2913
        %v3600 = vsel %vm2987, %v3190, %v2916
        %v3601 = vsel %vm2987, %v3205, %v2918
        %v3602 = vsel %vm2987, %v3220, %v2921
        %v3603 = vsel %vm2987, %v3235, %v2923
        %v3604 = vsel %vm2987, %v3250, %v2926
        %v3605 = vsel %vm2987, %v3265, %v2928
        %v3606 = vsel %vm2987, %v3280, %v2931
        %v3607 = vsel %vm2987, %v3295, %v2933
        %v3608 = vsel %vm2987, %v3310, %v2936
        %v3609 = vsel %vm2987, %v3325, %v2938
        %v3610 = vsel %vm2987, %v3340, %v2941
        %v3611 = vsel %vm2987, %v3355, %v2943
        %v3612 = vsel %vm2987, %v3370, %v2946
        %v3613 = vsel %vm2987, %v3385, %v2948
        %v3614 = vsel %vm2987, %v3400, %v2951
        %v3615 = vsel %vm2987, %v3415, %v2953
        %v3616 = vsel %vm2987, %v3430, %v2956
        %v3617 = vsel %vm2987, %v3445, %v2958
        %v3618 = vsel %vm2987, %v3460, %v2961
        %v3619 = vsel %vm2987, %v3475, %v2963
        %v3620 = vsel %vm2987, %v3490, %v2966
        %v3621 = vsel %vm2987, %v3505, %v2968
        %v3622 = vsel %vm2987, %v3520, %v2971
        %v3623 = vsel %vm2987, %v3535, %v2973
        %v3624 = vsel %vm2987, %v3550, %v2976
        %v3625 = vsel %vm2987, %v3565, %v2978
        %v3626 = vsel %vm2987, %v3580, %v2981
        %v3627 = vsel %vm2987, %v3595, %v2983
        %3628 = vxpose.xlu0.b32.start [1/16] %v3596, 128
        %3629 = vxpose.xlu0.b32.cont [2/16] %v3597, 128
        %3630 = vxpose.xlu0.b32.cont [3/16] %v3598, 128
        %3631 = vxpose.xlu0.b32.cont [4/16] %v3599, 128
        %3632 = vxpose.xlu0.b32.cont [5/16] %v3600, 128
        %3633 = vxpose.xlu0.b32.cont [6/16] %v3601, 128
        %3634 = vxpose.xlu0.b32.cont [7/16] %v3602, 128
        %3635 = vxpose.xlu0.b32.cont [8/16] %v3603, 128
        %3636 = vxpose.xlu0.b32.cont [9/16] %v3604, 128
        %3637 = vxpose.xlu0.b32.cont [10/16] %v3605, 128
        %3638 = vxpose.xlu0.b32.cont [11/16] %v3606, 128
        %3639 = vxpose.xlu0.b32.cont [12/16] %v3607, 128
        %3640 = vxpose.xlu0.b32.cont [13/16] %v3608, 128
        %3641 = vxpose.xlu0.b32.cont [14/16] %v3609, 128
        %3642 = vxpose.xlu0.b32.cont [15/16] %v3610, 128
        %3643 = vxpose.xlu0.b32.end [16/16] %v3611, 128
        %v3644 = vpop.trf.xlu0
        %v3645 = vpop.trf.xlu0
        %v3646 = vpop.trf.xlu0
        %v3647 = vpop.trf.xlu0
        %v3648 = vpop.trf.xlu0
        %v3649 = vpop.trf.xlu0
        %v3650 = vpop.trf.xlu0
        %v3651 = vpop.trf.xlu0
        %v3652 = vpop.trf.xlu0
        %v3653 = vpop.trf.xlu0
        %v3654 = vpop.trf.xlu0
        %v3655 = vpop.trf.xlu0
        %v3656 = vpop.trf.xlu0
        %v3657 = vpop.trf.xlu0
        %v3658 = vpop.trf.xlu0
        %v3659 = vpop.trf.xlu0
        %3660 = vxpose.xlu0.b32.start [1/16] %v3612, 128
        %3661 = vxpose.xlu0.b32.cont [2/16] %v3613, 128
        %3662 = vxpose.xlu0.b32.cont [3/16] %v3614, 128
        %3663 = vxpose.xlu0.b32.cont [4/16] %v3615, 128
        %3664 = vxpose.xlu0.b32.cont [5/16] %v3616, 128
        %3665 = vxpose.xlu0.b32.cont [6/16] %v3617, 128
        %3666 = vxpose.xlu0.b32.cont [7/16] %v3618, 128
        %3667 = vxpose.xlu0.b32.cont [8/16] %v3619, 128
        %3668 = vxpose.xlu0.b32.cont [9/16] %v3620, 128
        %3669 = vxpose.xlu0.b32.cont [10/16] %v3621, 128
        %3670 = vxpose.xlu0.b32.cont [11/16] %v3622, 128
        %3671 = vxpose.xlu0.b32.cont [12/16] %v3623, 128
        %3672 = vxpose.xlu0.b32.cont [13/16] %v3624, 128
        %3673 = vxpose.xlu0.b32.cont [14/16] %v3625, 128
        %3674 = vxpose.xlu0.b32.cont [15/16] %v3626, 128
        %3675 = vxpose.xlu0.b32.end [16/16] %v3627, 128
        %v3676 = vpop.trf.xlu0
        %v3677 = vpop.trf.xlu0
        %v3678 = vpop.trf.xlu0
        %v3679 = vpop.trf.xlu0
        %v3680 = vpop.trf.xlu0
        %v3681 = vpop.trf.xlu0
        %v3682 = vpop.trf.xlu0
        %v3683 = vpop.trf.xlu0
        %v3684 = vpop.trf.xlu0
        %v3685 = vpop.trf.xlu0
        %v3686 = vpop.trf.xlu0
        %v3687 = vpop.trf.xlu0
        %v3688 = vpop.trf.xlu0
        %v3689 = vpop.trf.xlu0
        %v3690 = vpop.trf.xlu0
        %v3691 = vpop.trf.xlu0
        %3692 = vst [vmem:[%s198] sm:$0xff] %v3644
        %3693 = vst [vmem:[%s198 + $0x8] sm:$0xff] %v3645
        %3694 = vst [vmem:[%s198 + $0x10] sm:$0xff] %v3646
        %3695 = vst [vmem:[%s198 + $0x18] sm:$0xff] %v3647
        %3696 = vst [vmem:[%s198 + $0x20] sm:$0xff] %v3676
        %3697 = vst [vmem:[%s198 + $0x28] sm:$0xff] %v3677
        %3698 = vst [vmem:[%s198 + $0x30] sm:$0xff] %v3678
        %3699 = vst [vmem:[%s198 + $0x38] sm:$0xff] %v3679
        %s3700 = sand.u32 %s129, 1
        %s3701 = sand.u32 %s129, 1
        %s3702 = smul.addr %s3701, 64
        %s3703 = scalar_lea.vmem [#allocation2], %s3702
        // Predicated region
        $region41: #{_forward_core.1} parent=39 // pred_check
          %p3704 = pneg %p139
        $region42: #{_forward_core.1} parent=39 // pred_check_branch
          %3706 = sbr.rel (%p3704) target = $region44
        $region43: #{_forward_core.1} parent=39 // pred_region
          %s3707 = smul.addr %s16, 8
          %s3708 = scalar_lea.vmem %s5, %s3707
          // Predicated region
          $region45: #{_forward_core.1} parent=43 // pred_check
            _
          $region46: #{_forward_core.1} parent=43 // pred_check_branch
            %3710 = sbr.rel (0) target = $region48
          $region47: #{_forward_core.1} parent=43 // pred_region
            // Predicated region
            $region49: #{_forward_core.1} parent=47 // pred_check
              _
            $region50: #{_forward_core.1} parent=47 // pred_check_branch
              %3712 = sbr.rel (0) target = $region52
            $region51: #{_forward_core.1} parent=47 // pred_region
              // Predicated region
              $region64: #{_forward_core.1} parent=51 // pred_check
                _
              $region65: #{_forward_core.1} parent=51 // pred_check_branch
                %3742 = sbr.rel (0) target = $region67
              $region66: #{_forward_core.1} parent=51 // pred_region
                loop: start=0, step=1, limit=1
                $region68: #{_forward_core.1} parent=66 // loop_pre_header
                  _
                $region69: #{_forward_core.1} parent=66 // loop_header
                  %s3744 = sphi 0, %s3748
                  %p3745 = scmp.ge.s32.totalorder %s3744, 1
                  %s3749 = sphi %s3703, %s3703
                  %s3750 = sphi %s3708, %s3708
                $region70: #{_forward_core.1} parent=66 // loop_header_branch
                  %3747 = sbr.rel (%p3745) target = $region74
                $region71: #{_forward_core.1} parent=66 // loop_body
                  %v3751 = vld [vmem:[%s3749] sm:$0xff]
                  %3752 = vst [vmem:[%s3750] sm:$0xff] %v3751
                  %v3753 = vld [vmem:[%s3749 + $0x8] sm:$0xff]
                  %3754 = vst [vmem:[%s3750 + $0x10] sm:$0xff] %v3753
                  %v3755 = vld [vmem:[%s3749 + $0x10] sm:$0xff]
                  %3756 = vst [vmem:[%s3750 + $0x20] sm:$0xff] %v3755
                  %v3757 = vld [vmem:[%s3749 + $0x18] sm:$0xff]
                  %3758 = vst [vmem:[%s3750 + $0x30] sm:$0xff] %v3757
                  %v3759 = vld [vmem:[%s3749 + $0x20] sm:$0xff]
                  %3760 = vst [vmem:[%s3750 + $0x40] sm:$0xff] %v3759
                  %v3761 = vld [vmem:[%s3749 + $0x28] sm:$0xff]
                  %3762 = vst [vmem:[%s3750 + $0x50] sm:$0xff] %v3761
                  %v3763 = vld [vmem:[%s3749 + $0x30] sm:$0xff]
                  %3764 = vst [vmem:[%s3750 + $0x60] sm:$0xff] %v3763
                  %v3765 = vld [vmem:[%s3749 + $0x38] sm:$0xff]
                  %3766 = vst [vmem:[%s3750 + $0x70] sm:$0xff] %v3765
                $region72: #{_forward_core.1} parent=66 // loop_footer
                  %s3748 = sadd.s32 1, %s3744
                $region73: #{_forward_core.1} parent=66 // loop_footer_branch
                  %3743 = sbr.rel target = $region69
                $region74: #{_forward_core.1} parent=66 // loop_exit
                  _
              $region67: #{_forward_core.1} parent=51 // pred_fallthru
                _
              // Predicated region
              $region75: #{_forward_core.1} parent=51 // pred_check
                _
              $region76: #{_forward_core.1} parent=51 // pred_check_branch
                %3768 = sbr.rel target = $region78
              $region77: #{_forward_core.1} parent=51 // pred_region
                _
              $region78: #{_forward_core.1} parent=51 // pred_fallthru
                _
            $region52: #{_forward_core.1} parent=47 // pred_fallthru
              _
            // Predicated region
            $region53: #{_forward_core.1} parent=47 // pred_check
              _
            $region54: #{_forward_core.1} parent=47 // pred_check_branch
              %3714 = sbr.rel target = $region56
            $region55: #{_forward_core.1} parent=47 // pred_region
              %s3716 = ssub.s32 256, 1
              loop: start=0, step=1, limit=1
              $region57: #{_forward_core.1} parent=55 // loop_pre_header
                _
              $region58: #{_forward_core.1} parent=55 // loop_header
                %s3718 = sphi 0, %s3722
                %p3719 = scmp.ge.s32.totalorder %s3718, 1
                %s3723 = sphi %s3703, %s3703
                %s3724 = sphi %s3708, %s3708
              $region59: #{_forward_core.1} parent=55 // loop_header_branch
                %3721 = sbr.rel (%p3719) target = $region63
              $region60: #{_forward_core.1} parent=55 // loop_body
                %v3725 = vld [vmem:[%s3723] sm:%s3716]
                %3726 = vst [vmem:[%s3724] sm:%s3716] %v3725
                %v3727 = vld [vmem:[%s3723 + $0x8] sm:%s3716]
                %3728 = vst [vmem:[%s3724 + $0x10] sm:%s3716] %v3727
                %v3729 = vld [vmem:[%s3723 + $0x10] sm:%s3716]
                %3730 = vst [vmem:[%s3724 + $0x20] sm:%s3716] %v3729
                %v3731 = vld [vmem:[%s3723 + $0x18] sm:%s3716]
                %3732 = vst [vmem:[%s3724 + $0x30] sm:%s3716] %v3731
                %v3733 = vld [vmem:[%s3723 + $0x20] sm:%s3716]
                %3734 = vst [vmem:[%s3724 + $0x40] sm:%s3716] %v3733
                %v3735 = vld [vmem:[%s3723 + $0x28] sm:%s3716]
                %3736 = vst [vmem:[%s3724 + $0x50] sm:%s3716] %v3735
                %v3737 = vld [vmem:[%s3723 + $0x30] sm:%s3716]
                %3738 = vst [vmem:[%s3724 + $0x60] sm:%s3716] %v3737
                %v3739 = vld [vmem:[%s3723 + $0x38] sm:%s3716]
                %3740 = vst [vmem:[%s3724 + $0x70] sm:%s3716] %v3739
              $region61: #{_forward_core.1} parent=55 // loop_footer
                %s3722 = sadd.s32 1, %s3718
              $region62: #{_forward_core.1} parent=55 // loop_footer_branch
                %3717 = sbr.rel target = $region58
              $region63: #{_forward_core.1} parent=55 // loop_exit
                _
            $region56: #{_forward_core.1} parent=47 // pred_fallthru
              _
          $region48: #{_forward_core.1} parent=43 // pred_fallthru
            _
          %3769 = vnop
        $region44: #{_forward_core.1} parent=39 // pred_fallthru
          _
      $region40: #{_forward_core.1} parent=5 // pred_fallthru
        _
      %p3770 = scmp.le.s32.totalorder 2, %s11
      // Predicated region
      $region79: #{_forward_core.1} parent=5 // pred_check
        %p3771 = pneg %p3770
      $region80: #{_forward_core.1} parent=5 // pred_check_branch
        %3773 = sbr.rel (%p3771) target = $region82
      $region81: #{_forward_core.1} parent=5 // pred_region
        %s3774 = ssub.s32 %s11, 2
        // Predicated region
        $region83: #{_forward_core.1} parent=81 // pred_check
          %p3775 = pneg %p145
        $region84: #{_forward_core.1} parent=81 // pred_check_branch
          %3777 = sbr.rel (%p3775) target = $region86
        $region85: #{_forward_core.1} parent=81 // pred_region
          %s3778 = sand.u32 %s130, 1
          %s3779 = sand.u32 %s130, 1
          %s3780 = smul.addr %s3779, 64
          %s3781 = scalar_lea.vmem [#allocation2], %s3780
        $region86: #{_forward_core.1} parent=81 // pred_fallthru
          _
      $region82: #{_forward_core.1} parent=5 // pred_fallthru
        _
    $region6: #{_forward_core.1} parent=1 // loop_footer
      %s15 = sadd.s32 1, %s11
    $region7: #{_forward_core.1} parent=1 // loop_footer_branch
      %10 = sbr.rel target = $region3
    $region8: #{_forward_core.1} parent=1 // loop_exit
      _

</llo_original>
